<compile_context>
chip_gen: v6e
topology: v6e:2x2x1
jax: 0.10.0
libtpu: 0.0.40
codegen_flags: <defaults>
</compile_context>

<pallas_src>
import math
import functools

import jax
import jax.numpy as jnp
from jax.experimental import pallas as pl
from jax.experimental.pallas import tpu as pltpu


# Matmul operand dtype. Keep f32 for parity with the PyTorch reference.
# On v6e/v7x set to jnp.bfloat16 to hit the bf16-native MXU (accumulation stays
# f32 via preferred_element_type); layernorm/softmax math stays f32 either way.
_MM_DTYPE = jnp.float32


def _mm(a, b):
    """2-D matmul with f32 accumulation (optionally bf16 MXU operands)."""
    return jnp.dot(a.astype(_MM_DTYPE), b.astype(_MM_DTYPE),
                   preferred_element_type=jnp.float32)


def _layernorm_fm(x, g, b, eps=1e-5):
    """LayerNorm over the feature axis, feature-major layout [E, N]."""
    mean = jnp.mean(x, axis=0, keepdims=True)
    var = jnp.mean((x - mean) ** 2, axis=0, keepdims=True)
    return (x - mean) * jax.lax.rsqrt(var + eps) * g + b


# ------------------------------ fused kernel --------------------------------

def _gnn_kernel(*refs, num_layers, num_heads):
    # refs layout:
    #   xT, edge_bias, emb_w, emb_b,
    #   per block: ln1_g, ln1_b, qkv_w, qkv_b, proj_wx, proj_wy, proj_b,
    #              ln2_g, ln2_b
    #   mlp1_w, mlp1_b, mlp2_w, mlp2_b,
    #   out
    xT_ref, bias_ref, emb_w, emb_b = refs[0:4]
    idx = 4
    blocks = []
    for _ in range(num_layers):
        blocks.append(refs[idx:idx + 9])
        idx += 9
    mlp1_w, mlp1_b, mlp2_w, mlp2_b = refs[idx:idx + 4]
    out_ref = refs[idx + 4]

    bias = bias_ref[...]                       # [N, N] additive mask (0 / -1e30)

    # --- embedding (feature-major): h = W_emb @ x^T + b -> [E, N] ---
    h = _mm(emb_w[...], xT_ref[...]) + emb_b[...]

    e = h.shape[0]
    d = e // num_heads                         # head slices are 8-row aligned

    # --- attention blocks (statically unrolled; L is tiny here) ---
    for (ln1_g, ln1_b, qkv_w, qkv_b, proj_wx, proj_wy, proj_b,
         ln2_g, ln2_b) in blocks:
        residual = h
        xn = _layernorm_fm(h, ln1_g[...], ln1_b[...])        # [E, N]

        # fused QKV projection, feature-major: [3E, E] @ [E, N] -> [3E, N].
        # The 1/sqrt(d) scale is pre-folded into the Q rows of qkv_w.
        qkv = _mm(qkv_w[...], xn) + qkv_b[...]

        # Per-head work: all slices below are along the sublane axis at
        # tile (8-row) boundaries -> no lane relayouts.
        o_heads = []
        for hd in range(num_heads):
            qh = qkv[hd * d:(hd + 1) * d, :]                 # [D, N]
            kh = qkv[e + hd * d:e + (hd + 1) * d, :]         # [D, N]
            vh = qkv[2 * e + hd * d:2 * e + (hd + 1) * d, :]  # [D, N]

            # scores (node-major): [N, D] @ [D, N] -> [N, N]
            s = _mm(qh.T, kh) + bias
            m = jnp.max(s, axis=-1, keepdims=True)
            p = jnp.exp(s - m)
            denom = jnp.sum(p, axis=-1, keepdims=True)
            p = p * pl.reciprocal(denom, approx=False)       # exact, EUP slot

            # o^T = V^T @ P^T : [D, N] @ [N, N] -> [D, N]
            o_heads.append(_mm(vh, p.T))

        # Tile-aligned sublane concat -> dense y^T [E, N]; the y-projection is
        # now a single [E,E] matmul instead of H small ones.
        yT = jnp.concatenate(o_heads, axis=0)

        # proj(cat(xn, y)) folded:  Wx @ xn + Wy @ y + b
        agg = _mm(proj_wx[...], xn) + _mm(proj_wy[...], yT) + proj_b[...]

        x2 = _layernorm_fm(agg, ln2_g[...], ln2_b[...])
        h = residual + jnp.maximum(x2, 0.0)

    # --- MLP head (feature-major); classes padded to a full 128-lane tile ---
    h1 = jnp.maximum(_mm(mlp1_w[...], h) + mlp1_b[...], 0.0)   # [2E, N]
    logits_t = _mm(mlp2_w[...], h1) + mlp2_b[...]              # [C_pad, N]
    out_ref[...] = logits_t.T                                  # lane-dense [N, C_pad]


# ------------------------------ model forward -------------------------------

def gnn_forward(x, edge_bias, params, num_heads):
    """Whole GNN forward as one pallas_call (weights + activations in VMEM)."""
    num_layers = len(params["blocks"])
    inputs = [x.T, edge_bias, params["emb_w"], params["emb_b"]]
    for blk in params["blocks"]:
        inputs += [blk["ln1_g"], blk["ln1_b"],
                   blk["qkv_w"], blk["qkv_b"],
                   blk["proj_wx"], blk["proj_wy"], blk["proj_b"],
                   blk["ln2_g"], blk["ln2_b"]]
    inputs += [params["mlp1_w"], params["mlp1_b"],
               params["mlp2_w"], params["mlp2_b"]]

    n = x.shape[0]
    in_dim = x.shape[1]
    e = params["emb_w"].shape[0]
    c_pad = params["mlp2_w"].shape[0]
    num_classes = params["num_classes"]

    kern = functools.partial(_gnn_kernel, num_layers=num_layers,
                             num_heads=num_heads)

    # rough cost hint for the XLA scheduler around the fused call
    flops = 2 * n * in_dim * e
    flops += num_layers * (2 * n * e * 3 * e + 4 * n * n * e + 4 * n * e * e)
    flops += 4 * n * e * e + 4 * n * e * c_pad
    transcendentals = num_layers * (num_heads * n * n + num_heads * n + 4 * n)
    bytes_accessed = sum(int(a.size) * a.dtype.itemsize for a in inputs)
    bytes_accessed += n * c_pad * 4

    out = pl.pallas_call(
        kern,
        out_shape=jax.ShapeDtypeStruct((n, c_pad), jnp.float32),
        in_specs=[pl.BlockSpec(memory_space=pltpu.MemorySpace.VMEM)] * len(inputs),
        out_specs=pl.BlockSpec(memory_space=pltpu.MemorySpace.VMEM),
        cost_estimate=pl.CostEstimate(flops=int(flops),
                                      transcendentals=int(transcendentals),
                                      bytes_accessed=int(bytes_accessed)),
    )(*inputs)
    return out[:, :num_classes]


# ------------------------------ param init ----------------------------------

def init_params(key, input_dim, embedding_dim, num_heads, num_layers,
                num_classes):
    """PyTorch 'custom' init: Linear W ~ N(0, 0.02), b = 0, LayerNorm w=1, b=0.

    Weights are stored in PyTorch-native [out, in] layout (the kernel computes
    feature-major W @ x^T); biases are [out, 1] columns.  The 1/sqrt(head_dim)
    attention scale is folded into the Q rows of the fused QKV weight, and the
    classifier weight/bias are zero-padded to a full 128-lane output tile.
    """
    assert embedding_dim % num_heads == 0
    e = embedding_dim
    d = e // num_heads

    def lin_w(k, in_dim, out_dim):
        return 0.02 * jax.random.normal(k, (out_dim, in_dim), jnp.float32)

    keys = jax.random.split(key, 3 + 4 * num_layers)
    ki = iter(keys)

    params = {"num_classes": num_classes}
    params["emb_w"] = lin_w(next(ki), input_dim, e)
    params["emb_b"] = jnp.zeros((e, 1), jnp.float32)

    scale = 1.0 / math.sqrt(d)
    blocks = []
    for _ in range(num_layers):
        blk = {}
        blk["ln1_g"] = jnp.ones((e, 1), jnp.float32)
        blk["ln1_b"] = jnp.zeros((e, 1), jnp.float32)
        blk["ln2_g"] = jnp.ones((e, 1), jnp.float32)
        blk["ln2_b"] = jnp.zeros((e, 1), jnp.float32)

        q_w = lin_w(next(ki), e, e) * scale          # fold 1/sqrt(d) into Q
        k_w = lin_w(next(ki), e, e)
        v_w = lin_w(next(ki), e, e)
        blk["qkv_w"] = jnp.concatenate([q_w, k_w, v_w], axis=0)   # [3E, E]
        blk["qkv_b"] = jnp.zeros((3 * e, 1), jnp.float32)

        proj_w = lin_w(next(ki), 2 * e, e)                        # [E, 2E]
        blk["proj_wx"] = proj_w[:, :e]                            # acts on xn
        blk["proj_wy"] = proj_w[:, e:]                            # acts on y
        blk["proj_b"] = jnp.zeros((e, 1), jnp.float32)
        blocks.append(blk)
    params["blocks"] = blocks

    params["mlp1_w"] = lin_w(next(ki), e, 2 * e)
    params["mlp1_b"] = jnp.zeros((2 * e, 1), jnp.float32)

    c_pad = max(128, ((num_classes + 127) // 128) * 128)   # lane-dense output
    w2 = lin_w(next(ki), 2 * e, num_classes)               # [C, 2E]
    params["mlp2_w"] = jnp.zeros((c_pad, 2 * e), jnp.float32).at[:num_classes].set(w2)
    params["mlp2_b"] = jnp.zeros((c_pad, 1), jnp.float32)
    return params


# --------------------------------- main --------------------------------------

if __name__ == "__main__":
    # config
    num_nodes = 8
    input_dim = 16
    embedding_dim = 32
    num_heads = 4
    num_layers = 2
    num_classes = 5

    key = jax.random.PRNGKey(0)
    kx, kp = jax.random.split(key)

    # node features
    x = jax.random.normal(kx, (num_nodes, input_dim), jnp.float32)

    # deterministic edge_index: self loops + a directed ring (every softmax row
    # has at least one unmasked entry, as the PyTorch model requires)
    src = jnp.concatenate([jnp.arange(num_nodes), jnp.arange(num_nodes)])
    dst = jnp.concatenate([jnp.arange(num_nodes),
                           (jnp.arange(num_nodes) + 1) % num_nodes])
    edge_index = jnp.stack([src, dst])  # [2, num_edges]

    # additive attention mask: 0 where an edge exists, large negative elsewhere
    # (finite -1e30 instead of -inf so masked rows can never produce NaN)
    edge_bias = jnp.full((num_nodes, num_nodes), -1e30, jnp.float32)
    edge_bias = edge_bias.at[edge_index[0], edge_index[1]].set(0.0)

    params = init_params(kp, input_dim, embedding_dim, num_heads,
                         num_layers, num_classes)

    logits = gnn_forward(x, edge_bias, params, num_heads)
    jax.block_until_ready(logits)
    assert logits.shape == (num_nodes, num_classes)
    print("KERNEL_OK")
</pallas_src>

<mosaic_0001>
module attributes {stable_mosaic.version = 11 : i64} {
  func.func @_gnn_kernel(%arg0: memref<16x8xf32, #tpu.memory_space<vmem>>, %arg1: memref<8x8xf32, #tpu.memory_space<vmem>>, %arg2: memref<32x16xf32, #tpu.memory_space<vmem>>, %arg3: memref<32x1xf32, #tpu.memory_space<vmem>>, %arg4: memref<32x1xf32, #tpu.memory_space<vmem>>, %arg5: memref<32x1xf32, #tpu.memory_space<vmem>>, %arg6: memref<96x32xf32, #tpu.memory_space<vmem>>, %arg7: memref<96x1xf32, #tpu.memory_space<vmem>>, %arg8: memref<32x32xf32, #tpu.memory_space<vmem>>, %arg9: memref<32x32xf32, #tpu.memory_space<vmem>>, %arg10: memref<32x1xf32, #tpu.memory_space<vmem>>, %arg11: memref<32x1xf32, #tpu.memory_space<vmem>>, %arg12: memref<32x1xf32, #tpu.memory_space<vmem>>, %arg13: memref<32x1xf32, #tpu.memory_space<vmem>>, %arg14: memref<32x1xf32, #tpu.memory_space<vmem>>, %arg15: memref<96x32xf32, #tpu.memory_space<vmem>>, %arg16: memref<96x1xf32, #tpu.memory_space<vmem>>, %arg17: memref<32x32xf32, #tpu.memory_space<vmem>>, %arg18: memref<32x32xf32, #tpu.memory_space<vmem>>, %arg19: memref<32x1xf32, #tpu.memory_space<vmem>>, %arg20: memref<32x1xf32, #tpu.memory_space<vmem>>, %arg21: memref<32x1xf32, #tpu.memory_space<vmem>>, %arg22: memref<64x32xf32, #tpu.memory_space<vmem>>, %arg23: memref<64x1xf32, #tpu.memory_space<vmem>>, %arg24: memref<128x64xf32, #tpu.memory_space<vmem>>, %arg25: memref<128x1xf32, #tpu.memory_space<vmem>>, %arg26: memref<8x128xf32, #tpu.memory_space<vmem>>) attributes {dimension_semantics = [], scalar_prefetch = 0 : i64, scratch_operands = 0 : i64, tpu.core_type = #tpu.core_type<tc>} {
    %c0 = arith.constant 0 : index
    %c0_0 = arith.constant 0 : index
    %0 = vector.load %arg1[%c0, %c0_0] : memref<8x8xf32, #tpu.memory_space<vmem>>, vector<8x8xf32>
    %c0_1 = arith.constant 0 : index
    %c0_2 = arith.constant 0 : index
    %1 = vector.load %arg2[%c0_1, %c0_2] : memref<32x16xf32, #tpu.memory_space<vmem>>, vector<32x16xf32>
    %c0_3 = arith.constant 0 : index
    %c0_4 = arith.constant 0 : index
    %2 = vector.load %arg0[%c0_3, %c0_4] : memref<16x8xf32, #tpu.memory_space<vmem>>, vector<16x8xf32>
    %cst = arith.constant dense<0.000000e+00> : vector<32x8xf32>
    %3 = tpu.matmul %1, %2, %cst {dimension_numbers = #tpu.dot_dimension_numbers<[1], [0], [0], [1], [0, 0, 1, 1], [], []>} : vector<32x16xf32>, vector<16x8xf32>, vector<32x8xf32> -> vector<32x8xf32>
    %c0_5 = arith.constant 0 : index
    %c0_6 = arith.constant 0 : index
    %4 = vector.load %arg3[%c0_5, %c0_6] : memref<32x1xf32, #tpu.memory_space<vmem>>, vector<32x1xf32>
    %5 = vector.broadcast %4 : vector<32x1xf32> to vector<32x8xf32>
    %6 = arith.addf %3, %5 : vector<32x8xf32>
    %c0_7 = arith.constant 0 : index
    %c0_8 = arith.constant 0 : index
    %7 = vector.load %arg4[%c0_7, %c0_8] : memref<32x1xf32, #tpu.memory_space<vmem>>, vector<32x1xf32>
    %c0_9 = arith.constant 0 : index
    %c0_10 = arith.constant 0 : index
    %8 = vector.load %arg5[%c0_9, %c0_10] : memref<32x1xf32, #tpu.memory_space<vmem>>, vector<32x1xf32>
    %cst_11 = arith.constant dense<0.000000e+00> : vector<8xf32>
    %9 = vector.multi_reduction <add>, %6, %cst_11 [0] : vector<32x8xf32> to vector<8xf32>
    %10 = vector.shape_cast %9 : vector<8xf32> to vector<1x8xf32>
    %cst_12 = arith.constant 3.200000e+01 : f32
    %11 = vector.broadcast %cst_12 : f32 to vector<1x8xf32>
    %12 = arith.divf %10, %11 : vector<1x8xf32>
    %13 = vector.broadcast %12 : vector<1x8xf32> to vector<32x8xf32>
    %14 = arith.subf %6, %13 : vector<32x8xf32>
    %15 = arith.mulf %14, %14 : vector<32x8xf32>
    %cst_13 = arith.constant dense<0.000000e+00> : vector<8xf32>
    %16 = vector.multi_reduction <add>, %15, %cst_13 [0] : vector<32x8xf32> to vector<8xf32>
    %17 = vector.shape_cast %16 : vector<8xf32> to vector<1x8xf32>
    %cst_14 = arith.constant 3.200000e+01 : f32
    %18 = vector.broadcast %cst_14 : f32 to vector<1x8xf32>
    %19 = arith.divf %17, %18 : vector<1x8xf32>
    %20 = vector.broadcast %12 : vector<1x8xf32> to vector<32x8xf32>
    %21 = arith.subf %6, %20 : vector<32x8xf32>
    %cst_15 = arith.constant 9.99999974E-6 : f32
    %22 = vector.broadcast %cst_15 : f32 to vector<1x8xf32>
    %23 = arith.addf %19, %22 : vector<1x8xf32>
    %24 = math.rsqrt %23 : vector<1x8xf32>
    %25 = vector.broadcast %24 : vector<1x8xf32> to vector<32x8xf32>
    %26 = arith.mulf %21, %25 : vector<32x8xf32>
    %27 = vector.broadcast %7 : vector<32x1xf32> to vector<32x8xf32>
    %28 = arith.mulf %26, %27 : vector<32x8xf32>
    %29 = vector.broadcast %8 : vector<32x1xf32> to vector<32x8xf32>
    %30 = arith.addf %28, %29 : vector<32x8xf32>
    %c0_16 = arith.constant 0 : index
    %c0_17 = arith.constant 0 : index
    %31 = vector.load %arg6[%c0_16, %c0_17] : memref<96x32xf32, #tpu.memory_space<vmem>>, vector<96x32xf32>
    %cst_18 = arith.constant dense<0.000000e+00> : vector<96x8xf32>
    %32 = tpu.matmul %31, %30, %cst_18 {dimension_numbers = #tpu.dot_dimension_numbers<[1], [0], [0], [1], [0, 0, 1, 1], [], []>} : vector<96x32xf32>, vector<32x8xf32>, vector<96x8xf32> -> vector<96x8xf32>
    %c0_19 = arith.constant 0 : index
    %c0_20 = arith.constant 0 : index
    %33 = vector.load %arg7[%c0_19, %c0_20] : memref<96x1xf32, #tpu.memory_space<vmem>>, vector<96x1xf32>
    %34 = vector.broadcast %33 : vector<96x1xf32> to vector<96x8xf32>
    %35 = arith.addf %32, %34 : vector<96x8xf32>
    %36 = vector.extract_strided_slice %35 {offsets = [0, 0], sizes = [8, 8], strides = [1, 1]} : vector<96x8xf32> to vector<8x8xf32>
    %37 = vector.extract_strided_slice %35 {offsets = [32, 0], sizes = [8, 8], strides = [1, 1]} : vector<96x8xf32> to vector<8x8xf32>
    %38 = vector.extract_strided_slice %35 {offsets = [64, 0], sizes = [8, 8], strides = [1, 1]} : vector<96x8xf32> to vector<8x8xf32>
    %39 = tpu.transpose %36, [1, 0] : vector<8x8xf32> -> vector<8x8xf32>
    %cst_21 = arith.constant dense<0.000000e+00> : vector<8x8xf32>
    %40 = tpu.matmul %39, %37, %cst_21 {dimension_numbers = #tpu.dot_dimension_numbers<[1], [0], [0], [1], [0, 0, 1, 1], [], []>} : vector<8x8xf32>, vector<8x8xf32>, vector<8x8xf32> -> vector<8x8xf32>
    %41 = arith.addf %40, %0 : vector<8x8xf32>
    %cst_22 = arith.constant dense<0xFF800000> : vector<8xf32>
    %42 = vector.multi_reduction <maximumf>, %41, %cst_22 [1] : vector<8x8xf32> to vector<8xf32>
    %43 = vector.shape_cast %42 : vector<8xf32> to vector<8x1xf32>
    %44 = vector.broadcast %43 : vector<8x1xf32> to vector<8x8xf32>
    %45 = arith.subf %41, %44 : vector<8x8xf32>
    %46 = math.exp %45 : vector<8x8xf32>
    %cst_23 = arith.constant dense<0.000000e+00> : vector<8xf32>
    %47 = vector.multi_reduction <add>, %46, %cst_23 [1] : vector<8x8xf32> to vector<8xf32>
    %48 = vector.shape_cast %47 : vector<8xf32> to vector<8x1xf32>
    %49 = tpu.reciprocal %48 : vector<8x1xf32> -> vector<8x1xf32>
    %50 = vector.broadcast %49 : vector<8x1xf32> to vector<8x8xf32>
    %51 = arith.mulf %46, %50 : vector<8x8xf32>
    %52 = tpu.transpose %51, [1, 0] : vector<8x8xf32> -> vector<8x8xf32>
    %cst_24 = arith.constant dense<0.000000e+00> : vector<8x8xf32>
    %53 = tpu.matmul %38, %52, %cst_24 {dimension_numbers = #tpu.dot_dimension_numbers<[1], [0], [0], [1], [0, 0, 1, 1], [], []>} : vector<8x8xf32>, vector<8x8xf32>, vector<8x8xf32> -> vector<8x8xf32>
    %54 = vector.extract_strided_slice %35 {offsets = [8, 0], sizes = [8, 8], strides = [1, 1]} : vector<96x8xf32> to vector<8x8xf32>
    %55 = vector.extract_strided_slice %35 {offsets = [40, 0], sizes = [8, 8], strides = [1, 1]} : vector<96x8xf32> to vector<8x8xf32>
    %56 = vector.extract_strided_slice %35 {offsets = [72, 0], sizes = [8, 8], strides = [1, 1]} : vector<96x8xf32> to vector<8x8xf32>
    %57 = tpu.transpose %54, [1, 0] : vector<8x8xf32> -> vector<8x8xf32>
    %cst_25 = arith.constant dense<0.000000e+00> : vector<8x8xf32>
    %58 = tpu.matmul %57, %55, %cst_25 {dimension_numbers = #tpu.dot_dimension_numbers<[1], [0], [0], [1], [0, 0, 1, 1], [], []>} : vector<8x8xf32>, vector<8x8xf32>, vector<8x8xf32> -> vector<8x8xf32>
    %59 = arith.addf %58, %0 : vector<8x8xf32>
    %cst_26 = arith.constant dense<0xFF800000> : vector<8xf32>
    %60 = vector.multi_reduction <maximumf>, %59, %cst_26 [1] : vector<8x8xf32> to vector<8xf32>
    %61 = vector.shape_cast %60 : vector<8xf32> to vector<8x1xf32>
    %62 = vector.broadcast %61 : vector<8x1xf32> to vector<8x8xf32>
    %63 = arith.subf %59, %62 : vector<8x8xf32>
    %64 = math.exp %63 : vector<8x8xf32>
    %cst_27 = arith.constant dense<0.000000e+00> : vector<8xf32>
    %65 = vector.multi_reduction <add>, %64, %cst_27 [1] : vector<8x8xf32> to vector<8xf32>
    %66 = vector.shape_cast %65 : vector<8xf32> to vector<8x1xf32>
    %67 = tpu.reciprocal %66 : vector<8x1xf32> -> vector<8x1xf32>
    %68 = vector.broadcast %67 : vector<8x1xf32> to vector<8x8xf32>
    %69 = arith.mulf %64, %68 : vector<8x8xf32>
    %70 = tpu.transpose %69, [1, 0] : vector<8x8xf32> -> vector<8x8xf32>
    %cst_28 = arith.constant dense<0.000000e+00> : vector<8x8xf32>
    %71 = tpu.matmul %56, %70, %cst_28 {dimension_numbers = #tpu.dot_dimension_numbers<[1], [0], [0], [1], [0, 0, 1, 1], [], []>} : vector<8x8xf32>, vector<8x8xf32>, vector<8x8xf32> -> vector<8x8xf32>
    %72 = vector.extract_strided_slice %35 {offsets = [16, 0], sizes = [8, 8], strides = [1, 1]} : vector<96x8xf32> to vector<8x8xf32>
    %73 = vector.extract_strided_slice %35 {offsets = [48, 0], sizes = [8, 8], strides = [1, 1]} : vector<96x8xf32> to vector<8x8xf32>
    %74 = vector.extract_strided_slice %35 {offsets = [80, 0], sizes = [8, 8], strides = [1, 1]} : vector<96x8xf32> to vector<8x8xf32>
    %75 = tpu.transpose %72, [1, 0] : vector<8x8xf32> -> vector<8x8xf32>
    %cst_29 = arith.constant dense<0.000000e+00> : vector<8x8xf32>
    %76 = tpu.matmul %75, %73, %cst_29 {dimension_numbers = #tpu.dot_dimension_numbers<[1], [0], [0], [1], [0, 0, 1, 1], [], []>} : vector<8x8xf32>, vector<8x8xf32>, vector<8x8xf32> -> vector<8x8xf32>
    %77 = arith.addf %76, %0 : vector<8x8xf32>
    %cst_30 = arith.constant dense<0xFF800000> : vector<8xf32>
    %78 = vector.multi_reduction <maximumf>, %77, %cst_30 [1] : vector<8x8xf32> to vector<8xf32>
    %79 = vector.shape_cast %78 : vector<8xf32> to vector<8x1xf32>
    %80 = vector.broadcast %79 : vector<8x1xf32> to vector<8x8xf32>
    %81 = arith.subf %77, %80 : vector<8x8xf32>
    %82 = math.exp %81 : vector<8x8xf32>
    %cst_31 = arith.constant dense<0.000000e+00> : vector<8xf32>
    %83 = vector.multi_reduction <add>, %82, %cst_31 [1] : vector<8x8xf32> to vector<8xf32>
    %84 = vector.shape_cast %83 : vector<8xf32> to vector<8x1xf32>
    %85 = tpu.reciprocal %84 : vector<8x1xf32> -> vector<8x1xf32>
    %86 = vector.broadcast %85 : vector<8x1xf32> to vector<8x8xf32>
    %87 = arith.mulf %82, %86 : vector<8x8xf32>
    %88 = tpu.transpose %87, [1, 0] : vector<8x8xf32> -> vector<8x8xf32>
    %cst_32 = arith.constant dense<0.000000e+00> : vector<8x8xf32>
    %89 = tpu.matmul %74, %88, %cst_32 {dimension_numbers = #tpu.dot_dimension_numbers<[1], [0], [0], [1], [0, 0, 1, 1], [], []>} : vector<8x8xf32>, vector<8x8xf32>, vector<8x8xf32> -> vector<8x8xf32>
    %90 = vector.extract_strided_slice %35 {offsets = [24, 0], sizes = [8, 8], strides = [1, 1]} : vector<96x8xf32> to vector<8x8xf32>
    %91 = vector.extract_strided_slice %35 {offsets = [56, 0], sizes = [8, 8], strides = [1, 1]} : vector<96x8xf32> to vector<8x8xf32>
    %92 = vector.extract_strided_slice %35 {offsets = [88, 0], sizes = [8, 8], strides = [1, 1]} : vector<96x8xf32> to vector<8x8xf32>
    %93 = tpu.transpose %90, [1, 0] : vector<8x8xf32> -> vector<8x8xf32>
    %cst_33 = arith.constant dense<0.000000e+00> : vector<8x8xf32>
    %94 = tpu.matmul %93, %91, %cst_33 {dimension_numbers = #tpu.dot_dimension_numbers<[1], [0], [0], [1], [0, 0, 1, 1], [], []>} : vector<8x8xf32>, vector<8x8xf32>, vector<8x8xf32> -> vector<8x8xf32>
    %95 = arith.addf %94, %0 : vector<8x8xf32>
    %cst_34 = arith.constant dense<0xFF800000> : vector<8xf32>
    %96 = vector.multi_reduction <maximumf>, %95, %cst_34 [1] : vector<8x8xf32> to vector<8xf32>
    %97 = vector.shape_cast %96 : vector<8xf32> to vector<8x1xf32>
    %98 = vector.broadcast %97 : vector<8x1xf32> to vector<8x8xf32>
    %99 = arith.subf %95, %98 : vector<8x8xf32>
    %100 = math.exp %99 : vector<8x8xf32>
    %cst_35 = arith.constant dense<0.000000e+00> : vector<8xf32>
    %101 = vector.multi_reduction <add>, %100, %cst_35 [1] : vector<8x8xf32> to vector<8xf32>
    %102 = vector.shape_cast %101 : vector<8xf32> to vector<8x1xf32>
    %103 = tpu.reciprocal %102 : vector<8x1xf32> -> vector<8x1xf32>
    %104 = vector.broadcast %103 : vector<8x1xf32> to vector<8x8xf32>
    %105 = arith.mulf %100, %104 : vector<8x8xf32>
    %106 = tpu.transpose %105, [1, 0] : vector<8x8xf32> -> vector<8x8xf32>
    %cst_36 = arith.constant dense<0.000000e+00> : vector<8x8xf32>
    %107 = tpu.matmul %92, %106, %cst_36 {dimension_numbers = #tpu.dot_dimension_numbers<[1], [0], [0], [1], [0, 0, 1, 1], [], []>} : vector<8x8xf32>, vector<8x8xf32>, vector<8x8xf32> -> vector<8x8xf32>
    %108 = tpu.concatenate %53, %71, %89, %107 in 0 : vector<8x8xf32>, vector<8x8xf32>, vector<8x8xf32>, vector<8x8xf32> -> vector<32x8xf32>
    %c0_37 = arith.constant 0 : index
    %c0_38 = arith.constant 0 : index
    %109 = vector.load %arg8[%c0_37, %c0_38] : memref<32x32xf32, #tpu.memory_space<vmem>>, vector<32x32xf32>
    %cst_39 = arith.constant dense<0.000000e+00> : vector<32x8xf32>
    %110 = tpu.matmul %109, %30, %cst_39 {dimension_numbers = #tpu.dot_dimension_numbers<[1], [0], [0], [1], [0, 0, 1, 1], [], []>} : vector<32x32xf32>, vector<32x8xf32>, vector<32x8xf32> -> vector<32x8xf32>
    %c0_40 = arith.constant 0 : index
    %c0_41 = arith.constant 0 : index
    %111 = vector.load %arg9[%c0_40, %c0_41] : memref<32x32xf32, #tpu.memory_space<vmem>>, vector<32x32xf32>
    %cst_42 = arith.constant dense<0.000000e+00> : vector<32x8xf32>
    %112 = tpu.matmul %111, %108, %cst_42 {dimension_numbers = #tpu.dot_dimension_numbers<[1], [0], [0], [1], [0, 0, 1, 1], [], []>} : vector<32x32xf32>, vector<32x8xf32>, vector<32x8xf32> -> vector<32x8xf32>
    %113 = arith.addf %110, %112 : vector<32x8xf32>
    %c0_43 = arith.constant 0 : index
    %c0_44 = arith.constant 0 : index
    %114 = vector.load %arg10[%c0_43, %c0_44] : memref<32x1xf32, #tpu.memory_space<vmem>>, vector<32x1xf32>
    %115 = vector.broadcast %114 : vector<32x1xf32> to vector<32x8xf32>
    %116 = arith.addf %113, %115 : vector<32x8xf32>
    %c0_45 = arith.constant 0 : index
    %c0_46 = arith.constant 0 : index
    %117 = vector.load %arg11[%c0_45, %c0_46] : memref<32x1xf32, #tpu.memory_space<vmem>>, vector<32x1xf32>
    %c0_47 = arith.constant 0 : index
    %c0_48 = arith.constant 0 : index
    %118 = vector.load %arg12[%c0_47, %c0_48] : memref<32x1xf32, #tpu.memory_space<vmem>>, vector<32x1xf32>
    %cst_49 = arith.constant dense<0.000000e+00> : vector<8xf32>
    %119 = vector.multi_reduction <add>, %116, %cst_49 [0] : vector<32x8xf32> to vector<8xf32>
    %120 = vector.shape_cast %119 : vector<8xf32> to vector<1x8xf32>
    %cst_50 = arith.constant 3.200000e+01 : f32
    %121 = vector.broadcast %cst_50 : f32 to vector<1x8xf32>
    %122 = arith.divf %120, %121 : vector<1x8xf32>
    %123 = vector.broadcast %122 : vector<1x8xf32> to vector<32x8xf32>
    %124 = arith.subf %116, %123 : vector<32x8xf32>
    %125 = arith.mulf %124, %124 : vector<32x8xf32>
    %cst_51 = arith.constant dense<0.000000e+00> : vector<8xf32>
    %126 = vector.multi_reduction <add>, %125, %cst_51 [0] : vector<32x8xf32> to vector<8xf32>
    %127 = vector.shape_cast %126 : vector<8xf32> to vector<1x8xf32>
    %cst_52 = arith.constant 3.200000e+01 : f32
    %128 = vector.broadcast %cst_52 : f32 to vector<1x8xf32>
    %129 = arith.divf %127, %128 : vector<1x8xf32>
    %130 = vector.broadcast %122 : vector<1x8xf32> to vector<32x8xf32>
    %131 = arith.subf %116, %130 : vector<32x8xf32>
    %cst_53 = arith.constant 9.99999974E-6 : f32
    %132 = vector.broadcast %cst_53 : f32 to vector<1x8xf32>
    %133 = arith.addf %129, %132 : vector<1x8xf32>
    %134 = math.rsqrt %133 : vector<1x8xf32>
    %135 = vector.broadcast %134 : vector<1x8xf32> to vector<32x8xf32>
    %136 = arith.mulf %131, %135 : vector<32x8xf32>
    %137 = vector.broadcast %117 : vector<32x1xf32> to vector<32x8xf32>
    %138 = arith.mulf %136, %137 : vector<32x8xf32>
    %139 = vector.broadcast %118 : vector<32x1xf32> to vector<32x8xf32>
    %140 = arith.addf %138, %139 : vector<32x8xf32>
    %cst_54 = arith.constant 0.000000e+00 : f32
    %141 = vector.broadcast %cst_54 : f32 to vector<32x8xf32>
    %142 = arith.maximumf %140, %141 : vector<32x8xf32>
    %143 = arith.addf %6, %142 : vector<32x8xf32>
    %c0_55 = arith.constant 0 : index
    %c0_56 = arith.constant 0 : index
    %144 = vector.load %arg13[%c0_55, %c0_56] : memref<32x1xf32, #tpu.memory_space<vmem>>, vector<32x1xf32>
    %c0_57 = arith.constant 0 : index
    %c0_58 = arith.constant 0 : index
    %145 = vector.load %arg14[%c0_57, %c0_58] : memref<32x1xf32, #tpu.memory_space<vmem>>, vector<32x1xf32>
    %cst_59 = arith.constant dense<0.000000e+00> : vector<8xf32>
    %146 = vector.multi_reduction <add>, %143, %cst_59 [0] : vector<32x8xf32> to vector<8xf32>
    %147 = vector.shape_cast %146 : vector<8xf32> to vector<1x8xf32>
    %cst_60 = arith.constant 3.200000e+01 : f32
    %148 = vector.broadcast %cst_60 : f32 to vector<1x8xf32>
    %149 = arith.divf %147, %148 : vector<1x8xf32>
    %150 = vector.broadcast %149 : vector<1x8xf32> to vector<32x8xf32>
    %151 = arith.subf %143, %150 : vector<32x8xf32>
    %152 = arith.mulf %151, %151 : vector<32x8xf32>
    %cst_61 = arith.constant dense<0.000000e+00> : vector<8xf32>
    %153 = vector.multi_reduction <add>, %152, %cst_61 [0] : vector<32x8xf32> to vector<8xf32>
    %154 = vector.shape_cast %153 : vector<8xf32> to vector<1x8xf32>
    %cst_62 = arith.constant 3.200000e+01 : f32
    %155 = vector.broadcast %cst_62 : f32 to vector<1x8xf32>
    %156 = arith.divf %154, %155 : vector<1x8xf32>
    %157 = vector.broadcast %149 : vector<1x8xf32> to vector<32x8xf32>
    %158 = arith.subf %143, %157 : vector<32x8xf32>
    %cst_63 = arith.constant 9.99999974E-6 : f32
    %159 = vector.broadcast %cst_63 : f32 to vector<1x8xf32>
    %160 = arith.addf %156, %159 : vector<1x8xf32>
    %161 = math.rsqrt %160 : vector<1x8xf32>
    %162 = vector.broadcast %161 : vector<1x8xf32> to vector<32x8xf32>
    %163 = arith.mulf %158, %162 : vector<32x8xf32>
    %164 = vector.broadcast %144 : vector<32x1xf32> to vector<32x8xf32>
    %165 = arith.mulf %163, %164 : vector<32x8xf32>
    %166 = vector.broadcast %145 : vector<32x1xf32> to vector<32x8xf32>
    %167 = arith.addf %165, %166 : vector<32x8xf32>
    %c0_64 = arith.constant 0 : index
    %c0_65 = arith.constant 0 : index
    %168 = vector.load %arg15[%c0_64, %c0_65] : memref<96x32xf32, #tpu.memory_space<vmem>>, vector<96x32xf32>
    %cst_66 = arith.constant dense<0.000000e+00> : vector<96x8xf32>
    %169 = tpu.matmul %168, %167, %cst_66 {dimension_numbers = #tpu.dot_dimension_numbers<[1], [0], [0], [1], [0, 0, 1, 1], [], []>} : vector<96x32xf32>, vector<32x8xf32>, vector<96x8xf32> -> vector<96x8xf32>
    %c0_67 = arith.constant 0 : index
    %c0_68 = arith.constant 0 : index
    %170 = vector.load %arg16[%c0_67, %c0_68] : memref<96x1xf32, #tpu.memory_space<vmem>>, vector<96x1xf32>
    %171 = vector.broadcast %170 : vector<96x1xf32> to vector<96x8xf32>
    %172 = arith.addf %169, %171 : vector<96x8xf32>
    %173 = vector.extract_strided_slice %172 {offsets = [0, 0], sizes = [8, 8], strides = [1, 1]} : vector<96x8xf32> to vector<8x8xf32>
    %174 = vector.extract_strided_slice %172 {offsets = [32, 0], sizes = [8, 8], strides = [1, 1]} : vector<96x8xf32> to vector<8x8xf32>
    %175 = vector.extract_strided_slice %172 {offsets = [64, 0], sizes = [8, 8], strides = [1, 1]} : vector<96x8xf32> to vector<8x8xf32>
    %176 = tpu.transpose %173, [1, 0] : vector<8x8xf32> -> vector<8x8xf32>
    %cst_69 = arith.constant dense<0.000000e+00> : vector<8x8xf32>
    %177 = tpu.matmul %176, %174, %cst_69 {dimension_numbers = #tpu.dot_dimension_numbers<[1], [0], [0], [1], [0, 0, 1, 1], [], []>} : vector<8x8xf32>, vector<8x8xf32>, vector<8x8xf32> -> vector<8x8xf32>
    %178 = arith.addf %177, %0 : vector<8x8xf32>
    %cst_70 = arith.constant dense<0xFF800000> : vector<8xf32>
    %179 = vector.multi_reduction <maximumf>, %178, %cst_70 [1] : vector<8x8xf32> to vector<8xf32>
    %180 = vector.shape_cast %179 : vector<8xf32> to vector<8x1xf32>
    %181 = vector.broadcast %180 : vector<8x1xf32> to vector<8x8xf32>
    %182 = arith.subf %178, %181 : vector<8x8xf32>
    %183 = math.exp %182 : vector<8x8xf32>
    %cst_71 = arith.constant dense<0.000000e+00> : vector<8xf32>
    %184 = vector.multi_reduction <add>, %183, %cst_71 [1] : vector<8x8xf32> to vector<8xf32>
    %185 = vector.shape_cast %184 : vector<8xf32> to vector<8x1xf32>
    %186 = tpu.reciprocal %185 : vector<8x1xf32> -> vector<8x1xf32>
    %187 = vector.broadcast %186 : vector<8x1xf32> to vector<8x8xf32>
    %188 = arith.mulf %183, %187 : vector<8x8xf32>
    %189 = tpu.transpose %188, [1, 0] : vector<8x8xf32> -> vector<8x8xf32>
    %cst_72 = arith.constant dense<0.000000e+00> : vector<8x8xf32>
    %190 = tpu.matmul %175, %189, %cst_72 {dimension_numbers = #tpu.dot_dimension_numbers<[1], [0], [0], [1], [0, 0, 1, 1], [], []>} : vector<8x8xf32>, vector<8x8xf32>, vector<8x8xf32> -> vector<8x8xf32>
    %191 = vector.extract_strided_slice %172 {offsets = [8, 0], sizes = [8, 8], strides = [1, 1]} : vector<96x8xf32> to vector<8x8xf32>
    %192 = vector.extract_strided_slice %172 {offsets = [40, 0], sizes = [8, 8], strides = [1, 1]} : vector<96x8xf32> to vector<8x8xf32>
    %193 = vector.extract_strided_slice %172 {offsets = [72, 0], sizes = [8, 8], strides = [1, 1]} : vector<96x8xf32> to vector<8x8xf32>
    %194 = tpu.transpose %191, [1, 0] : vector<8x8xf32> -> vector<8x8xf32>
    %cst_73 = arith.constant dense<0.000000e+00> : vector<8x8xf32>
    %195 = tpu.matmul %194, %192, %cst_73 {dimension_numbers = #tpu.dot_dimension_numbers<[1], [0], [0], [1], [0, 0, 1, 1], [], []>} : vector<8x8xf32>, vector<8x8xf32>, vector<8x8xf32> -> vector<8x8xf32>
    %196 = arith.addf %195, %0 : vector<8x8xf32>
    %cst_74 = arith.constant dense<0xFF800000> : vector<8xf32>
    %197 = vector.multi_reduction <maximumf>, %196, %cst_74 [1] : vector<8x8xf32> to vector<8xf32>
    %198 = vector.shape_cast %197 : vector<8xf32> to vector<8x1xf32>
    %199 = vector.broadcast %198 : vector<8x1xf32> to vector<8x8xf32>
    %200 = arith.subf %196, %199 : vector<8x8xf32>
    %201 = math.exp %200 : vector<8x8xf32>
    %cst_75 = arith.constant dense<0.000000e+00> : vector<8xf32>
    %202 = vector.multi_reduction <add>, %201, %cst_75 [1] : vector<8x8xf32> to vector<8xf32>
    %203 = vector.shape_cast %202 : vector<8xf32> to vector<8x1xf32>
    %204 = tpu.reciprocal %203 : vector<8x1xf32> -> vector<8x1xf32>
    %205 = vector.broadcast %204 : vector<8x1xf32> to vector<8x8xf32>
    %206 = arith.mulf %201, %205 : vector<8x8xf32>
    %207 = tpu.transpose %206, [1, 0] : vector<8x8xf32> -> vector<8x8xf32>
    %cst_76 = arith.constant dense<0.000000e+00> : vector<8x8xf32>
    %208 = tpu.matmul %193, %207, %cst_76 {dimension_numbers = #tpu.dot_dimension_numbers<[1], [0], [0], [1], [0, 0, 1, 1], [], []>} : vector<8x8xf32>, vector<8x8xf32>, vector<8x8xf32> -> vector<8x8xf32>
    %209 = vector.extract_strided_slice %172 {offsets = [16, 0], sizes = [8, 8], strides = [1, 1]} : vector<96x8xf32> to vector<8x8xf32>
    %210 = vector.extract_strided_slice %172 {offsets = [48, 0], sizes = [8, 8], strides = [1, 1]} : vector<96x8xf32> to vector<8x8xf32>
    %211 = vector.extract_strided_slice %172 {offsets = [80, 0], sizes = [8, 8], strides = [1, 1]} : vector<96x8xf32> to vector<8x8xf32>
    %212 = tpu.transpose %209, [1, 0] : vector<8x8xf32> -> vector<8x8xf32>
    %cst_77 = arith.constant dense<0.000000e+00> : vector<8x8xf32>
    %213 = tpu.matmul %212, %210, %cst_77 {dimension_numbers = #tpu.dot_dimension_numbers<[1], [0], [0], [1], [0, 0, 1, 1], [], []>} : vector<8x8xf32>, vector<8x8xf32>, vector<8x8xf32> -> vector<8x8xf32>
    %214 = arith.addf %213, %0 : vector<8x8xf32>
    %cst_78 = arith.constant dense<0xFF800000> : vector<8xf32>
    %215 = vector.multi_reduction <maximumf>, %214, %cst_78 [1] : vector<8x8xf32> to vector<8xf32>
    %216 = vector.shape_cast %215 : vector<8xf32> to vector<8x1xf32>
    %217 = vector.broadcast %216 : vector<8x1xf32> to vector<8x8xf32>
    %218 = arith.subf %214, %217 : vector<8x8xf32>
    %219 = math.exp %218 : vector<8x8xf32>
    %cst_79 = arith.constant dense<0.000000e+00> : vector<8xf32>
    %220 = vector.multi_reduction <add>, %219, %cst_79 [1] : vector<8x8xf32> to vector<8xf32>
    %221 = vector.shape_cast %220 : vector<8xf32> to vector<8x1xf32>
    %222 = tpu.reciprocal %221 : vector<8x1xf32> -> vector<8x1xf32>
    %223 = vector.broadcast %222 : vector<8x1xf32> to vector<8x8xf32>
    %224 = arith.mulf %219, %223 : vector<8x8xf32>
    %225 = tpu.transpose %224, [1, 0] : vector<8x8xf32> -> vector<8x8xf32>
    %cst_80 = arith.constant dense<0.000000e+00> : vector<8x8xf32>
    %226 = tpu.matmul %211, %225, %cst_80 {dimension_numbers = #tpu.dot_dimension_numbers<[1], [0], [0], [1], [0, 0, 1, 1], [], []>} : vector<8x8xf32>, vector<8x8xf32>, vector<8x8xf32> -> vector<8x8xf32>
    %227 = vector.extract_strided_slice %172 {offsets = [24, 0], sizes = [8, 8], strides = [1, 1]} : vector<96x8xf32> to vector<8x8xf32>
    %228 = vector.extract_strided_slice %172 {offsets = [56, 0], sizes = [8, 8], strides = [1, 1]} : vector<96x8xf32> to vector<8x8xf32>
    %229 = vector.extract_strided_slice %172 {offsets = [88, 0], sizes = [8, 8], strides = [1, 1]} : vector<96x8xf32> to vector<8x8xf32>
    %230 = tpu.transpose %227, [1, 0] : vector<8x8xf32> -> vector<8x8xf32>
    %cst_81 = arith.constant dense<0.000000e+00> : vector<8x8xf32>
    %231 = tpu.matmul %230, %228, %cst_81 {dimension_numbers = #tpu.dot_dimension_numbers<[1], [0], [0], [1], [0, 0, 1, 1], [], []>} : vector<8x8xf32>, vector<8x8xf32>, vector<8x8xf32> -> vector<8x8xf32>
    %232 = arith.addf %231, %0 : vector<8x8xf32>
    %cst_82 = arith.constant dense<0xFF800000> : vector<8xf32>
    %233 = vector.multi_reduction <maximumf>, %232, %cst_82 [1] : vector<8x8xf32> to vector<8xf32>
    %234 = vector.shape_cast %233 : vector<8xf32> to vector<8x1xf32>
    %235 = vector.broadcast %234 : vector<8x1xf32> to vector<8x8xf32>
    %236 = arith.subf %232, %235 : vector<8x8xf32>
    %237 = math.exp %236 : vector<8x8xf32>
    %cst_83 = arith.constant dense<0.000000e+00> : vector<8xf32>
    %238 = vector.multi_reduction <add>, %237, %cst_83 [1] : vector<8x8xf32> to vector<8xf32>
    %239 = vector.shape_cast %238 : vector<8xf32> to vector<8x1xf32>
    %240 = tpu.reciprocal %239 : vector<8x1xf32> -> vector<8x1xf32>
    %241 = vector.broadcast %240 : vector<8x1xf32> to vector<8x8xf32>
    %242 = arith.mulf %237, %241 : vector<8x8xf32>
    %243 = tpu.transpose %242, [1, 0] : vector<8x8xf32> -> vector<8x8xf32>
    %cst_84 = arith.constant dense<0.000000e+00> : vector<8x8xf32>
    %244 = tpu.matmul %229, %243, %cst_84 {dimension_numbers = #tpu.dot_dimension_numbers<[1], [0], [0], [1], [0, 0, 1, 1], [], []>} : vector<8x8xf32>, vector<8x8xf32>, vector<8x8xf32> -> vector<8x8xf32>
    %245 = tpu.concatenate %190, %208, %226, %244 in 0 : vector<8x8xf32>, vector<8x8xf32>, vector<8x8xf32>, vector<8x8xf32> -> vector<32x8xf32>
    %c0_85 = arith.constant 0 : index
    %c0_86 = arith.constant 0 : index
    %246 = vector.load %arg17[%c0_85, %c0_86] : memref<32x32xf32, #tpu.memory_space<vmem>>, vector<32x32xf32>
    %cst_87 = arith.constant dense<0.000000e+00> : vector<32x8xf32>
    %247 = tpu.matmul %246, %167, %cst_87 {dimension_numbers = #tpu.dot_dimension_numbers<[1], [0], [0], [1], [0, 0, 1, 1], [], []>} : vector<32x32xf32>, vector<32x8xf32>, vector<32x8xf32> -> vector<32x8xf32>
    %c0_88 = arith.constant 0 : index
    %c0_89 = arith.constant 0 : index
    %248 = vector.load %arg18[%c0_88, %c0_89] : memref<32x32xf32, #tpu.memory_space<vmem>>, vector<32x32xf32>
    %cst_90 = arith.constant dense<0.000000e+00> : vector<32x8xf32>
    %249 = tpu.matmul %248, %245, %cst_90 {dimension_numbers = #tpu.dot_dimension_numbers<[1], [0], [0], [1], [0, 0, 1, 1], [], []>} : vector<32x32xf32>, vector<32x8xf32>, vector<32x8xf32> -> vector<32x8xf32>
    %250 = arith.addf %247, %249 : vector<32x8xf32>
    %c0_91 = arith.constant 0 : index
    %c0_92 = arith.constant 0 : index
    %251 = vector.load %arg19[%c0_91, %c0_92] : memref<32x1xf32, #tpu.memory_space<vmem>>, vector<32x1xf32>
    %252 = vector.broadcast %251 : vector<32x1xf32> to vector<32x8xf32>
    %253 = arith.addf %250, %252 : vector<32x8xf32>
    %c0_93 = arith.constant 0 : index
    %c0_94 = arith.constant 0 : index
    %254 = vector.load %arg20[%c0_93, %c0_94] : memref<32x1xf32, #tpu.memory_space<vmem>>, vector<32x1xf32>
    %c0_95 = arith.constant 0 : index
    %c0_96 = arith.constant 0 : index
    %255 = vector.load %arg21[%c0_95, %c0_96] : memref<32x1xf32, #tpu.memory_space<vmem>>, vector<32x1xf32>
    %cst_97 = arith.constant dense<0.000000e+00> : vector<8xf32>
    %256 = vector.multi_reduction <add>, %253, %cst_97 [0] : vector<32x8xf32> to vector<8xf32>
    %257 = vector.shape_cast %256 : vector<8xf32> to vector<1x8xf32>
    %cst_98 = arith.constant 3.200000e+01 : f32
    %258 = vector.broadcast %cst_98 : f32 to vector<1x8xf32>
    %259 = arith.divf %257, %258 : vector<1x8xf32>
    %260 = vector.broadcast %259 : vector<1x8xf32> to vector<32x8xf32>
    %261 = arith.subf %253, %260 : vector<32x8xf32>
    %262 = arith.mulf %261, %261 : vector<32x8xf32>
    %cst_99 = arith.constant dense<0.000000e+00> : vector<8xf32>
    %263 = vector.multi_reduction <add>, %262, %cst_99 [0] : vector<32x8xf32> to vector<8xf32>
    %264 = vector.shape_cast %263 : vector<8xf32> to vector<1x8xf32>
    %cst_100 = arith.constant 3.200000e+01 : f32
    %265 = vector.broadcast %cst_100 : f32 to vector<1x8xf32>
    %266 = arith.divf %264, %265 : vector<1x8xf32>
    %267 = vector.broadcast %259 : vector<1x8xf32> to vector<32x8xf32>
    %268 = arith.subf %253, %267 : vector<32x8xf32>
    %cst_101 = arith.constant 9.99999974E-6 : f32
    %269 = vector.broadcast %cst_101 : f32 to vector<1x8xf32>
    %270 = arith.addf %266, %269 : vector<1x8xf32>
    %271 = math.rsqrt %270 : vector<1x8xf32>
    %272 = vector.broadcast %271 : vector<1x8xf32> to vector<32x8xf32>
    %273 = arith.mulf %268, %272 : vector<32x8xf32>
    %274 = vector.broadcast %254 : vector<32x1xf32> to vector<32x8xf32>
    %275 = arith.mulf %273, %274 : vector<32x8xf32>
    %276 = vector.broadcast %255 : vector<32x1xf32> to vector<32x8xf32>
    %277 = arith.addf %275, %276 : vector<32x8xf32>
    %cst_102 = arith.constant 0.000000e+00 : f32
    %278 = vector.broadcast %cst_102 : f32 to vector<32x8xf32>
    %279 = arith.maximumf %277, %278 : vector<32x8xf32>
    %280 = arith.addf %143, %279 : vector<32x8xf32>
    %c0_103 = arith.constant 0 : index
    %c0_104 = arith.constant 0 : index
    %281 = vector.load %arg22[%c0_103, %c0_104] : memref<64x32xf32, #tpu.memory_space<vmem>>, vector<64x32xf32>
    %cst_105 = arith.constant dense<0.000000e+00> : vector<64x8xf32>
    %282 = tpu.matmul %281, %280, %cst_105 {dimension_numbers = #tpu.dot_dimension_numbers<[1], [0], [0], [1], [0, 0, 1, 1], [], []>} : vector<64x32xf32>, vector<32x8xf32>, vector<64x8xf32> -> vector<64x8xf32>
    %c0_106 = arith.constant 0 : index
    %c0_107 = arith.constant 0 : index
    %283 = vector.load %arg23[%c0_106, %c0_107] : memref<64x1xf32, #tpu.memory_space<vmem>>, vector<64x1xf32>
    %284 = vector.broadcast %283 : vector<64x1xf32> to vector<64x8xf32>
    %285 = arith.addf %282, %284 : vector<64x8xf32>
    %cst_108 = arith.constant 0.000000e+00 : f32
    %286 = vector.broadcast %cst_108 : f32 to vector<64x8xf32>
    %287 = arith.maximumf %285, %286 : vector<64x8xf32>
    %c0_109 = arith.constant 0 : index
    %c0_110 = arith.constant 0 : index
    %288 = vector.load %arg24[%c0_109, %c0_110] : memref<128x64xf32, #tpu.memory_space<vmem>>, vector<128x64xf32>
    %cst_111 = arith.constant dense<0.000000e+00> : vector<128x8xf32>
    %289 = tpu.matmul %288, %287, %cst_111 {dimension_numbers = #tpu.dot_dimension_numbers<[1], [0], [0], [1], [0, 0, 1, 1], [], []>} : vector<128x64xf32>, vector<64x8xf32>, vector<128x8xf32> -> vector<128x8xf32>
    %c0_112 = arith.constant 0 : index
    %c0_113 = arith.constant 0 : index
    %290 = vector.load %arg25[%c0_112, %c0_113] : memref<128x1xf32, #tpu.memory_space<vmem>>, vector<128x1xf32>
    %291 = vector.broadcast %290 : vector<128x1xf32> to vector<128x8xf32>
    %292 = arith.addf %289, %291 : vector<128x8xf32>
    %293 = tpu.transpose %292, [1, 0] : vector<128x8xf32> -> vector<8x128xf32>
    %c0_114 = arith.constant 0 : index
    %c0_115 = arith.constant 0 : index
    %294 = vector.load %arg26[%c0_114, %c0_115] : memref<8x128xf32, #tpu.memory_space<vmem>>, vector<8x128xf32>
    tpu.vector_store %arg26[%c0_114, %c0_115], %293 {strides = array<i32>} : memref<8x128xf32, #tpu.memory_space<vmem>>, vector<8x128xf32>,
    return
  }
}

</mosaic_0001>

<llo_original>
// kernel: tpu_custom_call.1
$region0: #{tpu_custom_call.1}
  #allocation0 [shape = 'u32[]', space=smem, size = 0x4, offset = 0x4, fixed_abs, tag = 'smem constant byte address 0x4 - core index']
  #allocation1 [shape = 'u32[144,128]{1,0:T(1,128)}', space=vmem, size = 0x12000, scoped, tag = 'internal scratch']
  %s0 = inlined_call_operand.vmem [shape: f32[16,8], index: 0, kind: input, shape index: {}]
  %s1 = inlined_call_operand.vmem [shape: f32[8,8], index: 1, kind: input, shape index: {}]
  %s2 = inlined_call_operand.vmem [shape: f32[32,16], index: 2, kind: input, shape index: {}]
  %s3 = inlined_call_operand.vmem [shape: f32[32,1], index: 3, kind: input, shape index: {}]
  %s4 = inlined_call_operand.vmem [shape: f32[32,1], index: 4, kind: input, shape index: {}]
  %s5 = inlined_call_operand.vmem [shape: f32[32,1], index: 5, kind: input, shape index: {}]
  %s6 = inlined_call_operand.vmem [shape: f32[96,32], index: 6, kind: input, shape index: {}]
  %s7 = inlined_call_operand.vmem [shape: f32[96,1], index: 7, kind: input, shape index: {}]
  %s8 = inlined_call_operand.vmem [shape: f32[32,32], index: 8, kind: input, shape index: {}]
  %s9 = inlined_call_operand.vmem [shape: f32[32,32], index: 9, kind: input, shape index: {}]
  %s10 = inlined_call_operand.vmem [shape: f32[32,1], index: 10, kind: input, shape index: {}]
  %s11 = inlined_call_operand.vmem [shape: f32[32,1], index: 11, kind: input, shape index: {}]
  %s12 = inlined_call_operand.vmem [shape: f32[32,1], index: 12, kind: input, shape index: {}]
  %s13 = inlined_call_operand.vmem [shape: f32[32,1], index: 13, kind: input, shape index: {}]
  %s14 = inlined_call_operand.vmem [shape: f32[32,1], index: 14, kind: input, shape index: {}]
  %s15 = inlined_call_operand.vmem [shape: f32[96,32], index: 15, kind: input, shape index: {}]
  %s16 = inlined_call_operand.vmem [shape: f32[96,1], index: 16, kind: input, shape index: {}]
  %s17 = inlined_call_operand.vmem [shape: f32[32,32], index: 17, kind: input, shape index: {}]
  %s18 = inlined_call_operand.vmem [shape: f32[32,32], index: 18, kind: input, shape index: {}]
  %s19 = inlined_call_operand.vmem [shape: f32[32,1], index: 19, kind: input, shape index: {}]
  %s20 = inlined_call_operand.vmem [shape: f32[32,1], index: 20, kind: input, shape index: {}]
  %s21 = inlined_call_operand.vmem [shape: f32[32,1], index: 21, kind: input, shape index: {}]
  %s22 = inlined_call_operand.vmem [shape: f32[64,32], index: 22, kind: input, shape index: {}]
  %s23 = inlined_call_operand.vmem [shape: f32[64,1], index: 23, kind: input, shape index: {}]
  %s24 = inlined_call_operand.vmem [shape: f32[128,64], index: 24, kind: input, shape index: {}]
  %s25 = inlined_call_operand.vmem [shape: f32[128,1], index: 25, kind: input, shape index: {}]
  %s26 = inlined_call_operand.hbm [shape: f32[8,128], index: 26, kind: output, shape index: {}]
  %s27 = sld [smem:[#allocation0]]
  $region114: #{tpu_custom_call.1} parent=0
    _
  %s29 = ssub.s32 1, %s27
  %s30 = scalar_select 0, %s29, %s27
  $region1: #{tpu_custom_call.1} parent=0
    #allocation2 [shape = 'u8[4096]{0}', space=vmem, size = 0x1000, scoped, tag = 'output window, operand 0, single buffered']
    #allocation3 [shape = 's32[1]{0}', space=sflag, size = 0x4, scoped, tag = 'scoped memory for tpu_custom_call.1']
    %31 = vsyncpa [#allocation3], 0
    // Predicated region
    $region2: #{tpu_custom_call.1} parent=1 // pred_check
      _
    $region3: #{tpu_custom_call.1} parent=1 // pred_check_branch
      %33 = sbr.rel (0) target = $region5
    $region4: #{tpu_custom_call.1} parent=1 // pred_region
      _
    $region5: #{tpu_custom_call.1} parent=1 // pred_fallthru
      _
    // Predicated region
    $region6: #{tpu_custom_call.1} parent=1 // pred_check
      _
    $region7: #{tpu_custom_call.1} parent=1 // pred_check_branch
      %35 = sbr.rel (0) target = $region9
    $region8: #{tpu_custom_call.1} parent=1 // pred_region
      _
    $region9: #{tpu_custom_call.1} parent=1 // pred_fallthru
      _
    // Predicated region
    $region10: #{tpu_custom_call.1} parent=1 // pred_check
      _
    $region11: #{tpu_custom_call.1} parent=1 // pred_check_branch
      %37 = sbr.rel (0) target = $region13
    $region12: #{tpu_custom_call.1} parent=1 // pred_region
      _
    $region13: #{tpu_custom_call.1} parent=1 // pred_fallthru
      _
    // Predicated region
    $region14: #{tpu_custom_call.1} parent=1 // pred_check
      _
    $region15: #{tpu_custom_call.1} parent=1 // pred_check_branch
      %39 = sbr.rel (0) target = $region17
    $region16: #{tpu_custom_call.1} parent=1 // pred_region
      _
    $region17: #{tpu_custom_call.1} parent=1 // pred_fallthru
      _
    // Predicated region
    $region18: #{tpu_custom_call.1} parent=1 // pred_check
      _
    $region19: #{tpu_custom_call.1} parent=1 // pred_check_branch
      %41 = sbr.rel (0) target = $region21
    $region20: #{tpu_custom_call.1} parent=1 // pred_region
      _
    $region21: #{tpu_custom_call.1} parent=1 // pred_fallthru
      _
    // Predicated region
    $region22: #{tpu_custom_call.1} parent=1 // pred_check
      _
    $region23: #{tpu_custom_call.1} parent=1 // pred_check_branch
      %43 = sbr.rel (0) target = $region25
    $region24: #{tpu_custom_call.1} parent=1 // pred_region
      _
    $region25: #{tpu_custom_call.1} parent=1 // pred_fallthru
      _
    // Predicated region
    $region26: #{tpu_custom_call.1} parent=1 // pred_check
      _
    $region27: #{tpu_custom_call.1} parent=1 // pred_check_branch
      %45 = sbr.rel (0) target = $region29
    $region28: #{tpu_custom_call.1} parent=1 // pred_region
      _
    $region29: #{tpu_custom_call.1} parent=1 // pred_fallthru
      _
    // Predicated region
    $region30: #{tpu_custom_call.1} parent=1 // pred_check
      _
    $region31: #{tpu_custom_call.1} parent=1 // pred_check_branch
      %47 = sbr.rel (0) target = $region33
    $region32: #{tpu_custom_call.1} parent=1 // pred_region
      _
    $region33: #{tpu_custom_call.1} parent=1 // pred_fallthru
      _
    // Predicated region
    $region34: #{tpu_custom_call.1} parent=1 // pred_check
      _
    $region35: #{tpu_custom_call.1} parent=1 // pred_check_branch
      %49 = sbr.rel (0) target = $region37
    $region36: #{tpu_custom_call.1} parent=1 // pred_region
      _
    $region37: #{tpu_custom_call.1} parent=1 // pred_fallthru
      _
    // Predicated region
    $region38: #{tpu_custom_call.1} parent=1 // pred_check
      _
    $region39: #{tpu_custom_call.1} parent=1 // pred_check_branch
      %51 = sbr.rel (0) target = $region41
    $region40: #{tpu_custom_call.1} parent=1 // pred_region
      _
    $region41: #{tpu_custom_call.1} parent=1 // pred_fallthru
      _
    // Predicated region
    $region42: #{tpu_custom_call.1} parent=1 // pred_check
      _
    $region43: #{tpu_custom_call.1} parent=1 // pred_check_branch
      %53 = sbr.rel (0) target = $region45
    $region44: #{tpu_custom_call.1} parent=1 // pred_region
      _
    $region45: #{tpu_custom_call.1} parent=1 // pred_fallthru
      _
    // Predicated region
    $region46: #{tpu_custom_call.1} parent=1 // pred_check
      _
    $region47: #{tpu_custom_call.1} parent=1 // pred_check_branch
      %55 = sbr.rel (0) target = $region49
    $region48: #{tpu_custom_call.1} parent=1 // pred_region
      _
    $region49: #{tpu_custom_call.1} parent=1 // pred_fallthru
      _
    // Predicated region
    $region50: #{tpu_custom_call.1} parent=1 // pred_check
      _
    $region51: #{tpu_custom_call.1} parent=1 // pred_check_branch
      %57 = sbr.rel (0) target = $region53
    $region52: #{tpu_custom_call.1} parent=1 // pred_region
      _
    $region53: #{tpu_custom_call.1} parent=1 // pred_fallthru
      _
    // Predicated region
    $region54: #{tpu_custom_call.1} parent=1 // pred_check
      _
    $region55: #{tpu_custom_call.1} parent=1 // pred_check_branch
      %59 = sbr.rel (0) target = $region57
    $region56: #{tpu_custom_call.1} parent=1 // pred_region
      _
    $region57: #{tpu_custom_call.1} parent=1 // pred_fallthru
      _
    // Predicated region
    $region58: #{tpu_custom_call.1} parent=1 // pred_check
      _
    $region59: #{tpu_custom_call.1} parent=1 // pred_check_branch
      %61 = sbr.rel (0) target = $region61
    $region60: #{tpu_custom_call.1} parent=1 // pred_region
      _
    $region61: #{tpu_custom_call.1} parent=1 // pred_fallthru
      _
    // Predicated region
    $region62: #{tpu_custom_call.1} parent=1 // pred_check
      _
    $region63: #{tpu_custom_call.1} parent=1 // pred_check_branch
      %63 = sbr.rel (0) target = $region65
    $region64: #{tpu_custom_call.1} parent=1 // pred_region
      _
    $region65: #{tpu_custom_call.1} parent=1 // pred_fallthru
      _
    // Predicated region
    $region66: #{tpu_custom_call.1} parent=1 // pred_check
      _
    $region67: #{tpu_custom_call.1} parent=1 // pred_check_branch
      %65 = sbr.rel (0) target = $region69
    $region68: #{tpu_custom_call.1} parent=1 // pred_region
      _
    $region69: #{tpu_custom_call.1} parent=1 // pred_fallthru
      _
    // Predicated region
    $region70: #{tpu_custom_call.1} parent=1 // pred_check
      _
    $region71: #{tpu_custom_call.1} parent=1 // pred_check_branch
      %67 = sbr.rel (0) target = $region73
    $region72: #{tpu_custom_call.1} parent=1 // pred_region
      _
    $region73: #{tpu_custom_call.1} parent=1 // pred_fallthru
      _
    // Predicated region
    $region74: #{tpu_custom_call.1} parent=1 // pred_check
      _
    $region75: #{tpu_custom_call.1} parent=1 // pred_check_branch
      %69 = sbr.rel (0) target = $region77
    $region76: #{tpu_custom_call.1} parent=1 // pred_region
      _
    $region77: #{tpu_custom_call.1} parent=1 // pred_fallthru
      _
    // Predicated region
    $region78: #{tpu_custom_call.1} parent=1 // pred_check
      _
    $region79: #{tpu_custom_call.1} parent=1 // pred_check_branch
      %71 = sbr.rel (0) target = $region81
    $region80: #{tpu_custom_call.1} parent=1 // pred_region
      _
    $region81: #{tpu_custom_call.1} parent=1 // pred_fallthru
      _
    // Predicated region
    $region82: #{tpu_custom_call.1} parent=1 // pred_check
      _
    $region83: #{tpu_custom_call.1} parent=1 // pred_check_branch
      %73 = sbr.rel (0) target = $region85
    $region84: #{tpu_custom_call.1} parent=1 // pred_region
      _
    $region85: #{tpu_custom_call.1} parent=1 // pred_fallthru
      _
    // Predicated region
    $region86: #{tpu_custom_call.1} parent=1 // pred_check
      _
    $region87: #{tpu_custom_call.1} parent=1 // pred_check_branch
      %75 = sbr.rel (0) target = $region89
    $region88: #{tpu_custom_call.1} parent=1 // pred_region
      _
    $region89: #{tpu_custom_call.1} parent=1 // pred_fallthru
      _
    // Predicated region
    $region90: #{tpu_custom_call.1} parent=1 // pred_check
      _
    $region91: #{tpu_custom_call.1} parent=1 // pred_check_branch
      %77 = sbr.rel (0) target = $region93
    $region92: #{tpu_custom_call.1} parent=1 // pred_region
      _
    $region93: #{tpu_custom_call.1} parent=1 // pred_fallthru
      _
    // Predicated region
    $region94: #{tpu_custom_call.1} parent=1 // pred_check
      _
    $region95: #{tpu_custom_call.1} parent=1 // pred_check_branch
      %79 = sbr.rel (0) target = $region97
    $region96: #{tpu_custom_call.1} parent=1 // pred_region
      _
    $region97: #{tpu_custom_call.1} parent=1 // pred_fallthru
      _
    // Predicated region
    $region98: #{tpu_custom_call.1} parent=1 // pred_check
      _
    $region99: #{tpu_custom_call.1} parent=1 // pred_check_branch
      %81 = sbr.rel (0) target = $region101
    $region100: #{tpu_custom_call.1} parent=1 // pred_region
      _
    $region101: #{tpu_custom_call.1} parent=1 // pred_fallthru
      _
    // Predicated region
    $region102: #{tpu_custom_call.1} parent=1 // pred_check
      _
    $region103: #{tpu_custom_call.1} parent=1 // pred_check_branch
      %83 = sbr.rel (0) target = $region105
    $region104: #{tpu_custom_call.1} parent=1 // pred_region
      _
    $region105: #{tpu_custom_call.1} parent=1 // pred_fallthru
      _
    %v84 = vld [vmem:[%s1] sm:$0xff]
    %v85 = vld [vmem:[%s2] sm:$0xff]
    %v86 = vld [vmem:[%s2 + $0x8] sm:$0xff]
    %v87 = vld [vmem:[%s2 + $0x10] sm:$0xff]
    %v88 = vld [vmem:[%s2 + $0x18] sm:$0xff]
    %v89 = vld [vmem:[%s0] sm:$0xff]
    %v90 = vld [vmem:[%s0 + $0x8] sm:$0xff]
    %v91 = vld [vmem:[%s3] sm:$0xff]
    %v92 = vld [vmem:[%s3 + $0x8] sm:$0xff]
    %v93 = vld [vmem:[%s3 + $0x10] sm:$0xff]
    %v94 = vld [vmem:[%s3 + $0x18] sm:$0xff]
    %96 = vset.pattern.permute.xlu0 0
    %97 = vperm.xlu0 %96, %v91
    %v98 = vpop.permute.xlu0 %97
    %101 = vset.pattern.permute.xlu0 0
    %102 = vperm.xlu0 %101, %v92
    %v103 = vpop.permute.xlu0 %102
    %106 = vset.pattern.permute.xlu0 0
    %107 = vperm.xlu0 %106, %v93
    %v108 = vpop.permute.xlu0 %107
    %111 = vset.pattern.permute.xlu0 0
    %112 = vperm.xlu0 %111, %v94
    %v113 = vpop.permute.xlu0 %112
    %vm115 = vcmask 130048
    %v117 = vsel %vm115, %v85, 0
    %v120 = vsel %vm115, %v86, 0
    %v123 = vsel %vm115, %v87, 0
    %v126 = vsel %vm115, %v88, 0
    %128 = vmatprep.subr.mxu0 0.0
    %129 = vmatpush1.msra.mxu0 0.0
    %130 = vmatprep.subr.mxu0 0.0
    %131 = vmatpush1.msra.mxu0 0.0
    %132 = vmatprep.subr.mxu0 0.0
    %133 = vmatpush1.msra.mxu0 0.0
    %134 = vmatprep.subr.mxu0 0.0
    %135 = vmatpush1.msra.mxu0 0.0
    %136 = vmatprep.subr.mxu0 0.0
    %137 = vmatpush1.msra.mxu0 0.0
    %138 = vmatprep.subr.mxu0 0.0
    %139 = vmatpush1.msra.mxu0 0.0
    %140 = vmatprep.subr.mxu0 0.0
    %141 = vmatpush1.msra.mxu0 0.0
    %142 = vmatprep.subr.mxu0 0.0
    %143 = vmatpush1.msra.mxu0 0.0
    %144 = vmatprep.subr.mxu0 0.0
    %145 = vmatpush1.msra.mxu0 0.0
    %146 = vmatprep.subr.mxu0 0.0
    %147 = vmatpush1.msra.mxu0 0.0
    %148 = vmatprep.subr.mxu0 0.0
    %149 = vmatpush1.msra.mxu0 0.0
    %150 = vmatprep.subr.mxu0 0.0
    %151 = vmatpush1.msra.mxu0 0.0
    %152 = vmatprep.subr.mxu0 0.0
    %153 = vmatpush1.msra.mxu0 0.0
    %154 = vmatprep.subr.mxu0 0.0
    %155 = vmatpush1.msra.mxu0 0.0
    %156 = vmatprep.subr.mxu0 0.0
    %157 = vmatpush1.msra.mxu0 %v90
    %158 = vmatprep.subr.mxu0 0.0
    %159 = vmatpush1.msra.mxu0 %v89
    %160 = vmatprep.subr.mxu0 0.0
    %161 = vmatpush2.msra.mxu0 0.0
    %162 = vmatprep.subr.mxu0 0.0
    %163 = vmatpush2.msra.mxu0 0.0
    %164 = vmatprep.subr.mxu0 0.0
    %165 = vmatpush2.msra.mxu0 0.0
    %166 = vmatprep.subr.mxu0 0.0
    %167 = vmatpush2.msra.mxu0 0.0
    %168 = vmatprep.subr.mxu0 0.0
    %169 = vmatpush2.msra.mxu0 0.0
    %170 = vmatprep.subr.mxu0 0.0
    %171 = vmatpush2.msra.mxu0 0.0
    %172 = vmatprep.subr.mxu0 0.0
    %173 = vmatpush2.msra.mxu0 0.0
    %174 = vmatprep.subr.mxu0 0.0
    %175 = vmatpush2.msra.mxu0 0.0
    %176 = vmatprep.subr.mxu0 0.0
    %177 = vmatpush2.msra.mxu0 0.0
    %178 = vmatprep.subr.mxu0 0.0
    %179 = vmatpush2.msra.mxu0 0.0
    %180 = vmatprep.subr.mxu0 0.0
    %181 = vmatpush2.msra.mxu0 0.0
    %182 = vmatprep.subr.mxu0 0.0
    %183 = vmatpush2.msra.mxu0 0.0
    %184 = vmatprep.subr.mxu0 0.0
    %185 = vmatpush2.msra.mxu0 0.0
    %186 = vmatprep.subr.mxu0 0.0
    %187 = vmatpush2.msra.mxu0 0.0
    %188 = vmatprep.subr.mxu0 0.0
    %189 = vmatpush2.msra.mxu0 0.0
    %190 = vmatprep.subr.mxu0 0.0
    %191 = vmatpush2.msra.mxu0 0.0
    %192 = vmatprep.mubr.f32.mxu0 0.0
    %193 = vmatmul.mubr.f32.gmra.mxu0 %v117
    %v194 = vpop.f32.mrf.mxu0
    %v195 = vadd.f32 %v98, %v194
    %v196 = vpop.f32.mrf.mxu0
    %197 = vmatprep.mubr.f32.mxu0 0.0
    %198 = vmatmul.mubr.f32.gmra.mxu0 %v120
    %v199 = vpop.f32.mrf.mxu0
    %v200 = vadd.f32 %v103, %v199
    %v201 = vpop.f32.mrf.mxu0
    %202 = vmatprep.mubr.f32.mxu0 0.0
    %203 = vmatmul.mubr.f32.gmra.mxu0 %v123
    %v204 = vpop.f32.mrf.mxu0
    %v205 = vadd.f32 %v108, %v204
    %v206 = vpop.f32.mrf.mxu0
    %207 = vmatprep.mubr.f32.mxu0 0.0
    %208 = vmatmul.mubr.f32.gmra.mxu0 %v126
    %v209 = vpop.f32.mrf.mxu0
    %v210 = vadd.f32 %v113, %v209
    %v211 = vpop.f32.mrf.mxu0
    %212 = vdwg.mxu0
    %v213 = vld [vmem:[%s4] sm:$0xff]
    %v214 = vld [vmem:[%s4 + $0x8] sm:$0xff]
    %v215 = vld [vmem:[%s4 + $0x10] sm:$0xff]
    %v216 = vld [vmem:[%s4 + $0x18] sm:$0xff]
    %v217 = vld [vmem:[%s5] sm:$0xff]
    %v218 = vld [vmem:[%s5 + $0x8] sm:$0xff]
    %v219 = vld [vmem:[%s5 + $0x10] sm:$0xff]
    %v220 = vld [vmem:[%s5 + $0x18] sm:$0xff]
    %vm221 = vcmask 64512
    %v222 = vsel %vm221, %v195, 0.0
    %v223 = vsel %vm221, %v200, 0.0
    %v224 = vadd.f32 %v222, %v223
    %v225 = vsel %vm221, %v205, 0.0
    %v226 = vadd.f32 %v224, %v225
    %v227 = vsel %vm221, %v210, 0.0
    %v228 = vadd.f32 %v226, %v227
    %v229 = vrot.slane %v228, 4
    %v230 = vadd.f32 %v228, %v229
    %v231 = vrot.slane %v230, 2
    %v232 = vadd.f32 %v230, %v231
    %v233 = vrot.slane %v232, 1
    %v234 = vadd.f32 %v232, %v233
    %v235 = vrcp.pop 32.0
    %v236 = vmul.f32 %v234, %v235
    %v237 = vsub.f32 %v195, %v236
    %v238 = vsub.f32 %v200, %v236
    %v239 = vsub.f32 %v205, %v236
    %v240 = vsub.f32 %v210, %v236
    %v241 = vmul.f32 %v237, %v237
    %v242 = vmul.f32 %v238, %v238
    %v243 = vmul.f32 %v239, %v239
    %v244 = vmul.f32 %v240, %v240
    %v245 = vsel %vm221, %v241, 0.0
    %v246 = vsel %vm221, %v242, 0.0
    %v247 = vadd.f32 %v245, %v246
    %v248 = vsel %vm221, %v243, 0.0
    %v249 = vadd.f32 %v247, %v248
    %v250 = vsel %vm221, %v244, 0.0
    %v251 = vadd.f32 %v249, %v250
    %v252 = vrot.slane %v251, 4
    %v253 = vadd.f32 %v251, %v252
    %v254 = vrot.slane %v253, 2
    %v255 = vadd.f32 %v253, %v254
    %v256 = vrot.slane %v255, 1
    %v257 = vadd.f32 %v255, %v256
    %v258 = vmul.f32 %v257, %v235
    %v259 = vadd.f32 %v258, 1e-05
    %v260 = vrsqrt.pop %v259
    %v261 = vmul.f32 %v237, %v260
    %v262 = vmul.f32 %v238, %v260
    %v263 = vmul.f32 %v239, %v260
    %v264 = vmul.f32 %v240, %v260
    %266 = vset.pattern.permute.xlu0 0
    %267 = vperm.xlu0 %266, %v213
    %v268 = vpop.permute.xlu0 %267
    %271 = vset.pattern.permute.xlu0 0
    %272 = vperm.xlu0 %271, %v214
    %v273 = vpop.permute.xlu0 %272
    %276 = vset.pattern.permute.xlu0 0
    %277 = vperm.xlu0 %276, %v215
    %v278 = vpop.permute.xlu0 %277
    %281 = vset.pattern.permute.xlu0 0
    %282 = vperm.xlu0 %281, %v216
    %v283 = vpop.permute.xlu0 %282
    %v285 = vmul.f32 %v261, %v268
    %v286 = vmul.f32 %v262, %v273
    %v287 = vmul.f32 %v263, %v278
    %v288 = vmul.f32 %v264, %v283
    %290 = vset.pattern.permute.xlu0 0
    %291 = vperm.xlu0 %290, %v217
    %v292 = vpop.permute.xlu0 %291
    %295 = vset.pattern.permute.xlu0 0
    %296 = vperm.xlu0 %295, %v218
    %v297 = vpop.permute.xlu0 %296
    %300 = vset.pattern.permute.xlu0 0
    %301 = vperm.xlu0 %300, %v219
    %v302 = vpop.permute.xlu0 %301
    %305 = vset.pattern.permute.xlu0 0
    %306 = vperm.xlu0 %305, %v220
    %v307 = vpop.permute.xlu0 %306
    %v309 = vadd.f32 %v285, %v292
    %v310 = vadd.f32 %v286, %v297
    %v311 = vadd.f32 %v287, %v302
    %v312 = vadd.f32 %v288, %v307
    %v313 = vld [vmem:[%s6] sm:$0xff]
    %v314 = vld [vmem:[%s6 + $0x8] sm:$0xff]
    %v315 = vld [vmem:[%s6 + $0x10] sm:$0xff]
    %v316 = vld [vmem:[%s6 + $0x18] sm:$0xff]
    %v317 = vld [vmem:[%s6 + $0x20] sm:$0xff]
    %v318 = vld [vmem:[%s6 + $0x28] sm:$0xff]
    %v319 = vld [vmem:[%s6 + $0x30] sm:$0xff]
    %v320 = vld [vmem:[%s6 + $0x38] sm:$0xff]
    %v321 = vld [vmem:[%s6 + $0x40] sm:$0xff]
    %v322 = vld [vmem:[%s6 + $0x48] sm:$0xff]
    %v323 = vld [vmem:[%s6 + $0x50] sm:$0xff]
    %v324 = vld [vmem:[%s6 + $0x58] sm:$0xff]
    %v325 = vld [vmem:[%s7] sm:$0xff]
    %v326 = vld [vmem:[%s7 + $0x8] sm:$0xff]
    %v327 = vld [vmem:[%s7 + $0x10] sm:$0xff]
    %v328 = vld [vmem:[%s7 + $0x18] sm:$0xff]
    %v329 = vld [vmem:[%s7 + $0x20] sm:$0xff]
    %v330 = vld [vmem:[%s7 + $0x28] sm:$0xff]
    %v331 = vld [vmem:[%s7 + $0x30] sm:$0xff]
    %v332 = vld [vmem:[%s7 + $0x38] sm:$0xff]
    %v333 = vld [vmem:[%s7 + $0x40] sm:$0xff]
    %v334 = vld [vmem:[%s7 + $0x48] sm:$0xff]
    %v335 = vld [vmem:[%s7 + $0x50] sm:$0xff]
    %v336 = vld [vmem:[%s7 + $0x58] sm:$0xff]
    %338 = vset.pattern.permute.xlu0 0
    %339 = vperm.xlu0 %338, %v325
    %v340 = vpop.permute.xlu0 %339
    %343 = vset.pattern.permute.xlu0 0
    %344 = vperm.xlu0 %343, %v326
    %v345 = vpop.permute.xlu0 %344
    %348 = vset.pattern.permute.xlu0 0
    %349 = vperm.xlu0 %348, %v327
    %v350 = vpop.permute.xlu0 %349
    %353 = vset.pattern.permute.xlu0 0
    %354 = vperm.xlu0 %353, %v328
    %v355 = vpop.permute.xlu0 %354
    %358 = vset.pattern.permute.xlu0 0
    %359 = vperm.xlu0 %358, %v329
    %v360 = vpop.permute.xlu0 %359
    %363 = vset.pattern.permute.xlu0 0
    %364 = vperm.xlu0 %363, %v330
    %v365 = vpop.permute.xlu0 %364
    %368 = vset.pattern.permute.xlu0 0
    %369 = vperm.xlu0 %368, %v331
    %v370 = vpop.permute.xlu0 %369
    %373 = vset.pattern.permute.xlu0 0
    %374 = vperm.xlu0 %373, %v332
    %v375 = vpop.permute.xlu0 %374
    %378 = vset.pattern.permute.xlu0 0
    %379 = vperm.xlu0 %378, %v333
    %v380 = vpop.permute.xlu0 %379
    %383 = vset.pattern.permute.xlu0 0
    %384 = vperm.xlu0 %383, %v334
    %v385 = vpop.permute.xlu0 %384
    %388 = vset.pattern.permute.xlu0 0
    %389 = vperm.xlu0 %388, %v335
    %v390 = vpop.permute.xlu0 %389
    %393 = vset.pattern.permute.xlu0 0
    %394 = vperm.xlu0 %393, %v336
    %v395 = vpop.permute.xlu0 %394
    %vm397 = vcmask 261120
    %v399 = vsel %vm397, %v313, 0
    %v402 = vsel %vm397, %v314, 0
    %v405 = vsel %vm397, %v315, 0
    %v408 = vsel %vm397, %v316, 0
    %v411 = vsel %vm397, %v317, 0
    %v414 = vsel %vm397, %v318, 0
    %v417 = vsel %vm397, %v319, 0
    %v420 = vsel %vm397, %v320, 0
    %v423 = vsel %vm397, %v321, 0
    %v426 = vsel %vm397, %v322, 0
    %v429 = vsel %vm397, %v323, 0
    %v432 = vsel %vm397, %v324, 0
    %434 = vmatprep.subr.mxu0 0.0
    %435 = vmatpush1.msra.mxu0 0.0
    %436 = vmatprep.subr.mxu0 0.0
    %437 = vmatpush1.msra.mxu0 0.0
    %438 = vmatprep.subr.mxu0 0.0
    %439 = vmatpush1.msra.mxu0 0.0
    %440 = vmatprep.subr.mxu0 0.0
    %441 = vmatpush1.msra.mxu0 0.0
    %442 = vmatprep.subr.mxu0 0.0
    %443 = vmatpush1.msra.mxu0 0.0
    %444 = vmatprep.subr.mxu0 0.0
    %445 = vmatpush1.msra.mxu0 0.0
    %446 = vmatprep.subr.mxu0 0.0
    %447 = vmatpush1.msra.mxu0 0.0
    %448 = vmatprep.subr.mxu0 0.0
    %449 = vmatpush1.msra.mxu0 0.0
    %450 = vmatprep.subr.mxu0 0.0
    %451 = vmatpush1.msra.mxu0 0.0
    %452 = vmatprep.subr.mxu0 0.0
    %453 = vmatpush1.msra.mxu0 0.0
    %454 = vmatprep.subr.mxu0 0.0
    %455 = vmatpush1.msra.mxu0 0.0
    %456 = vmatprep.subr.mxu0 0.0
    %457 = vmatpush1.msra.mxu0 0.0
    %458 = vmatprep.subr.mxu0 0.0
    %459 = vmatpush1.msra.mxu0 %v312
    %460 = vmatprep.subr.mxu0 0.0
    %461 = vmatpush1.msra.mxu0 %v311
    %462 = vmatprep.subr.mxu0 0.0
    %463 = vmatpush1.msra.mxu0 %v310
    %464 = vmatprep.subr.mxu0 0.0
    %465 = vmatpush1.msra.mxu0 %v309
    %466 = vmatprep.subr.mxu0 0.0
    %467 = vmatpush2.msra.mxu0 0.0
    %468 = vmatprep.subr.mxu0 0.0
    %469 = vmatpush2.msra.mxu0 0.0
    %470 = vmatprep.subr.mxu0 0.0
    %471 = vmatpush2.msra.mxu0 0.0
    %472 = vmatprep.subr.mxu0 0.0
    %473 = vmatpush2.msra.mxu0 0.0
    %474 = vmatprep.subr.mxu0 0.0
    %475 = vmatpush2.msra.mxu0 0.0
    %476 = vmatprep.subr.mxu0 0.0
    %477 = vmatpush2.msra.mxu0 0.0
    %478 = vmatprep.subr.mxu0 0.0
    %479 = vmatpush2.msra.mxu0 0.0
    %480 = vmatprep.subr.mxu0 0.0
    %481 = vmatpush2.msra.mxu0 0.0
    %482 = vmatprep.subr.mxu0 0.0
    %483 = vmatpush2.msra.mxu0 0.0
    %484 = vmatprep.subr.mxu0 0.0
    %485 = vmatpush2.msra.mxu0 0.0
    %486 = vmatprep.subr.mxu0 0.0
    %487 = vmatpush2.msra.mxu0 0.0
    %488 = vmatprep.subr.mxu0 0.0
    %489 = vmatpush2.msra.mxu0 0.0
    %490 = vmatprep.subr.mxu0 0.0
    %491 = vmatpush2.msra.mxu0 0.0
    %492 = vmatprep.subr.mxu0 0.0
    %493 = vmatpush2.msra.mxu0 0.0
    %494 = vmatprep.subr.mxu0 0.0
    %495 = vmatpush2.msra.mxu0 0.0
    %496 = vmatprep.subr.mxu0 0.0
    %497 = vmatpush2.msra.mxu0 0.0
    %498 = vmatprep.mubr.f32.mxu0 0.0
    %499 = vmatmul.mubr.f32.gmra.mxu0 %v399
    %v500 = vpop.f32.mrf.mxu0
    %v501 = vadd.f32 %v340, %v500
    %v502 = vpop.f32.mrf.mxu0
    %503 = vmatprep.mubr.f32.mxu0 0.0
    %504 = vmatmul.mubr.f32.gmra.mxu0 %v402
    %v505 = vpop.f32.mrf.mxu0
    %v506 = vadd.f32 %v345, %v505
    %v507 = vpop.f32.mrf.mxu0
    %508 = vmatprep.mubr.f32.mxu0 0.0
    %509 = vmatmul.mubr.f32.gmra.mxu0 %v405
    %v510 = vpop.f32.mrf.mxu0
    %v511 = vadd.f32 %v350, %v510
    %v512 = vpop.f32.mrf.mxu0
    %513 = vmatprep.mubr.f32.mxu0 0.0
    %514 = vmatmul.mubr.f32.gmra.mxu0 %v408
    %v515 = vpop.f32.mrf.mxu0
    %v516 = vadd.f32 %v355, %v515
    %v517 = vpop.f32.mrf.mxu0
    %518 = vmatprep.mubr.f32.mxu0 0.0
    %519 = vmatmul.mubr.f32.gmra.mxu0 %v411
    %v520 = vpop.f32.mrf.mxu0
    %v521 = vadd.f32 %v360, %v520
    %v522 = vpop.f32.mrf.mxu0
    %523 = vmatprep.mubr.f32.mxu0 0.0
    %524 = vmatmul.mubr.f32.gmra.mxu0 %v414
    %v525 = vpop.f32.mrf.mxu0
    %v526 = vadd.f32 %v365, %v525
    %v527 = vpop.f32.mrf.mxu0
    %528 = vmatprep.mubr.f32.mxu0 0.0
    %529 = vmatmul.mubr.f32.gmra.mxu0 %v417
    %v530 = vpop.f32.mrf.mxu0
    %v531 = vadd.f32 %v370, %v530
    %v532 = vpop.f32.mrf.mxu0
    %533 = vmatprep.mubr.f32.mxu0 0.0
    %534 = vmatmul.mubr.f32.gmra.mxu0 %v420
    %v535 = vpop.f32.mrf.mxu0
    %v536 = vadd.f32 %v375, %v535
    %v537 = vpop.f32.mrf.mxu0
    %538 = vmatprep.mubr.f32.mxu0 0.0
    %539 = vmatmul.mubr.f32.gmra.mxu0 %v423
    %v540 = vpop.f32.mrf.mxu0
    %v541 = vadd.f32 %v380, %v540
    %v542 = vpop.f32.mrf.mxu0
    %543 = vmatprep.mubr.f32.mxu0 0.0
    %544 = vmatmul.mubr.f32.gmra.mxu0 %v426
    %v545 = vpop.f32.mrf.mxu0
    %v546 = vadd.f32 %v385, %v545
    %v547 = vpop.f32.mrf.mxu0
    %548 = vmatprep.mubr.f32.mxu0 0.0
    %549 = vmatmul.mubr.f32.gmra.mxu0 %v429
    %v550 = vpop.f32.mrf.mxu0
    %v551 = vadd.f32 %v390, %v550
    %v552 = vpop.f32.mrf.mxu0
    %553 = vmatprep.mubr.f32.mxu0 0.0
    %554 = vmatmul.mubr.f32.gmra.mxu0 %v432
    %v555 = vpop.f32.mrf.mxu0
    %v556 = vadd.f32 %v395, %v555
    %v557 = vpop.f32.mrf.mxu0
    %558 = vdwg.mxu0
    %559 = vxpose.xlu0.b32.start [1/16] %v501, 128
    %560 = vxpose.xlu0.b32.cont [2/16] 0.0, 128
    %561 = vxpose.xlu0.b32.cont [3/16] 0.0, 128
    %562 = vxpose.xlu0.b32.cont [4/16] 0.0, 128
    %563 = vxpose.xlu0.b32.cont [5/16] 0.0, 128
    %564 = vxpose.xlu0.b32.cont [6/16] 0.0, 128
    %565 = vxpose.xlu0.b32.cont [7/16] 0.0, 128
    %566 = vxpose.xlu0.b32.cont [8/16] 0.0, 128
    %567 = vxpose.xlu0.b32.cont [9/16] 0.0, 128
    %568 = vxpose.xlu0.b32.cont [10/16] 0.0, 128
    %569 = vxpose.xlu0.b32.cont [11/16] 0.0, 128
    %570 = vxpose.xlu0.b32.cont [12/16] 0.0, 128
    %571 = vxpose.xlu0.b32.cont [13/16] 0.0, 128
    %572 = vxpose.xlu0.b32.cont [14/16] 0.0, 128
    %573 = vxpose.xlu0.b32.cont [15/16] 0.0, 128
    %574 = vxpose.xlu0.b32.end [16/16] 0.0, 128
    %v575 = vpop.trf.xlu0
    %v576 = vpop.trf.xlu0
    %v577 = vpop.trf.xlu0
    %v578 = vpop.trf.xlu0
    %v579 = vpop.trf.xlu0
    %v580 = vpop.trf.xlu0
    %v581 = vpop.trf.xlu0
    %v582 = vpop.trf.xlu0
    %v583 = vpop.trf.xlu0
    %v584 = vpop.trf.xlu0
    %v585 = vpop.trf.xlu0
    %v586 = vpop.trf.xlu0
    %v587 = vpop.trf.xlu0
    %v588 = vpop.trf.xlu0
    %v589 = vpop.trf.xlu0
    %v590 = vpop.trf.xlu0
    %v592 = vsel %vm221, %v575, 0
    %594 = vmatprep.subr.mxu0 0.0
    %595 = vmatpush1.msra.mxu0 0.0
    %596 = vmatprep.subr.mxu0 0.0
    %597 = vmatpush1.msra.mxu0 0.0
    %598 = vmatprep.subr.mxu0 0.0
    %599 = vmatpush1.msra.mxu0 0.0
    %600 = vmatprep.subr.mxu0 0.0
    %601 = vmatpush1.msra.mxu0 0.0
    %602 = vmatprep.subr.mxu0 0.0
    %603 = vmatpush1.msra.mxu0 0.0
    %604 = vmatprep.subr.mxu0 0.0
    %605 = vmatpush1.msra.mxu0 0.0
    %606 = vmatprep.subr.mxu0 0.0
    %607 = vmatpush1.msra.mxu0 0.0
    %608 = vmatprep.subr.mxu0 0.0
    %609 = vmatpush1.msra.mxu0 0.0
    %610 = vmatprep.subr.mxu0 0.0
    %611 = vmatpush1.msra.mxu0 0.0
    %612 = vmatprep.subr.mxu0 0.0
    %613 = vmatpush1.msra.mxu0 0.0
    %614 = vmatprep.subr.mxu0 0.0
    %615 = vmatpush1.msra.mxu0 0.0
    %616 = vmatprep.subr.mxu0 0.0
    %617 = vmatpush1.msra.mxu0 0.0
    %618 = vmatprep.subr.mxu0 0.0
    %619 = vmatpush1.msra.mxu0 0.0
    %620 = vmatprep.subr.mxu0 0.0
    %621 = vmatpush1.msra.mxu0 0.0
    %622 = vmatprep.subr.mxu0 0.0
    %623 = vmatpush1.msra.mxu0 0.0
    %624 = vmatprep.subr.mxu0 0.0
    %625 = vmatpush1.msra.mxu0 %v521
    %626 = vmatprep.subr.mxu0 0.0
    %627 = vmatpush2.msra.mxu0 0.0
    %628 = vmatprep.subr.mxu0 0.0
    %629 = vmatpush2.msra.mxu0 0.0
    %630 = vmatprep.subr.mxu0 0.0
    %631 = vmatpush2.msra.mxu0 0.0
    %632 = vmatprep.subr.mxu0 0.0
    %633 = vmatpush2.msra.mxu0 0.0
    %634 = vmatprep.subr.mxu0 0.0
    %635 = vmatpush2.msra.mxu0 0.0
    %636 = vmatprep.subr.mxu0 0.0
    %637 = vmatpush2.msra.mxu0 0.0
    %638 = vmatprep.subr.mxu0 0.0
    %639 = vmatpush2.msra.mxu0 0.0
    %640 = vmatprep.subr.mxu0 0.0
    %641 = vmatpush2.msra.mxu0 0.0
    %642 = vmatprep.subr.mxu0 0.0
    %643 = vmatpush2.msra.mxu0 0.0
    %644 = vmatprep.subr.mxu0 0.0
    %645 = vmatpush2.msra.mxu0 0.0
    %646 = vmatprep.subr.mxu0 0.0
    %647 = vmatpush2.msra.mxu0 0.0
    %648 = vmatprep.subr.mxu0 0.0
    %649 = vmatpush2.msra.mxu0 0.0
    %650 = vmatprep.subr.mxu0 0.0
    %651 = vmatpush2.msra.mxu0 0.0
    %652 = vmatprep.subr.mxu0 0.0
    %653 = vmatpush2.msra.mxu0 0.0
    %654 = vmatprep.subr.mxu0 0.0
    %655 = vmatpush2.msra.mxu0 0.0
    %656 = vmatprep.subr.mxu0 0.0
    %657 = vmatpush2.msra.mxu0 0.0
    %658 = vmatprep.mubr.f32.mxu0 0.0
    %659 = vmatmul.mubr.f32.gmra.mxu0 %v592
    %v660 = vpop.f32.mrf.mxu0
    %v661 = vadd.f32 %v84, %v660
    %v662 = vpop.f32.mrf.mxu0
    %663 = vdwg.mxu0
    %v664 = vsel %vm221, %v661, -inf
    %665 = vmax.xlane.f32.xlu0 %v664
    %v666 = vpop.xlane.xlu0 %665
    %v667 = vsub.f32 %v661, %v666
    %v668 = vmul.f32 %v667, 1.442695
    %v669 = vpow.pop %v668
    %v670 = vsel %vm221, %v669, 0.0
    %671 = vadd.xlane.f32.xlu0 %v670
    %v672 = vpop.xlane.xlu0 %671
    %v673 = vrcp.pop %v672
    %v674 = vmul.f32 %v669, %v673
    %v676 = vsel %vm221, %v541, 0
    %v679 = vsel %vm221, %v674, 0
    %681 = vmatprep.subr.mxu0 0.0
    %682 = vmatpush1.xpose.msra.mxu0 0.0
    %683 = vmatprep.subr.mxu0 0.0
    %684 = vmatpush1.xpose.msra.mxu0 0.0
    %685 = vmatprep.subr.mxu0 0.0
    %686 = vmatpush1.xpose.msra.mxu0 0.0
    %687 = vmatprep.subr.mxu0 0.0
    %688 = vmatpush1.xpose.msra.mxu0 0.0
    %689 = vmatprep.subr.mxu0 0.0
    %690 = vmatpush1.xpose.msra.mxu0 0.0
    %691 = vmatprep.subr.mxu0 0.0
    %692 = vmatpush1.xpose.msra.mxu0 0.0
    %693 = vmatprep.subr.mxu0 0.0
    %694 = vmatpush1.xpose.msra.mxu0 0.0
    %695 = vmatprep.subr.mxu0 0.0
    %696 = vmatpush1.xpose.msra.mxu0 0.0
    %697 = vmatprep.subr.mxu0 0.0
    %698 = vmatpush1.xpose.msra.mxu0 0.0
    %699 = vmatprep.subr.mxu0 0.0
    %700 = vmatpush1.xpose.msra.mxu0 0.0
    %701 = vmatprep.subr.mxu0 0.0
    %702 = vmatpush1.xpose.msra.mxu0 0.0
    %703 = vmatprep.subr.mxu0 0.0
    %704 = vmatpush1.xpose.msra.mxu0 0.0
    %705 = vmatprep.subr.mxu0 0.0
    %706 = vmatpush1.xpose.msra.mxu0 0.0
    %707 = vmatprep.subr.mxu0 0.0
    %708 = vmatpush1.xpose.msra.mxu0 0.0
    %709 = vmatprep.subr.mxu0 0.0
    %710 = vmatpush1.xpose.msra.mxu0 0.0
    %711 = vmatprep.subr.mxu0 0.0
    %712 = vmatpush1.xpose.msra.mxu0 %v679
    %713 = vmatprep.subr.mxu0 0.0
    %714 = vmatpush2.xpose.msra.mxu0 0.0
    %715 = vmatprep.subr.mxu0 0.0
    %716 = vmatpush2.xpose.msra.mxu0 0.0
    %717 = vmatprep.subr.mxu0 0.0
    %718 = vmatpush2.xpose.msra.mxu0 0.0
    %719 = vmatprep.subr.mxu0 0.0
    %720 = vmatpush2.xpose.msra.mxu0 0.0
    %721 = vmatprep.subr.mxu0 0.0
    %722 = vmatpush2.xpose.msra.mxu0 0.0
    %723 = vmatprep.subr.mxu0 0.0
    %724 = vmatpush2.xpose.msra.mxu0 0.0
    %725 = vmatprep.subr.mxu0 0.0
    %726 = vmatpush2.xpose.msra.mxu0 0.0
    %727 = vmatprep.subr.mxu0 0.0
    %728 = vmatpush2.xpose.msra.mxu0 0.0
    %729 = vmatprep.subr.mxu0 0.0
    %730 = vmatpush2.xpose.msra.mxu0 0.0
    %731 = vmatprep.subr.mxu0 0.0
    %732 = vmatpush2.xpose.msra.mxu0 0.0
    %733 = vmatprep.subr.mxu0 0.0
    %734 = vmatpush2.xpose.msra.mxu0 0.0
    %735 = vmatprep.subr.mxu0 0.0
    %736 = vmatpush2.xpose.msra.mxu0 0.0
    %737 = vmatprep.subr.mxu0 0.0
    %738 = vmatpush2.xpose.msra.mxu0 0.0
    %739 = vmatprep.subr.mxu0 0.0
    %740 = vmatpush2.xpose.msra.mxu0 0.0
    %741 = vmatprep.subr.mxu0 0.0
    %742 = vmatpush2.xpose.msra.mxu0 0.0
    %743 = vmatprep.subr.mxu0 0.0
    %744 = vmatpush2.xpose.msra.mxu0 0.0
    %745 = vmatprep.mubr.f32.mxu0 0.0
    %746 = vmatmul.mubr.f32.gmra.mxu0 %v676
    %v747 = vpop.f32.mrf.mxu0
    %v748 = vadd.f32 0.0, %v747
    %v749 = vpop.f32.mrf.mxu0
    %750 = vdwg.mxu0
    %751 = vxpose.xlu0.b32.start [1/16] %v506, 128
    %752 = vxpose.xlu0.b32.cont [2/16] 0.0, 128
    %753 = vxpose.xlu0.b32.cont [3/16] 0.0, 128
    %754 = vxpose.xlu0.b32.cont [4/16] 0.0, 128
    %755 = vxpose.xlu0.b32.cont [5/16] 0.0, 128
    %756 = vxpose.xlu0.b32.cont [6/16] 0.0, 128
    %757 = vxpose.xlu0.b32.cont [7/16] 0.0, 128
    %758 = vxpose.xlu0.b32.cont [8/16] 0.0, 128
    %759 = vxpose.xlu0.b32.cont [9/16] 0.0, 128
    %760 = vxpose.xlu0.b32.cont [10/16] 0.0, 128
    %761 = vxpose.xlu0.b32.cont [11/16] 0.0, 128
    %762 = vxpose.xlu0.b32.cont [12/16] 0.0, 128
    %763 = vxpose.xlu0.b32.cont [13/16] 0.0, 128
    %764 = vxpose.xlu0.b32.cont [14/16] 0.0, 128
    %765 = vxpose.xlu0.b32.cont [15/16] 0.0, 128
    %766 = vxpose.xlu0.b32.end [16/16] 0.0, 128
    %v767 = vpop.trf.xlu0
    %v768 = vpop.trf.xlu0
    %v769 = vpop.trf.xlu0
    %v770 = vpop.trf.xlu0
    %v771 = vpop.trf.xlu0
    %v772 = vpop.trf.xlu0
    %v773 = vpop.trf.xlu0
    %v774 = vpop.trf.xlu0
    %v775 = vpop.trf.xlu0
    %v776 = vpop.trf.xlu0
    %v777 = vpop.trf.xlu0
    %v778 = vpop.trf.xlu0
    %v779 = vpop.trf.xlu0
    %v780 = vpop.trf.xlu0
    %v781 = vpop.trf.xlu0
    %v782 = vpop.trf.xlu0
    %v784 = vsel %vm221, %v767, 0
    %786 = vmatprep.subr.mxu0 0.0
    %787 = vmatpush1.msra.mxu0 0.0
    %788 = vmatprep.subr.mxu0 0.0
    %789 = vmatpush1.msra.mxu0 0.0
    %790 = vmatprep.subr.mxu0 0.0
    %791 = vmatpush1.msra.mxu0 0.0
    %792 = vmatprep.subr.mxu0 0.0
    %793 = vmatpush1.msra.mxu0 0.0
    %794 = vmatprep.subr.mxu0 0.0
    %795 = vmatpush1.msra.mxu0 0.0
    %796 = vmatprep.subr.mxu0 0.0
    %797 = vmatpush1.msra.mxu0 0.0
    %798 = vmatprep.subr.mxu0 0.0
    %799 = vmatpush1.msra.mxu0 0.0
    %800 = vmatprep.subr.mxu0 0.0
    %801 = vmatpush1.msra.mxu0 0.0
    %802 = vmatprep.subr.mxu0 0.0
    %803 = vmatpush1.msra.mxu0 0.0
    %804 = vmatprep.subr.mxu0 0.0
    %805 = vmatpush1.msra.mxu0 0.0
    %806 = vmatprep.subr.mxu0 0.0
    %807 = vmatpush1.msra.mxu0 0.0
    %808 = vmatprep.subr.mxu0 0.0
    %809 = vmatpush1.msra.mxu0 0.0
    %810 = vmatprep.subr.mxu0 0.0
    %811 = vmatpush1.msra.mxu0 0.0
    %812 = vmatprep.subr.mxu0 0.0
    %813 = vmatpush1.msra.mxu0 0.0
    %814 = vmatprep.subr.mxu0 0.0
    %815 = vmatpush1.msra.mxu0 0.0
    %816 = vmatprep.subr.mxu0 0.0
    %817 = vmatpush1.msra.mxu0 %v526
    %818 = vmatprep.subr.mxu0 0.0
    %819 = vmatpush2.msra.mxu0 0.0
    %820 = vmatprep.subr.mxu0 0.0
    %821 = vmatpush2.msra.mxu0 0.0
    %822 = vmatprep.subr.mxu0 0.0
    %823 = vmatpush2.msra.mxu0 0.0
    %824 = vmatprep.subr.mxu0 0.0
    %825 = vmatpush2.msra.mxu0 0.0
    %826 = vmatprep.subr.mxu0 0.0
    %827 = vmatpush2.msra.mxu0 0.0
    %828 = vmatprep.subr.mxu0 0.0
    %829 = vmatpush2.msra.mxu0 0.0
    %830 = vmatprep.subr.mxu0 0.0
    %831 = vmatpush2.msra.mxu0 0.0
    %832 = vmatprep.subr.mxu0 0.0
    %833 = vmatpush2.msra.mxu0 0.0
    %834 = vmatprep.subr.mxu0 0.0
    %835 = vmatpush2.msra.mxu0 0.0
    %836 = vmatprep.subr.mxu0 0.0
    %837 = vmatpush2.msra.mxu0 0.0
    %838 = vmatprep.subr.mxu0 0.0
    %839 = vmatpush2.msra.mxu0 0.0
    %840 = vmatprep.subr.mxu0 0.0
    %841 = vmatpush2.msra.mxu0 0.0
    %842 = vmatprep.subr.mxu0 0.0
    %843 = vmatpush2.msra.mxu0 0.0
    %844 = vmatprep.subr.mxu0 0.0
    %845 = vmatpush2.msra.mxu0 0.0
    %846 = vmatprep.subr.mxu0 0.0
    %847 = vmatpush2.msra.mxu0 0.0
    %848 = vmatprep.subr.mxu0 0.0
    %849 = vmatpush2.msra.mxu0 0.0
    %850 = vmatprep.mubr.f32.mxu0 0.0
    %851 = vmatmul.mubr.f32.gmra.mxu0 %v784
    %v852 = vpop.f32.mrf.mxu0
    %v853 = vadd.f32 %v84, %v852
    %v854 = vpop.f32.mrf.mxu0
    %855 = vdwg.mxu0
    %v856 = vsel %vm221, %v853, -inf
    %857 = vmax.xlane.f32.xlu0 %v856
    %v858 = vpop.xlane.xlu0 %857
    %v859 = vsub.f32 %v853, %v858
    %v860 = vmul.f32 %v859, 1.442695
    %v861 = vpow.pop %v860
    %v862 = vsel %vm221, %v861, 0.0
    %863 = vadd.xlane.f32.xlu0 %v862
    %v864 = vpop.xlane.xlu0 %863
    %v865 = vrcp.pop %v864
    %v866 = vmul.f32 %v861, %v865
    %v868 = vsel %vm221, %v546, 0
    %v871 = vsel %vm221, %v866, 0
    %873 = vmatprep.subr.mxu0 0.0
    %874 = vmatpush1.xpose.msra.mxu0 0.0
    %875 = vmatprep.subr.mxu0 0.0
    %876 = vmatpush1.xpose.msra.mxu0 0.0
    %877 = vmatprep.subr.mxu0 0.0
    %878 = vmatpush1.xpose.msra.mxu0 0.0
    %879 = vmatprep.subr.mxu0 0.0
    %880 = vmatpush1.xpose.msra.mxu0 0.0
    %881 = vmatprep.subr.mxu0 0.0
    %882 = vmatpush1.xpose.msra.mxu0 0.0
    %883 = vmatprep.subr.mxu0 0.0
    %884 = vmatpush1.xpose.msra.mxu0 0.0
    %885 = vmatprep.subr.mxu0 0.0
    %886 = vmatpush1.xpose.msra.mxu0 0.0
    %887 = vmatprep.subr.mxu0 0.0
    %888 = vmatpush1.xpose.msra.mxu0 0.0
    %889 = vmatprep.subr.mxu0 0.0
    %890 = vmatpush1.xpose.msra.mxu0 0.0
    %891 = vmatprep.subr.mxu0 0.0
    %892 = vmatpush1.xpose.msra.mxu0 0.0
    %893 = vmatprep.subr.mxu0 0.0
    %894 = vmatpush1.xpose.msra.mxu0 0.0
    %895 = vmatprep.subr.mxu0 0.0
    %896 = vmatpush1.xpose.msra.mxu0 0.0
    %897 = vmatprep.subr.mxu0 0.0
    %898 = vmatpush1.xpose.msra.mxu0 0.0
    %899 = vmatprep.subr.mxu0 0.0
    %900 = vmatpush1.xpose.msra.mxu0 0.0
    %901 = vmatprep.subr.mxu0 0.0
    %902 = vmatpush1.xpose.msra.mxu0 0.0
    %903 = vmatprep.subr.mxu0 0.0
    %904 = vmatpush1.xpose.msra.mxu0 %v871
    %905 = vmatprep.subr.mxu0 0.0
    %906 = vmatpush2.xpose.msra.mxu0 0.0
    %907 = vmatprep.subr.mxu0 0.0
    %908 = vmatpush2.xpose.msra.mxu0 0.0
    %909 = vmatprep.subr.mxu0 0.0
    %910 = vmatpush2.xpose.msra.mxu0 0.0
    %911 = vmatprep.subr.mxu0 0.0
    %912 = vmatpush2.xpose.msra.mxu0 0.0
    %913 = vmatprep.subr.mxu0 0.0
    %914 = vmatpush2.xpose.msra.mxu0 0.0
    %915 = vmatprep.subr.mxu0 0.0
    %916 = vmatpush2.xpose.msra.mxu0 0.0
    %917 = vmatprep.subr.mxu0 0.0
    %918 = vmatpush2.xpose.msra.mxu0 0.0
    %919 = vmatprep.subr.mxu0 0.0
    %920 = vmatpush2.xpose.msra.mxu0 0.0
    %921 = vmatprep.subr.mxu0 0.0
    %922 = vmatpush2.xpose.msra.mxu0 0.0
    %923 = vmatprep.subr.mxu0 0.0
    %924 = vmatpush2.xpose.msra.mxu0 0.0
    %925 = vmatprep.subr.mxu0 0.0
    %926 = vmatpush2.xpose.msra.mxu0 0.0
    %927 = vmatprep.subr.mxu0 0.0
    %928 = vmatpush2.xpose.msra.mxu0 0.0
    %929 = vmatprep.subr.mxu0 0.0
    %930 = vmatpush2.xpose.msra.mxu0 0.0
    %931 = vmatprep.subr.mxu0 0.0
    %932 = vmatpush2.xpose.msra.mxu0 0.0
    %933 = vmatprep.subr.mxu0 0.0
    %934 = vmatpush2.xpose.msra.mxu0 0.0
    %935 = vmatprep.subr.mxu0 0.0
    %936 = vmatpush2.xpose.msra.mxu0 0.0
    %937 = vmatprep.mubr.f32.mxu0 0.0
    %938 = vmatmul.mubr.f32.gmra.mxu0 %v868
    %v939 = vpop.f32.mrf.mxu0
    %v940 = vadd.f32 0.0, %v939
    %v941 = vpop.f32.mrf.mxu0
    %942 = vdwg.mxu0
    %943 = vxpose.xlu0.b32.start [1/16] %v511, 128
    %944 = vxpose.xlu0.b32.cont [2/16] 0.0, 128
    %945 = vxpose.xlu0.b32.cont [3/16] 0.0, 128
    %946 = vxpose.xlu0.b32.cont [4/16] 0.0, 128
    %947 = vxpose.xlu0.b32.cont [5/16] 0.0, 128
    %948 = vxpose.xlu0.b32.cont [6/16] 0.0, 128
    %949 = vxpose.xlu0.b32.cont [7/16] 0.0, 128
    %950 = vxpose.xlu0.b32.cont [8/16] 0.0, 128
    %951 = vxpose.xlu0.b32.cont [9/16] 0.0, 128
    %952 = vxpose.xlu0.b32.cont [10/16] 0.0, 128
    %953 = vxpose.xlu0.b32.cont [11/16] 0.0, 128
    %954 = vxpose.xlu0.b32.cont [12/16] 0.0, 128
    %955 = vxpose.xlu0.b32.cont [13/16] 0.0, 128
    %956 = vxpose.xlu0.b32.cont [14/16] 0.0, 128
    %957 = vxpose.xlu0.b32.cont [15/16] 0.0, 128
    %958 = vxpose.xlu0.b32.end [16/16] 0.0, 128
    %v959 = vpop.trf.xlu0
    %v960 = vpop.trf.xlu0
    %v961 = vpop.trf.xlu0
    %v962 = vpop.trf.xlu0
    %v963 = vpop.trf.xlu0
    %v964 = vpop.trf.xlu0
    %v965 = vpop.trf.xlu0
    %v966 = vpop.trf.xlu0
    %v967 = vpop.trf.xlu0
    %v968 = vpop.trf.xlu0
    %v969 = vpop.trf.xlu0
    %v970 = vpop.trf.xlu0
    %v971 = vpop.trf.xlu0
    %v972 = vpop.trf.xlu0
    %v973 = vpop.trf.xlu0
    %v974 = vpop.trf.xlu0
    %v976 = vsel %vm221, %v959, 0
    %978 = vmatprep.subr.mxu0 0.0
    %979 = vmatpush1.msra.mxu0 0.0
    %980 = vmatprep.subr.mxu0 0.0
    %981 = vmatpush1.msra.mxu0 0.0
    %982 = vmatprep.subr.mxu0 0.0
    %983 = vmatpush1.msra.mxu0 0.0
    %984 = vmatprep.subr.mxu0 0.0
    %985 = vmatpush1.msra.mxu0 0.0
    %986 = vmatprep.subr.mxu0 0.0
    %987 = vmatpush1.msra.mxu0 0.0
    %988 = vmatprep.subr.mxu0 0.0
    %989 = vmatpush1.msra.mxu0 0.0
    %990 = vmatprep.subr.mxu0 0.0
    %991 = vmatpush1.msra.mxu0 0.0
    %992 = vmatprep.subr.mxu0 0.0
    %993 = vmatpush1.msra.mxu0 0.0
    %994 = vmatprep.subr.mxu0 0.0
    %995 = vmatpush1.msra.mxu0 0.0
    %996 = vmatprep.subr.mxu0 0.0
    %997 = vmatpush1.msra.mxu0 0.0
    %998 = vmatprep.subr.mxu0 0.0
    %999 = vmatpush1.msra.mxu0 0.0
    %1000 = vmatprep.subr.mxu0 0.0
    %1001 = vmatpush1.msra.mxu0 0.0
    %1002 = vmatprep.subr.mxu0 0.0
    %1003 = vmatpush1.msra.mxu0 0.0
    %1004 = vmatprep.subr.mxu0 0.0
    %1005 = vmatpush1.msra.mxu0 0.0
    %1006 = vmatprep.subr.mxu0 0.0
    %1007 = vmatpush1.msra.mxu0 0.0
    %1008 = vmatprep.subr.mxu0 0.0
    %1009 = vmatpush1.msra.mxu0 %v531
    %1010 = vmatprep.subr.mxu0 0.0
    %1011 = vmatpush2.msra.mxu0 0.0
    %1012 = vmatprep.subr.mxu0 0.0
    %1013 = vmatpush2.msra.mxu0 0.0
    %1014 = vmatprep.subr.mxu0 0.0
    %1015 = vmatpush2.msra.mxu0 0.0
    %1016 = vmatprep.subr.mxu0 0.0
    %1017 = vmatpush2.msra.mxu0 0.0
    %1018 = vmatprep.subr.mxu0 0.0
    %1019 = vmatpush2.msra.mxu0 0.0
    %1020 = vmatprep.subr.mxu0 0.0
    %1021 = vmatpush2.msra.mxu0 0.0
    %1022 = vmatprep.subr.mxu0 0.0
    %1023 = vmatpush2.msra.mxu0 0.0
    %1024 = vmatprep.subr.mxu0 0.0
    %1025 = vmatpush2.msra.mxu0 0.0
    %1026 = vmatprep.subr.mxu0 0.0
    %1027 = vmatpush2.msra.mxu0 0.0
    %1028 = vmatprep.subr.mxu0 0.0
    %1029 = vmatpush2.msra.mxu0 0.0
    %1030 = vmatprep.subr.mxu0 0.0
    %1031 = vmatpush2.msra.mxu0 0.0
    %1032 = vmatprep.subr.mxu0 0.0
    %1033 = vmatpush2.msra.mxu0 0.0
    %1034 = vmatprep.subr.mxu0 0.0
    %1035 = vmatpush2.msra.mxu0 0.0
    %1036 = vmatprep.subr.mxu0 0.0
    %1037 = vmatpush2.msra.mxu0 0.0
    %1038 = vmatprep.subr.mxu0 0.0
    %1039 = vmatpush2.msra.mxu0 0.0
    %1040 = vmatprep.subr.mxu0 0.0
    %1041 = vmatpush2.msra.mxu0 0.0
    %1042 = vmatprep.mubr.f32.mxu0 0.0
    %1043 = vmatmul.mubr.f32.gmra.mxu0 %v976
    %v1044 = vpop.f32.mrf.mxu0
    %v1045 = vadd.f32 %v84, %v1044
    %v1046 = vpop.f32.mrf.mxu0
    %1047 = vdwg.mxu0
    %v1048 = vsel %vm221, %v1045, -inf
    %1049 = vmax.xlane.f32.xlu0 %v1048
    %v1050 = vpop.xlane.xlu0 %1049
    %v1051 = vsub.f32 %v1045, %v1050
    %v1052 = vmul.f32 %v1051, 1.442695
    %v1053 = vpow.pop %v1052
    %v1054 = vsel %vm221, %v1053, 0.0
    %1055 = vadd.xlane.f32.xlu0 %v1054
    %v1056 = vpop.xlane.xlu0 %1055
    %v1057 = vrcp.pop %v1056
    %v1058 = vmul.f32 %v1053, %v1057
    %v1060 = vsel %vm221, %v551, 0
    %v1063 = vsel %vm221, %v1058, 0
    %1065 = vmatprep.subr.mxu0 0.0
    %1066 = vmatpush1.xpose.msra.mxu0 0.0
    %1067 = vmatprep.subr.mxu0 0.0
    %1068 = vmatpush1.xpose.msra.mxu0 0.0
    %1069 = vmatprep.subr.mxu0 0.0
    %1070 = vmatpush1.xpose.msra.mxu0 0.0
    %1071 = vmatprep.subr.mxu0 0.0
    %1072 = vmatpush1.xpose.msra.mxu0 0.0
    %1073 = vmatprep.subr.mxu0 0.0
    %1074 = vmatpush1.xpose.msra.mxu0 0.0
    %1075 = vmatprep.subr.mxu0 0.0
    %1076 = vmatpush1.xpose.msra.mxu0 0.0
    %1077 = vmatprep.subr.mxu0 0.0
    %1078 = vmatpush1.xpose.msra.mxu0 0.0
    %1079 = vmatprep.subr.mxu0 0.0
    %1080 = vmatpush1.xpose.msra.mxu0 0.0
    %1081 = vmatprep.subr.mxu0 0.0
    %1082 = vmatpush1.xpose.msra.mxu0 0.0
    %1083 = vmatprep.subr.mxu0 0.0
    %1084 = vmatpush1.xpose.msra.mxu0 0.0
    %1085 = vmatprep.subr.mxu0 0.0
    %1086 = vmatpush1.xpose.msra.mxu0 0.0
    %1087 = vmatprep.subr.mxu0 0.0
    %1088 = vmatpush1.xpose.msra.mxu0 0.0
    %1089 = vmatprep.subr.mxu0 0.0
    %1090 = vmatpush1.xpose.msra.mxu0 0.0
    %1091 = vmatprep.subr.mxu0 0.0
    %1092 = vmatpush1.xpose.msra.mxu0 0.0
    %1093 = vmatprep.subr.mxu0 0.0
    %1094 = vmatpush1.xpose.msra.mxu0 0.0
    %1095 = vmatprep.subr.mxu0 0.0
    %1096 = vmatpush1.xpose.msra.mxu0 %v1063
    %1097 = vmatprep.subr.mxu0 0.0
    %1098 = vmatpush2.xpose.msra.mxu0 0.0
    %1099 = vmatprep.subr.mxu0 0.0
    %1100 = vmatpush2.xpose.msra.mxu0 0.0
    %1101 = vmatprep.subr.mxu0 0.0
    %1102 = vmatpush2.xpose.msra.mxu0 0.0
    %1103 = vmatprep.subr.mxu0 0.0
    %1104 = vmatpush2.xpose.msra.mxu0 0.0
    %1105 = vmatprep.subr.mxu0 0.0
    %1106 = vmatpush2.xpose.msra.mxu0 0.0
    %1107 = vmatprep.subr.mxu0 0.0
    %1108 = vmatpush2.xpose.msra.mxu0 0.0
    %1109 = vmatprep.subr.mxu0 0.0
    %1110 = vmatpush2.xpose.msra.mxu0 0.0
    %1111 = vmatprep.subr.mxu0 0.0
    %1112 = vmatpush2.xpose.msra.mxu0 0.0
    %1113 = vmatprep.subr.mxu0 0.0
    %1114 = vmatpush2.xpose.msra.mxu0 0.0
    %1115 = vmatprep.subr.mxu0 0.0
    %1116 = vmatpush2.xpose.msra.mxu0 0.0
    %1117 = vmatprep.subr.mxu0 0.0
    %1118 = vmatpush2.xpose.msra.mxu0 0.0
    %1119 = vmatprep.subr.mxu0 0.0
    %1120 = vmatpush2.xpose.msra.mxu0 0.0
    %1121 = vmatprep.subr.mxu0 0.0
    %1122 = vmatpush2.xpose.msra.mxu0 0.0
    %1123 = vmatprep.subr.mxu0 0.0
    %1124 = vmatpush2.xpose.msra.mxu0 0.0
    %1125 = vmatprep.subr.mxu0 0.0
    %1126 = vmatpush2.xpose.msra.mxu0 0.0
    %1127 = vmatprep.subr.mxu0 0.0
    %1128 = vmatpush2.xpose.msra.mxu0 0.0
    %1129 = vmatprep.mubr.f32.mxu0 0.0
    %1130 = vmatmul.mubr.f32.gmra.mxu0 %v1060
    %v1131 = vpop.f32.mrf.mxu0
    %v1132 = vadd.f32 0.0, %v1131
    %v1133 = vpop.f32.mrf.mxu0
    %1134 = vdwg.mxu0
    %1135 = vxpose.xlu0.b32.start [1/16] %v516, 128
    %1136 = vxpose.xlu0.b32.cont [2/16] 0.0, 128
    %1137 = vxpose.xlu0.b32.cont [3/16] 0.0, 128
    %1138 = vxpose.xlu0.b32.cont [4/16] 0.0, 128
    %1139 = vxpose.xlu0.b32.cont [5/16] 0.0, 128
    %1140 = vxpose.xlu0.b32.cont [6/16] 0.0, 128
    %1141 = vxpose.xlu0.b32.cont [7/16] 0.0, 128
    %1142 = vxpose.xlu0.b32.cont [8/16] 0.0, 128
    %1143 = vxpose.xlu0.b32.cont [9/16] 0.0, 128
    %1144 = vxpose.xlu0.b32.cont [10/16] 0.0, 128
    %1145 = vxpose.xlu0.b32.cont [11/16] 0.0, 128
    %1146 = vxpose.xlu0.b32.cont [12/16] 0.0, 128
    %1147 = vxpose.xlu0.b32.cont [13/16] 0.0, 128
    %1148 = vxpose.xlu0.b32.cont [14/16] 0.0, 128
    %1149 = vxpose.xlu0.b32.cont [15/16] 0.0, 128
    %1150 = vxpose.xlu0.b32.end [16/16] 0.0, 128
    %v1151 = vpop.trf.xlu0
    %v1152 = vpop.trf.xlu0
    %v1153 = vpop.trf.xlu0
    %v1154 = vpop.trf.xlu0
    %v1155 = vpop.trf.xlu0
    %v1156 = vpop.trf.xlu0
    %v1157 = vpop.trf.xlu0
    %v1158 = vpop.trf.xlu0
    %v1159 = vpop.trf.xlu0
    %v1160 = vpop.trf.xlu0
    %v1161 = vpop.trf.xlu0
    %v1162 = vpop.trf.xlu0
    %v1163 = vpop.trf.xlu0
    %v1164 = vpop.trf.xlu0
    %v1165 = vpop.trf.xlu0
    %v1166 = vpop.trf.xlu0
    %v1168 = vsel %vm221, %v1151, 0
    %1170 = vmatprep.subr.mxu0 0.0
    %1171 = vmatpush1.msra.mxu0 0.0
    %1172 = vmatprep.subr.mxu0 0.0
    %1173 = vmatpush1.msra.mxu0 0.0
    %1174 = vmatprep.subr.mxu0 0.0
    %1175 = vmatpush1.msra.mxu0 0.0
    %1176 = vmatprep.subr.mxu0 0.0
    %1177 = vmatpush1.msra.mxu0 0.0
    %1178 = vmatprep.subr.mxu0 0.0
    %1179 = vmatpush1.msra.mxu0 0.0
    %1180 = vmatprep.subr.mxu0 0.0
    %1181 = vmatpush1.msra.mxu0 0.0
    %1182 = vmatprep.subr.mxu0 0.0
    %1183 = vmatpush1.msra.mxu0 0.0
    %1184 = vmatprep.subr.mxu0 0.0
    %1185 = vmatpush1.msra.mxu0 0.0
    %1186 = vmatprep.subr.mxu0 0.0
    %1187 = vmatpush1.msra.mxu0 0.0
    %1188 = vmatprep.subr.mxu0 0.0
    %1189 = vmatpush1.msra.mxu0 0.0
    %1190 = vmatprep.subr.mxu0 0.0
    %1191 = vmatpush1.msra.mxu0 0.0
    %1192 = vmatprep.subr.mxu0 0.0
    %1193 = vmatpush1.msra.mxu0 0.0
    %1194 = vmatprep.subr.mxu0 0.0
    %1195 = vmatpush1.msra.mxu0 0.0
    %1196 = vmatprep.subr.mxu0 0.0
    %1197 = vmatpush1.msra.mxu0 0.0
    %1198 = vmatprep.subr.mxu0 0.0
    %1199 = vmatpush1.msra.mxu0 0.0
    %1200 = vmatprep.subr.mxu0 0.0
    %1201 = vmatpush1.msra.mxu0 %v536
    %1202 = vmatprep.subr.mxu0 0.0
    %1203 = vmatpush2.msra.mxu0 0.0
    %1204 = vmatprep.subr.mxu0 0.0
    %1205 = vmatpush2.msra.mxu0 0.0
    %1206 = vmatprep.subr.mxu0 0.0
    %1207 = vmatpush2.msra.mxu0 0.0
    %1208 = vmatprep.subr.mxu0 0.0
    %1209 = vmatpush2.msra.mxu0 0.0
    %1210 = vmatprep.subr.mxu0 0.0
    %1211 = vmatpush2.msra.mxu0 0.0
    %1212 = vmatprep.subr.mxu0 0.0
    %1213 = vmatpush2.msra.mxu0 0.0
    %1214 = vmatprep.subr.mxu0 0.0
    %1215 = vmatpush2.msra.mxu0 0.0
    %1216 = vmatprep.subr.mxu0 0.0
    %1217 = vmatpush2.msra.mxu0 0.0
    %1218 = vmatprep.subr.mxu0 0.0
    %1219 = vmatpush2.msra.mxu0 0.0
    %1220 = vmatprep.subr.mxu0 0.0
    %1221 = vmatpush2.msra.mxu0 0.0
    %1222 = vmatprep.subr.mxu0 0.0
    %1223 = vmatpush2.msra.mxu0 0.0
    %1224 = vmatprep.subr.mxu0 0.0
    %1225 = vmatpush2.msra.mxu0 0.0
    %1226 = vmatprep.subr.mxu0 0.0
    %1227 = vmatpush2.msra.mxu0 0.0
    %1228 = vmatprep.subr.mxu0 0.0
    %1229 = vmatpush2.msra.mxu0 0.0
    %1230 = vmatprep.subr.mxu0 0.0
    %1231 = vmatpush2.msra.mxu0 0.0
    %1232 = vmatprep.subr.mxu0 0.0
    %1233 = vmatpush2.msra.mxu0 0.0
    %1234 = vmatprep.mubr.f32.mxu0 0.0
    %1235 = vmatmul.mubr.f32.gmra.mxu0 %v1168
    %v1236 = vpop.f32.mrf.mxu0
    %v1237 = vadd.f32 %v84, %v1236
    %v1238 = vpop.f32.mrf.mxu0
    %1239 = vdwg.mxu0
    %v1240 = vsel %vm221, %v1237, -inf
    %1241 = vmax.xlane.f32.xlu0 %v1240
    %v1242 = vpop.xlane.xlu0 %1241
    %v1243 = vsub.f32 %v1237, %v1242
    %v1244 = vmul.f32 %v1243, 1.442695
    %v1245 = vpow.pop %v1244
    %v1246 = vsel %vm221, %v1245, 0.0
    %1247 = vadd.xlane.f32.xlu0 %v1246
    %v1248 = vpop.xlane.xlu0 %1247
    %v1249 = vrcp.pop %v1248
    %v1250 = vmul.f32 %v1245, %v1249
    %v1252 = vsel %vm221, %v556, 0
    %v1255 = vsel %vm221, %v1250, 0
    %1257 = vmatprep.subr.mxu0 0.0
    %1258 = vmatpush1.xpose.msra.mxu0 0.0
    %1259 = vmatprep.subr.mxu0 0.0
    %1260 = vmatpush1.xpose.msra.mxu0 0.0
    %1261 = vmatprep.subr.mxu0 0.0
    %1262 = vmatpush1.xpose.msra.mxu0 0.0
    %1263 = vmatprep.subr.mxu0 0.0
    %1264 = vmatpush1.xpose.msra.mxu0 0.0
    %1265 = vmatprep.subr.mxu0 0.0
    %1266 = vmatpush1.xpose.msra.mxu0 0.0
    %1267 = vmatprep.subr.mxu0 0.0
    %1268 = vmatpush1.xpose.msra.mxu0 0.0
    %1269 = vmatprep.subr.mxu0 0.0
    %1270 = vmatpush1.xpose.msra.mxu0 0.0
    %1271 = vmatprep.subr.mxu0 0.0
    %1272 = vmatpush1.xpose.msra.mxu0 0.0
    %1273 = vmatprep.subr.mxu0 0.0
    %1274 = vmatpush1.xpose.msra.mxu0 0.0
    %1275 = vmatprep.subr.mxu0 0.0
    %1276 = vmatpush1.xpose.msra.mxu0 0.0
    %1277 = vmatprep.subr.mxu0 0.0
    %1278 = vmatpush1.xpose.msra.mxu0 0.0
    %1279 = vmatprep.subr.mxu0 0.0
    %1280 = vmatpush1.xpose.msra.mxu0 0.0
    %1281 = vmatprep.subr.mxu0 0.0
    %1282 = vmatpush1.xpose.msra.mxu0 0.0
    %1283 = vmatprep.subr.mxu0 0.0
    %1284 = vmatpush1.xpose.msra.mxu0 0.0
    %1285 = vmatprep.subr.mxu0 0.0
    %1286 = vmatpush1.xpose.msra.mxu0 0.0
    %1287 = vmatprep.subr.mxu0 0.0
    %1288 = vmatpush1.xpose.msra.mxu0 %v1255
    %1289 = vmatprep.subr.mxu0 0.0
    %1290 = vmatpush2.xpose.msra.mxu0 0.0
    %1291 = vmatprep.subr.mxu0 0.0
    %1292 = vmatpush2.xpose.msra.mxu0 0.0
    %1293 = vmatprep.subr.mxu0 0.0
    %1294 = vmatpush2.xpose.msra.mxu0 0.0
    %1295 = vmatprep.subr.mxu0 0.0
    %1296 = vmatpush2.xpose.msra.mxu0 0.0
    %1297 = vmatprep.subr.mxu0 0.0
    %1298 = vmatpush2.xpose.msra.mxu0 0.0
    %1299 = vmatprep.subr.mxu0 0.0
    %1300 = vmatpush2.xpose.msra.mxu0 0.0
    %1301 = vmatprep.subr.mxu0 0.0
    %1302 = vmatpush2.xpose.msra.mxu0 0.0
    %1303 = vmatprep.subr.mxu0 0.0
    %1304 = vmatpush2.xpose.msra.mxu0 0.0
    %1305 = vmatprep.subr.mxu0 0.0
    %1306 = vmatpush2.xpose.msra.mxu0 0.0
    %1307 = vmatprep.subr.mxu0 0.0
    %1308 = vmatpush2.xpose.msra.mxu0 0.0
    %1309 = vmatprep.subr.mxu0 0.0
    %1310 = vmatpush2.xpose.msra.mxu0 0.0
    %1311 = vmatprep.subr.mxu0 0.0
    %1312 = vmatpush2.xpose.msra.mxu0 0.0
    %1313 = vmatprep.subr.mxu0 0.0
    %1314 = vmatpush2.xpose.msra.mxu0 0.0
    %1315 = vmatprep.subr.mxu0 0.0
    %1316 = vmatpush2.xpose.msra.mxu0 0.0
    %1317 = vmatprep.subr.mxu0 0.0
    %1318 = vmatpush2.xpose.msra.mxu0 0.0
    %1319 = vmatprep.subr.mxu0 0.0
    %1320 = vmatpush2.xpose.msra.mxu0 0.0
    %1321 = vmatprep.mubr.f32.mxu0 0.0
    %1322 = vmatmul.mubr.f32.gmra.mxu0 %v1252
    %v1323 = vpop.f32.mrf.mxu0
    %v1324 = vadd.f32 0.0, %v1323
    %v1325 = vpop.f32.mrf.mxu0
    %1326 = vdwg.mxu0
    %v1327 = vld [vmem:[%s8] sm:$0xff]
    %v1328 = vld [vmem:[%s8 + $0x8] sm:$0xff]
    %v1329 = vld [vmem:[%s8 + $0x10] sm:$0xff]
    %v1330 = vld [vmem:[%s8 + $0x18] sm:$0xff]
    %v1331 = vld [vmem:[%s9] sm:$0xff]
    %v1332 = vld [vmem:[%s9 + $0x8] sm:$0xff]
    %v1333 = vld [vmem:[%s9 + $0x10] sm:$0xff]
    %v1334 = vld [vmem:[%s9 + $0x18] sm:$0xff]
    %v1336 = vsel %vm397, %v1331, 0
    %v1339 = vsel %vm397, %v1332, 0
    %v1342 = vsel %vm397, %v1333, 0
    %v1345 = vsel %vm397, %v1334, 0
    %1347 = vmatprep.subr.mxu0 0.0
    %1348 = vmatpush1.msra.mxu0 0.0
    %1349 = vmatprep.subr.mxu0 0.0
    %1350 = vmatpush1.msra.mxu0 0.0
    %1351 = vmatprep.subr.mxu0 0.0
    %1352 = vmatpush1.msra.mxu0 0.0
    %1353 = vmatprep.subr.mxu0 0.0
    %1354 = vmatpush1.msra.mxu0 0.0
    %1355 = vmatprep.subr.mxu0 0.0
    %1356 = vmatpush1.msra.mxu0 0.0
    %1357 = vmatprep.subr.mxu0 0.0
    %1358 = vmatpush1.msra.mxu0 0.0
    %1359 = vmatprep.subr.mxu0 0.0
    %1360 = vmatpush1.msra.mxu0 0.0
    %1361 = vmatprep.subr.mxu0 0.0
    %1362 = vmatpush1.msra.mxu0 0.0
    %1363 = vmatprep.subr.mxu0 0.0
    %1364 = vmatpush1.msra.mxu0 0.0
    %1365 = vmatprep.subr.mxu0 0.0
    %1366 = vmatpush1.msra.mxu0 0.0
    %1367 = vmatprep.subr.mxu0 0.0
    %1368 = vmatpush1.msra.mxu0 0.0
    %1369 = vmatprep.subr.mxu0 0.0
    %1370 = vmatpush1.msra.mxu0 0.0
    %1371 = vmatprep.subr.mxu0 0.0
    %1372 = vmatpush1.msra.mxu0 %v1324
    %1373 = vmatprep.subr.mxu0 0.0
    %1374 = vmatpush1.msra.mxu0 %v1132
    %1375 = vmatprep.subr.mxu0 0.0
    %1376 = vmatpush1.msra.mxu0 %v940
    %1377 = vmatprep.subr.mxu0 0.0
    %1378 = vmatpush1.msra.mxu0 %v748
    %1379 = vmatprep.subr.mxu0 0.0
    %1380 = vmatpush2.msra.mxu0 0.0
    %1381 = vmatprep.subr.mxu0 0.0
    %1382 = vmatpush2.msra.mxu0 0.0
    %1383 = vmatprep.subr.mxu0 0.0
    %1384 = vmatpush2.msra.mxu0 0.0
    %1385 = vmatprep.subr.mxu0 0.0
    %1386 = vmatpush2.msra.mxu0 0.0
    %1387 = vmatprep.subr.mxu0 0.0
    %1388 = vmatpush2.msra.mxu0 0.0
    %1389 = vmatprep.subr.mxu0 0.0
    %1390 = vmatpush2.msra.mxu0 0.0
    %1391 = vmatprep.subr.mxu0 0.0
    %1392 = vmatpush2.msra.mxu0 0.0
    %1393 = vmatprep.subr.mxu0 0.0
    %1394 = vmatpush2.msra.mxu0 0.0
    %1395 = vmatprep.subr.mxu0 0.0
    %1396 = vmatpush2.msra.mxu0 0.0
    %1397 = vmatprep.subr.mxu0 0.0
    %1398 = vmatpush2.msra.mxu0 0.0
    %1399 = vmatprep.subr.mxu0 0.0
    %1400 = vmatpush2.msra.mxu0 0.0
    %1401 = vmatprep.subr.mxu0 0.0
    %1402 = vmatpush2.msra.mxu0 0.0
    %1403 = vmatprep.subr.mxu0 0.0
    %1404 = vmatpush2.msra.mxu0 0.0
    %1405 = vmatprep.subr.mxu0 0.0
    %1406 = vmatpush2.msra.mxu0 0.0
    %1407 = vmatprep.subr.mxu0 0.0
    %1408 = vmatpush2.msra.mxu0 0.0
    %1409 = vmatprep.subr.mxu0 0.0
    %1410 = vmatpush2.msra.mxu0 0.0
    %1411 = vmatprep.mubr.f32.mxu0 0.0
    %1412 = vmatmul.mubr.f32.gmra.mxu0 %v1336
    %v1413 = vpop.f32.mrf.mxu0
    %v1414 = vadd.f32 0.0, %v1413
    %v1415 = vpop.f32.mrf.mxu0
    %1416 = vmatprep.mubr.f32.mxu0 0.0
    %1417 = vmatmul.mubr.f32.gmra.mxu0 %v1339
    %v1418 = vpop.f32.mrf.mxu0
    %v1419 = vadd.f32 0.0, %v1418
    %v1420 = vpop.f32.mrf.mxu0
    %1421 = vmatprep.mubr.f32.mxu0 0.0
    %1422 = vmatmul.mubr.f32.gmra.mxu0 %v1342
    %v1423 = vpop.f32.mrf.mxu0
    %v1424 = vadd.f32 0.0, %v1423
    %v1425 = vpop.f32.mrf.mxu0
    %1426 = vmatprep.mubr.f32.mxu0 0.0
    %1427 = vmatmul.mubr.f32.gmra.mxu0 %v1345
    %v1428 = vpop.f32.mrf.mxu0
    %v1429 = vadd.f32 0.0, %v1428
    %v1430 = vpop.f32.mrf.mxu0
    %1431 = vdwg.mxu0
    %v1433 = vsel %vm397, %v1327, 0
    %v1436 = vsel %vm397, %v1328, 0
    %v1439 = vsel %vm397, %v1329, 0
    %v1442 = vsel %vm397, %v1330, 0
    %1444 = vmatprep.subr.mxu0 0.0
    %1445 = vmatpush1.msra.mxu0 0.0
    %1446 = vmatprep.subr.mxu0 0.0
    %1447 = vmatpush1.msra.mxu0 0.0
    %1448 = vmatprep.subr.mxu0 0.0
    %1449 = vmatpush1.msra.mxu0 0.0
    %1450 = vmatprep.subr.mxu0 0.0
    %1451 = vmatpush1.msra.mxu0 0.0
    %1452 = vmatprep.subr.mxu0 0.0
    %1453 = vmatpush1.msra.mxu0 0.0
    %1454 = vmatprep.subr.mxu0 0.0
    %1455 = vmatpush1.msra.mxu0 0.0
    %1456 = vmatprep.subr.mxu0 0.0
    %1457 = vmatpush1.msra.mxu0 0.0
    %1458 = vmatprep.subr.mxu0 0.0
    %1459 = vmatpush1.msra.mxu0 0.0
    %1460 = vmatprep.subr.mxu0 0.0
    %1461 = vmatpush1.msra.mxu0 0.0
    %1462 = vmatprep.subr.mxu0 0.0
    %1463 = vmatpush1.msra.mxu0 0.0
    %1464 = vmatprep.subr.mxu0 0.0
    %1465 = vmatpush1.msra.mxu0 0.0
    %1466 = vmatprep.subr.mxu0 0.0
    %1467 = vmatpush1.msra.mxu0 0.0
    %1468 = vmatprep.subr.mxu0 0.0
    %1469 = vmatpush1.msra.mxu0 %v312
    %1470 = vmatprep.subr.mxu0 0.0
    %1471 = vmatpush1.msra.mxu0 %v311
    %1472 = vmatprep.subr.mxu0 0.0
    %1473 = vmatpush1.msra.mxu0 %v310
    %1474 = vmatprep.subr.mxu0 0.0
    %1475 = vmatpush1.msra.mxu0 %v309
    %1476 = vmatprep.subr.mxu0 0.0
    %1477 = vmatpush2.msra.mxu0 0.0
    %1478 = vmatprep.subr.mxu0 0.0
    %1479 = vmatpush2.msra.mxu0 0.0
    %1480 = vmatprep.subr.mxu0 0.0
    %1481 = vmatpush2.msra.mxu0 0.0
    %1482 = vmatprep.subr.mxu0 0.0
    %1483 = vmatpush2.msra.mxu0 0.0
    %1484 = vmatprep.subr.mxu0 0.0
    %1485 = vmatpush2.msra.mxu0 0.0
    %1486 = vmatprep.subr.mxu0 0.0
    %1487 = vmatpush2.msra.mxu0 0.0
    %1488 = vmatprep.subr.mxu0 0.0
    %1489 = vmatpush2.msra.mxu0 0.0
    %1490 = vmatprep.subr.mxu0 0.0
    %1491 = vmatpush2.msra.mxu0 0.0
    %1492 = vmatprep.subr.mxu0 0.0
    %1493 = vmatpush2.msra.mxu0 0.0
    %1494 = vmatprep.subr.mxu0 0.0
    %1495 = vmatpush2.msra.mxu0 0.0
    %1496 = vmatprep.subr.mxu0 0.0
    %1497 = vmatpush2.msra.mxu0 0.0
    %1498 = vmatprep.subr.mxu0 0.0
    %1499 = vmatpush2.msra.mxu0 0.0
    %1500 = vmatprep.subr.mxu0 0.0
    %1501 = vmatpush2.msra.mxu0 0.0
    %1502 = vmatprep.subr.mxu0 0.0
    %1503 = vmatpush2.msra.mxu0 0.0
    %1504 = vmatprep.subr.mxu0 0.0
    %1505 = vmatpush2.msra.mxu0 0.0
    %1506 = vmatprep.subr.mxu0 0.0
    %1507 = vmatpush2.msra.mxu0 0.0
    %1508 = vmatprep.mubr.f32.mxu0 0.0
    %1509 = vmatmul.mubr.f32.gmra.mxu0 %v1433
    %v1510 = vpop.f32.mrf.mxu0
    %v1511 = vadd.f32 %v1414, %v1510
    %v1512 = vpop.f32.mrf.mxu0
    %1513 = vmatprep.mubr.f32.mxu0 0.0
    %1514 = vmatmul.mubr.f32.gmra.mxu0 %v1436
    %v1515 = vpop.f32.mrf.mxu0
    %v1516 = vadd.f32 %v1419, %v1515
    %v1517 = vpop.f32.mrf.mxu0
    %1518 = vmatprep.mubr.f32.mxu0 0.0
    %1519 = vmatmul.mubr.f32.gmra.mxu0 %v1439
    %v1520 = vpop.f32.mrf.mxu0
    %v1521 = vadd.f32 %v1424, %v1520
    %v1522 = vpop.f32.mrf.mxu0
    %1523 = vmatprep.mubr.f32.mxu0 0.0
    %1524 = vmatmul.mubr.f32.gmra.mxu0 %v1442
    %v1525 = vpop.f32.mrf.mxu0
    %v1526 = vadd.f32 %v1429, %v1525
    %v1527 = vpop.f32.mrf.mxu0
    %1528 = vdwg.mxu0
    %v1529 = vld [vmem:[%s10] sm:$0xff]
    %v1530 = vld [vmem:[%s10 + $0x8] sm:$0xff]
    %v1531 = vld [vmem:[%s10 + $0x10] sm:$0xff]
    %v1532 = vld [vmem:[%s10 + $0x18] sm:$0xff]
    %1534 = vset.pattern.permute.xlu0 0
    %1535 = vperm.xlu0 %1534, %v1529
    %v1536 = vpop.permute.xlu0 %1535
    %1539 = vset.pattern.permute.xlu0 0
    %1540 = vperm.xlu0 %1539, %v1530
    %v1541 = vpop.permute.xlu0 %1540
    %1544 = vset.pattern.permute.xlu0 0
    %1545 = vperm.xlu0 %1544, %v1531
    %v1546 = vpop.permute.xlu0 %1545
    %1549 = vset.pattern.permute.xlu0 0
    %1550 = vperm.xlu0 %1549, %v1532
    %v1551 = vpop.permute.xlu0 %1550
    %v1553 = vadd.f32 %v1511, %v1536
    %v1554 = vadd.f32 %v1516, %v1541
    %v1555 = vadd.f32 %v1521, %v1546
    %v1556 = vadd.f32 %v1526, %v1551
    %v1557 = vld [vmem:[%s11] sm:$0xff]
    %v1558 = vld [vmem:[%s11 + $0x8] sm:$0xff]
    %v1559 = vld [vmem:[%s11 + $0x10] sm:$0xff]
    %v1560 = vld [vmem:[%s11 + $0x18] sm:$0xff]
    %v1561 = vld [vmem:[%s12] sm:$0xff]
    %v1562 = vld [vmem:[%s12 + $0x8] sm:$0xff]
    %v1563 = vld [vmem:[%s12 + $0x10] sm:$0xff]
    %v1564 = vld [vmem:[%s12 + $0x18] sm:$0xff]
    %v1565 = vsel %vm221, %v1553, 0.0
    %v1566 = vsel %vm221, %v1554, 0.0
    %v1567 = vadd.f32 %v1565, %v1566
    %v1568 = vsel %vm221, %v1555, 0.0
    %v1569 = vadd.f32 %v1567, %v1568
    %v1570 = vsel %vm221, %v1556, 0.0
    %v1571 = vadd.f32 %v1569, %v1570
    %v1572 = vrot.slane %v1571, 4
    %v1573 = vadd.f32 %v1571, %v1572
    %v1574 = vrot.slane %v1573, 2
    %v1575 = vadd.f32 %v1573, %v1574
    %v1576 = vrot.slane %v1575, 1
    %v1577 = vadd.f32 %v1575, %v1576
    %v1578 = vmul.f32 %v1577, %v235
    %v1579 = vsub.f32 %v1553, %v1578
    %v1580 = vsub.f32 %v1554, %v1578
    %v1581 = vsub.f32 %v1555, %v1578
    %v1582 = vsub.f32 %v1556, %v1578
    %v1583 = vmul.f32 %v1579, %v1579
    %v1584 = vmul.f32 %v1580, %v1580
    %v1585 = vmul.f32 %v1581, %v1581
    %v1586 = vmul.f32 %v1582, %v1582
    %v1587 = vsel %vm221, %v1583, 0.0
    %v1588 = vsel %vm221, %v1584, 0.0
    %v1589 = vadd.f32 %v1587, %v1588
    %v1590 = vsel %vm221, %v1585, 0.0
    %v1591 = vadd.f32 %v1589, %v1590
    %v1592 = vsel %vm221, %v1586, 0.0
    %v1593 = vadd.f32 %v1591, %v1592
    %v1594 = vrot.slane %v1593, 4
    %v1595 = vadd.f32 %v1593, %v1594
    %v1596 = vrot.slane %v1595, 2
    %v1597 = vadd.f32 %v1595, %v1596
    %v1598 = vrot.slane %v1597, 1
    %v1599 = vadd.f32 %v1597, %v1598
    %v1600 = vmul.f32 %v1599, %v235
    %v1601 = vadd.f32 %v1600, 1e-05
    %v1602 = vrsqrt.pop %v1601
    %v1603 = vmul.f32 %v1579, %v1602
    %v1604 = vmul.f32 %v1580, %v1602
    %v1605 = vmul.f32 %v1581, %v1602
    %v1606 = vmul.f32 %v1582, %v1602
    %1608 = vset.pattern.permute.xlu0 0
    %1609 = vperm.xlu0 %1608, %v1557
    %v1610 = vpop.permute.xlu0 %1609
    %1613 = vset.pattern.permute.xlu0 0
    %1614 = vperm.xlu0 %1613, %v1558
    %v1615 = vpop.permute.xlu0 %1614
    %1618 = vset.pattern.permute.xlu0 0
    %1619 = vperm.xlu0 %1618, %v1559
    %v1620 = vpop.permute.xlu0 %1619
    %1623 = vset.pattern.permute.xlu0 0
    %1624 = vperm.xlu0 %1623, %v1560
    %v1625 = vpop.permute.xlu0 %1624
    %v1627 = vmul.f32 %v1603, %v1610
    %v1628 = vmul.f32 %v1604, %v1615
    %v1629 = vmul.f32 %v1605, %v1620
    %v1630 = vmul.f32 %v1606, %v1625
    %1632 = vset.pattern.permute.xlu0 0
    %1633 = vperm.xlu0 %1632, %v1561
    %v1634 = vpop.permute.xlu0 %1633
    %1637 = vset.pattern.permute.xlu0 0
    %1638 = vperm.xlu0 %1637, %v1562
    %v1639 = vpop.permute.xlu0 %1638
    %1642 = vset.pattern.permute.xlu0 0
    %1643 = vperm.xlu0 %1642, %v1563
    %v1644 = vpop.permute.xlu0 %1643
    %1647 = vset.pattern.permute.xlu0 0
    %1648 = vperm.xlu0 %1647, %v1564
    %v1649 = vpop.permute.xlu0 %1648
    %v1651 = vadd.f32 %v1627, %v1634
    %v1652 = vadd.f32 %v1628, %v1639
    %v1653 = vadd.f32 %v1629, %v1644
    %v1654 = vadd.f32 %v1630, %v1649
    %v1655 = vmax.f32 %v1651, 0.0
    %v1656 = vmax.f32 %v1652, 0.0
    %v1657 = vmax.f32 %v1653, 0.0
    %v1658 = vmax.f32 %v1654, 0.0
    %v1659 = vadd.f32 %v195, %v1655
    %v1660 = vadd.f32 %v200, %v1656
    %v1661 = vadd.f32 %v205, %v1657
    %v1662 = vadd.f32 %v210, %v1658
    %v1663 = vld [vmem:[%s13] sm:$0xff]
    %v1664 = vld [vmem:[%s13 + $0x8] sm:$0xff]
    %v1665 = vld [vmem:[%s13 + $0x10] sm:$0xff]
    %v1666 = vld [vmem:[%s13 + $0x18] sm:$0xff]
    %v1667 = vld [vmem:[%s14] sm:$0xff]
    %v1668 = vld [vmem:[%s14 + $0x8] sm:$0xff]
    %v1669 = vld [vmem:[%s14 + $0x10] sm:$0xff]
    %v1670 = vld [vmem:[%s14 + $0x18] sm:$0xff]
    %v1671 = vsel %vm221, %v1659, 0.0
    %v1672 = vsel %vm221, %v1660, 0.0
    %v1673 = vadd.f32 %v1671, %v1672
    %v1674 = vsel %vm221, %v1661, 0.0
    %v1675 = vadd.f32 %v1673, %v1674
    %v1676 = vsel %vm221, %v1662, 0.0
    %v1677 = vadd.f32 %v1675, %v1676
    %v1678 = vrot.slane %v1677, 4
    %v1679 = vadd.f32 %v1677, %v1678
    %v1680 = vrot.slane %v1679, 2
    %v1681 = vadd.f32 %v1679, %v1680
    %v1682 = vrot.slane %v1681, 1
    %v1683 = vadd.f32 %v1681, %v1682
    %v1684 = vmul.f32 %v1683, %v235
    %v1685 = vsub.f32 %v1659, %v1684
    %v1686 = vsub.f32 %v1660, %v1684
    %v1687 = vsub.f32 %v1661, %v1684
    %v1688 = vsub.f32 %v1662, %v1684
    %v1689 = vmul.f32 %v1685, %v1685
    %v1690 = vmul.f32 %v1686, %v1686
    %v1691 = vmul.f32 %v1687, %v1687
    %v1692 = vmul.f32 %v1688, %v1688
    %v1693 = vsel %vm221, %v1689, 0.0
    %v1694 = vsel %vm221, %v1690, 0.0
    %v1695 = vadd.f32 %v1693, %v1694
    %v1696 = vsel %vm221, %v1691, 0.0
    %v1697 = vadd.f32 %v1695, %v1696
    %v1698 = vsel %vm221, %v1692, 0.0
    %v1699 = vadd.f32 %v1697, %v1698
    %v1700 = vrot.slane %v1699, 4
    %v1701 = vadd.f32 %v1699, %v1700
    %v1702 = vrot.slane %v1701, 2
    %v1703 = vadd.f32 %v1701, %v1702
    %v1704 = vrot.slane %v1703, 1
    %v1705 = vadd.f32 %v1703, %v1704
    %v1706 = vmul.f32 %v1705, %v235
    %v1707 = vadd.f32 %v1706, 1e-05
    %v1708 = vrsqrt.pop %v1707
    %v1709 = vmul.f32 %v1685, %v1708
    %v1710 = vmul.f32 %v1686, %v1708
    %v1711 = vmul.f32 %v1687, %v1708
    %v1712 = vmul.f32 %v1688, %v1708
    %1714 = vset.pattern.permute.xlu0 0
    %1715 = vperm.xlu0 %1714, %v1663
    %v1716 = vpop.permute.xlu0 %1715
    %1719 = vset.pattern.permute.xlu0 0
    %1720 = vperm.xlu0 %1719, %v1664
    %v1721 = vpop.permute.xlu0 %1720
    %1724 = vset.pattern.permute.xlu0 0
    %1725 = vperm.xlu0 %1724, %v1665
    %v1726 = vpop.permute.xlu0 %1725
    %1729 = vset.pattern.permute.xlu0 0
    %1730 = vperm.xlu0 %1729, %v1666
    %v1731 = vpop.permute.xlu0 %1730
    %v1733 = vmul.f32 %v1709, %v1716
    %v1734 = vmul.f32 %v1710, %v1721
    %v1735 = vmul.f32 %v1711, %v1726
    %v1736 = vmul.f32 %v1712, %v1731
    %1738 = vset.pattern.permute.xlu0 0
    %1739 = vperm.xlu0 %1738, %v1667
    %v1740 = vpop.permute.xlu0 %1739
    %1743 = vset.pattern.permute.xlu0 0
    %1744 = vperm.xlu0 %1743, %v1668
    %v1745 = vpop.permute.xlu0 %1744
    %1748 = vset.pattern.permute.xlu0 0
    %1749 = vperm.xlu0 %1748, %v1669
    %v1750 = vpop.permute.xlu0 %1749
    %1753 = vset.pattern.permute.xlu0 0
    %1754 = vperm.xlu0 %1753, %v1670
    %v1755 = vpop.permute.xlu0 %1754
    %v1757 = vadd.f32 %v1733, %v1740
    %v1758 = vadd.f32 %v1734, %v1745
    %v1759 = vadd.f32 %v1735, %v1750
    %v1760 = vadd.f32 %v1736, %v1755
    %v1761 = vld [vmem:[%s15] sm:$0xff]
    %v1762 = vld [vmem:[%s15 + $0x8] sm:$0xff]
    %v1763 = vld [vmem:[%s15 + $0x10] sm:$0xff]
    %v1764 = vld [vmem:[%s15 + $0x18] sm:$0xff]
    %v1765 = vld [vmem:[%s15 + $0x20] sm:$0xff]
    %v1766 = vld [vmem:[%s15 + $0x28] sm:$0xff]
    %v1767 = vld [vmem:[%s15 + $0x30] sm:$0xff]
    %v1768 = vld [vmem:[%s15 + $0x38] sm:$0xff]
    %v1769 = vld [vmem:[%s15 + $0x40] sm:$0xff]
    %v1770 = vld [vmem:[%s15 + $0x48] sm:$0xff]
    %v1771 = vld [vmem:[%s15 + $0x50] sm:$0xff]
    %v1772 = vld [vmem:[%s15 + $0x58] sm:$0xff]
    %v1773 = vld [vmem:[%s16] sm:$0xff]
    %v1774 = vld [vmem:[%s16 + $0x8] sm:$0xff]
    %v1775 = vld [vmem:[%s16 + $0x10] sm:$0xff]
    %v1776 = vld [vmem:[%s16 + $0x18] sm:$0xff]
    %v1777 = vld [vmem:[%s16 + $0x20] sm:$0xff]
    %v1778 = vld [vmem:[%s16 + $0x28] sm:$0xff]
    %v1779 = vld [vmem:[%s16 + $0x30] sm:$0xff]
    %v1780 = vld [vmem:[%s16 + $0x38] sm:$0xff]
    %v1781 = vld [vmem:[%s16 + $0x40] sm:$0xff]
    %v1782 = vld [vmem:[%s16 + $0x48] sm:$0xff]
    %v1783 = vld [vmem:[%s16 + $0x50] sm:$0xff]
    %v1784 = vld [vmem:[%s16 + $0x58] sm:$0xff]
    %1786 = vset.pattern.permute.xlu0 0
    %1787 = vperm.xlu0 %1786, %v1773
    %v1788 = vpop.permute.xlu0 %1787
    %1791 = vset.pattern.permute.xlu0 0
    %1792 = vperm.xlu0 %1791, %v1774
    %v1793 = vpop.permute.xlu0 %1792
    %1796 = vset.pattern.permute.xlu0 0
    %1797 = vperm.xlu0 %1796, %v1775
    %v1798 = vpop.permute.xlu0 %1797
    %1801 = vset.pattern.permute.xlu0 0
    %1802 = vperm.xlu0 %1801, %v1776
    %v1803 = vpop.permute.xlu0 %1802
    %1806 = vset.pattern.permute.xlu0 0
    %1807 = vperm.xlu0 %1806, %v1777
    %v1808 = vpop.permute.xlu0 %1807
    %1811 = vset.pattern.permute.xlu0 0
    %1812 = vperm.xlu0 %1811, %v1778
    %v1813 = vpop.permute.xlu0 %1812
    %1816 = vset.pattern.permute.xlu0 0
    %1817 = vperm.xlu0 %1816, %v1779
    %v1818 = vpop.permute.xlu0 %1817
    %1821 = vset.pattern.permute.xlu0 0
    %1822 = vperm.xlu0 %1821, %v1780
    %v1823 = vpop.permute.xlu0 %1822
    %1826 = vset.pattern.permute.xlu0 0
    %1827 = vperm.xlu0 %1826, %v1781
    %v1828 = vpop.permute.xlu0 %1827
    %1831 = vset.pattern.permute.xlu0 0
    %1832 = vperm.xlu0 %1831, %v1782
    %v1833 = vpop.permute.xlu0 %1832
    %1836 = vset.pattern.permute.xlu0 0
    %1837 = vperm.xlu0 %1836, %v1783
    %v1838 = vpop.permute.xlu0 %1837
    %1841 = vset.pattern.permute.xlu0 0
    %1842 = vperm.xlu0 %1841, %v1784
    %v1843 = vpop.permute.xlu0 %1842
    %v1846 = vsel %vm397, %v1761, 0
    %v1849 = vsel %vm397, %v1762, 0
    %v1852 = vsel %vm397, %v1763, 0
    %v1855 = vsel %vm397, %v1764, 0
    %v1858 = vsel %vm397, %v1765, 0
    %v1861 = vsel %vm397, %v1766, 0
    %v1864 = vsel %vm397, %v1767, 0
    %v1867 = vsel %vm397, %v1768, 0
    %v1870 = vsel %vm397, %v1769, 0
    %v1873 = vsel %vm397, %v1770, 0
    %v1876 = vsel %vm397, %v1771, 0
    %v1879 = vsel %vm397, %v1772, 0
    %1881 = vmatprep.subr.mxu0 0.0
    %1882 = vmatpush1.msra.mxu0 0.0
    %1883 = vmatprep.subr.mxu0 0.0
    %1884 = vmatpush1.msra.mxu0 0.0
    %1885 = vmatprep.subr.mxu0 0.0
    %1886 = vmatpush1.msra.mxu0 0.0
    %1887 = vmatprep.subr.mxu0 0.0
    %1888 = vmatpush1.msra.mxu0 0.0
    %1889 = vmatprep.subr.mxu0 0.0
    %1890 = vmatpush1.msra.mxu0 0.0
    %1891 = vmatprep.subr.mxu0 0.0
    %1892 = vmatpush1.msra.mxu0 0.0
    %1893 = vmatprep.subr.mxu0 0.0
    %1894 = vmatpush1.msra.mxu0 0.0
    %1895 = vmatprep.subr.mxu0 0.0
    %1896 = vmatpush1.msra.mxu0 0.0
    %1897 = vmatprep.subr.mxu0 0.0
    %1898 = vmatpush1.msra.mxu0 0.0
    %1899 = vmatprep.subr.mxu0 0.0
    %1900 = vmatpush1.msra.mxu0 0.0
    %1901 = vmatprep.subr.mxu0 0.0
    %1902 = vmatpush1.msra.mxu0 0.0
    %1903 = vmatprep.subr.mxu0 0.0
    %1904 = vmatpush1.msra.mxu0 0.0
    %1905 = vmatprep.subr.mxu0 0.0
    %1906 = vmatpush1.msra.mxu0 %v1760
    %1907 = vmatprep.subr.mxu0 0.0
    %1908 = vmatpush1.msra.mxu0 %v1759
    %1909 = vmatprep.subr.mxu0 0.0
    %1910 = vmatpush1.msra.mxu0 %v1758
    %1911 = vmatprep.subr.mxu0 0.0
    %1912 = vmatpush1.msra.mxu0 %v1757
    %1913 = vmatprep.subr.mxu0 0.0
    %1914 = vmatpush2.msra.mxu0 0.0
    %1915 = vmatprep.subr.mxu0 0.0
    %1916 = vmatpush2.msra.mxu0 0.0
    %1917 = vmatprep.subr.mxu0 0.0
    %1918 = vmatpush2.msra.mxu0 0.0
    %1919 = vmatprep.subr.mxu0 0.0
    %1920 = vmatpush2.msra.mxu0 0.0
    %1921 = vmatprep.subr.mxu0 0.0
    %1922 = vmatpush2.msra.mxu0 0.0
    %1923 = vmatprep.subr.mxu0 0.0
    %1924 = vmatpush2.msra.mxu0 0.0
    %1925 = vmatprep.subr.mxu0 0.0
    %1926 = vmatpush2.msra.mxu0 0.0
    %1927 = vmatprep.subr.mxu0 0.0
    %1928 = vmatpush2.msra.mxu0 0.0
    %1929 = vmatprep.subr.mxu0 0.0
    %1930 = vmatpush2.msra.mxu0 0.0
    %1931 = vmatprep.subr.mxu0 0.0
    %1932 = vmatpush2.msra.mxu0 0.0
    %1933 = vmatprep.subr.mxu0 0.0
    %1934 = vmatpush2.msra.mxu0 0.0
    %1935 = vmatprep.subr.mxu0 0.0
    %1936 = vmatpush2.msra.mxu0 0.0
    %1937 = vmatprep.subr.mxu0 0.0
    %1938 = vmatpush2.msra.mxu0 0.0
    %1939 = vmatprep.subr.mxu0 0.0
    %1940 = vmatpush2.msra.mxu0 0.0
    %1941 = vmatprep.subr.mxu0 0.0
    %1942 = vmatpush2.msra.mxu0 0.0
    %1943 = vmatprep.subr.mxu0 0.0
    %1944 = vmatpush2.msra.mxu0 0.0
    %1945 = vmatprep.mubr.f32.mxu0 0.0
    %1946 = vmatmul.mubr.f32.gmra.mxu0 %v1846
    %v1947 = vpop.f32.mrf.mxu0
    %v1948 = vadd.f32 %v1788, %v1947
    %v1949 = vpop.f32.mrf.mxu0
    %1950 = vmatprep.mubr.f32.mxu0 0.0
    %1951 = vmatmul.mubr.f32.gmra.mxu0 %v1849
    %v1952 = vpop.f32.mrf.mxu0
    %v1953 = vadd.f32 %v1793, %v1952
    %v1954 = vpop.f32.mrf.mxu0
    %1955 = vmatprep.mubr.f32.mxu0 0.0
    %1956 = vmatmul.mubr.f32.gmra.mxu0 %v1852
    %v1957 = vpop.f32.mrf.mxu0
    %v1958 = vadd.f32 %v1798, %v1957
    %v1959 = vpop.f32.mrf.mxu0
    %1960 = vmatprep.mubr.f32.mxu0 0.0
    %1961 = vmatmul.mubr.f32.gmra.mxu0 %v1855
    %v1962 = vpop.f32.mrf.mxu0
    %v1963 = vadd.f32 %v1803, %v1962
    %v1964 = vpop.f32.mrf.mxu0
    %1965 = vmatprep.mubr.f32.mxu0 0.0
    %1966 = vmatmul.mubr.f32.gmra.mxu0 %v1858
    %v1967 = vpop.f32.mrf.mxu0
    %v1968 = vadd.f32 %v1808, %v1967
    %v1969 = vpop.f32.mrf.mxu0
    %1970 = vmatprep.mubr.f32.mxu0 0.0
    %1971 = vmatmul.mubr.f32.gmra.mxu0 %v1861
    %v1972 = vpop.f32.mrf.mxu0
    %v1973 = vadd.f32 %v1813, %v1972
    %v1974 = vpop.f32.mrf.mxu0
    %1975 = vmatprep.mubr.f32.mxu0 0.0
    %1976 = vmatmul.mubr.f32.gmra.mxu0 %v1864
    %v1977 = vpop.f32.mrf.mxu0
    %v1978 = vadd.f32 %v1818, %v1977
    %v1979 = vpop.f32.mrf.mxu0
    %1980 = vmatprep.mubr.f32.mxu0 0.0
    %1981 = vmatmul.mubr.f32.gmra.mxu0 %v1867
    %v1982 = vpop.f32.mrf.mxu0
    %v1983 = vadd.f32 %v1823, %v1982
    %v1984 = vpop.f32.mrf.mxu0
    %1985 = vmatprep.mubr.f32.mxu0 0.0
    %1986 = vmatmul.mubr.f32.gmra.mxu0 %v1870
    %v1987 = vpop.f32.mrf.mxu0
    %v1988 = vadd.f32 %v1828, %v1987
    %v1989 = vpop.f32.mrf.mxu0
    %1990 = vmatprep.mubr.f32.mxu0 0.0
    %1991 = vmatmul.mubr.f32.gmra.mxu0 %v1873
    %v1992 = vpop.f32.mrf.mxu0
    %v1993 = vadd.f32 %v1833, %v1992
    %v1994 = vpop.f32.mrf.mxu0
    %1995 = vmatprep.mubr.f32.mxu0 0.0
    %1996 = vmatmul.mubr.f32.gmra.mxu0 %v1876
    %v1997 = vpop.f32.mrf.mxu0
    %v1998 = vadd.f32 %v1838, %v1997
    %v1999 = vpop.f32.mrf.mxu0
    %2000 = vmatprep.mubr.f32.mxu0 0.0
    %2001 = vmatmul.mubr.f32.gmra.mxu0 %v1879
    %v2002 = vpop.f32.mrf.mxu0
    %v2003 = vadd.f32 %v1843, %v2002
    %v2004 = vpop.f32.mrf.mxu0
    %2005 = vdwg.mxu0
    %2006 = vxpose.xlu0.b32.start [1/16] %v1948, 128
    %2007 = vxpose.xlu0.b32.cont [2/16] 0.0, 128
    %2008 = vxpose.xlu0.b32.cont [3/16] 0.0, 128
    %2009 = vxpose.xlu0.b32.cont [4/16] 0.0, 128
    %2010 = vxpose.xlu0.b32.cont [5/16] 0.0, 128
    %2011 = vxpose.xlu0.b32.cont [6/16] 0.0, 128
    %2012 = vxpose.xlu0.b32.cont [7/16] 0.0, 128
    %2013 = vxpose.xlu0.b32.cont [8/16] 0.0, 128
    %2014 = vxpose.xlu0.b32.cont [9/16] 0.0, 128
    %2015 = vxpose.xlu0.b32.cont [10/16] 0.0, 128
    %2016 = vxpose.xlu0.b32.cont [11/16] 0.0, 128
    %2017 = vxpose.xlu0.b32.cont [12/16] 0.0, 128
    %2018 = vxpose.xlu0.b32.cont [13/16] 0.0, 128
    %2019 = vxpose.xlu0.b32.cont [14/16] 0.0, 128
    %2020 = vxpose.xlu0.b32.cont [15/16] 0.0, 128
    %2021 = vxpose.xlu0.b32.end [16/16] 0.0, 128
    %v2022 = vpop.trf.xlu0
    %v2023 = vpop.trf.xlu0
    %v2024 = vpop.trf.xlu0
    %v2025 = vpop.trf.xlu0
    %v2026 = vpop.trf.xlu0
    %v2027 = vpop.trf.xlu0
    %v2028 = vpop.trf.xlu0
    %v2029 = vpop.trf.xlu0
    %v2030 = vpop.trf.xlu0
    %v2031 = vpop.trf.xlu0
    %v2032 = vpop.trf.xlu0
    %v2033 = vpop.trf.xlu0
    %v2034 = vpop.trf.xlu0
    %v2035 = vpop.trf.xlu0
    %v2036 = vpop.trf.xlu0
    %v2037 = vpop.trf.xlu0
    %v2039 = vsel %vm221, %v2022, 0
    %2041 = vmatprep.subr.mxu0 0.0
    %2042 = vmatpush1.msra.mxu0 0.0
    %2043 = vmatprep.subr.mxu0 0.0
    %2044 = vmatpush1.msra.mxu0 0.0
    %2045 = vmatprep.subr.mxu0 0.0
    %2046 = vmatpush1.msra.mxu0 0.0
    %2047 = vmatprep.subr.mxu0 0.0
    %2048 = vmatpush1.msra.mxu0 0.0
    %2049 = vmatprep.subr.mxu0 0.0
    %2050 = vmatpush1.msra.mxu0 0.0
    %2051 = vmatprep.subr.mxu0 0.0
    %2052 = vmatpush1.msra.mxu0 0.0
    %2053 = vmatprep.subr.mxu0 0.0
    %2054 = vmatpush1.msra.mxu0 0.0
    %2055 = vmatprep.subr.mxu0 0.0
    %2056 = vmatpush1.msra.mxu0 0.0
    %2057 = vmatprep.subr.mxu0 0.0
    %2058 = vmatpush1.msra.mxu0 0.0
    %2059 = vmatprep.subr.mxu0 0.0
    %2060 = vmatpush1.msra.mxu0 0.0
    %2061 = vmatprep.subr.mxu0 0.0
    %2062 = vmatpush1.msra.mxu0 0.0
    %2063 = vmatprep.subr.mxu0 0.0
    %2064 = vmatpush1.msra.mxu0 0.0
    %2065 = vmatprep.subr.mxu0 0.0
    %2066 = vmatpush1.msra.mxu0 0.0
    %2067 = vmatprep.subr.mxu0 0.0
    %2068 = vmatpush1.msra.mxu0 0.0
    %2069 = vmatprep.subr.mxu0 0.0
    %2070 = vmatpush1.msra.mxu0 0.0
    %2071 = vmatprep.subr.mxu0 0.0
    %2072 = vmatpush1.msra.mxu0 %v1968
    %2073 = vmatprep.subr.mxu0 0.0
    %2074 = vmatpush2.msra.mxu0 0.0
    %2075 = vmatprep.subr.mxu0 0.0
    %2076 = vmatpush2.msra.mxu0 0.0
    %2077 = vmatprep.subr.mxu0 0.0
    %2078 = vmatpush2.msra.mxu0 0.0
    %2079 = vmatprep.subr.mxu0 0.0
    %2080 = vmatpush2.msra.mxu0 0.0
    %2081 = vmatprep.subr.mxu0 0.0
    %2082 = vmatpush2.msra.mxu0 0.0
    %2083 = vmatprep.subr.mxu0 0.0
    %2084 = vmatpush2.msra.mxu0 0.0
    %2085 = vmatprep.subr.mxu0 0.0
    %2086 = vmatpush2.msra.mxu0 0.0
    %2087 = vmatprep.subr.mxu0 0.0
    %2088 = vmatpush2.msra.mxu0 0.0
    %2089 = vmatprep.subr.mxu0 0.0
    %2090 = vmatpush2.msra.mxu0 0.0
    %2091 = vmatprep.subr.mxu0 0.0
    %2092 = vmatpush2.msra.mxu0 0.0
    %2093 = vmatprep.subr.mxu0 0.0
    %2094 = vmatpush2.msra.mxu0 0.0
    %2095 = vmatprep.subr.mxu0 0.0
    %2096 = vmatpush2.msra.mxu0 0.0
    %2097 = vmatprep.subr.mxu0 0.0
    %2098 = vmatpush2.msra.mxu0 0.0
    %2099 = vmatprep.subr.mxu0 0.0
    %2100 = vmatpush2.msra.mxu0 0.0
    %2101 = vmatprep.subr.mxu0 0.0
    %2102 = vmatpush2.msra.mxu0 0.0
    %2103 = vmatprep.subr.mxu0 0.0
    %2104 = vmatpush2.msra.mxu0 0.0
    %2105 = vmatprep.mubr.f32.mxu0 0.0
    %2106 = vmatmul.mubr.f32.gmra.mxu0 %v2039
    %v2107 = vpop.f32.mrf.mxu0
    %v2108 = vadd.f32 %v84, %v2107
    %v2109 = vpop.f32.mrf.mxu0
    %2110 = vdwg.mxu0
    %v2111 = vsel %vm221, %v2108, -inf
    %2112 = vmax.xlane.f32.xlu0 %v2111
    %v2113 = vpop.xlane.xlu0 %2112
    %v2114 = vsub.f32 %v2108, %v2113
    %v2115 = vmul.f32 %v2114, 1.442695
    %v2116 = vpow.pop %v2115
    %v2117 = vsel %vm221, %v2116, 0.0
    %2118 = vadd.xlane.f32.xlu0 %v2117
    %v2119 = vpop.xlane.xlu0 %2118
    %v2120 = vrcp.pop %v2119
    %v2121 = vmul.f32 %v2116, %v2120
    %v2123 = vsel %vm221, %v1988, 0
    %v2126 = vsel %vm221, %v2121, 0
    %2128 = vmatprep.subr.mxu0 0.0
    %2129 = vmatpush1.xpose.msra.mxu0 0.0
    %2130 = vmatprep.subr.mxu0 0.0
    %2131 = vmatpush1.xpose.msra.mxu0 0.0
    %2132 = vmatprep.subr.mxu0 0.0
    %2133 = vmatpush1.xpose.msra.mxu0 0.0
    %2134 = vmatprep.subr.mxu0 0.0
    %2135 = vmatpush1.xpose.msra.mxu0 0.0
    %2136 = vmatprep.subr.mxu0 0.0
    %2137 = vmatpush1.xpose.msra.mxu0 0.0
    %2138 = vmatprep.subr.mxu0 0.0
    %2139 = vmatpush1.xpose.msra.mxu0 0.0
    %2140 = vmatprep.subr.mxu0 0.0
    %2141 = vmatpush1.xpose.msra.mxu0 0.0
    %2142 = vmatprep.subr.mxu0 0.0
    %2143 = vmatpush1.xpose.msra.mxu0 0.0
    %2144 = vmatprep.subr.mxu0 0.0
    %2145 = vmatpush1.xpose.msra.mxu0 0.0
    %2146 = vmatprep.subr.mxu0 0.0
    %2147 = vmatpush1.xpose.msra.mxu0 0.0
    %2148 = vmatprep.subr.mxu0 0.0
    %2149 = vmatpush1.xpose.msra.mxu0 0.0
    %2150 = vmatprep.subr.mxu0 0.0
    %2151 = vmatpush1.xpose.msra.mxu0 0.0
    %2152 = vmatprep.subr.mxu0 0.0
    %2153 = vmatpush1.xpose.msra.mxu0 0.0
    %2154 = vmatprep.subr.mxu0 0.0
    %2155 = vmatpush1.xpose.msra.mxu0 0.0
    %2156 = vmatprep.subr.mxu0 0.0
    %2157 = vmatpush1.xpose.msra.mxu0 0.0
    %2158 = vmatprep.subr.mxu0 0.0
    %2159 = vmatpush1.xpose.msra.mxu0 %v2126
    %2160 = vmatprep.subr.mxu0 0.0
    %2161 = vmatpush2.xpose.msra.mxu0 0.0
    %2162 = vmatprep.subr.mxu0 0.0
    %2163 = vmatpush2.xpose.msra.mxu0 0.0
    %2164 = vmatprep.subr.mxu0 0.0
    %2165 = vmatpush2.xpose.msra.mxu0 0.0
    %2166 = vmatprep.subr.mxu0 0.0
    %2167 = vmatpush2.xpose.msra.mxu0 0.0
    %2168 = vmatprep.subr.mxu0 0.0
    %2169 = vmatpush2.xpose.msra.mxu0 0.0
    %2170 = vmatprep.subr.mxu0 0.0
    %2171 = vmatpush2.xpose.msra.mxu0 0.0
    %2172 = vmatprep.subr.mxu0 0.0
    %2173 = vmatpush2.xpose.msra.mxu0 0.0
    %2174 = vmatprep.subr.mxu0 0.0
    %2175 = vmatpush2.xpose.msra.mxu0 0.0
    %2176 = vmatprep.subr.mxu0 0.0
    %2177 = vmatpush2.xpose.msra.mxu0 0.0
    %2178 = vmatprep.subr.mxu0 0.0
    %2179 = vmatpush2.xpose.msra.mxu0 0.0
    %2180 = vmatprep.subr.mxu0 0.0
    %2181 = vmatpush2.xpose.msra.mxu0 0.0
    %2182 = vmatprep.subr.mxu0 0.0
    %2183 = vmatpush2.xpose.msra.mxu0 0.0
    %2184 = vmatprep.subr.mxu0 0.0
    %2185 = vmatpush2.xpose.msra.mxu0 0.0
    %2186 = vmatprep.subr.mxu0 0.0
    %2187 = vmatpush2.xpose.msra.mxu0 0.0
    %2188 = vmatprep.subr.mxu0 0.0
    %2189 = vmatpush2.xpose.msra.mxu0 0.0
    %2190 = vmatprep.subr.mxu0 0.0
    %2191 = vmatpush2.xpose.msra.mxu0 0.0
    %2192 = vmatprep.mubr.f32.mxu0 0.0
    %2193 = vmatmul.mubr.f32.gmra.mxu0 %v2123
    %v2194 = vpop.f32.mrf.mxu0
    %v2195 = vadd.f32 0.0, %v2194
    %v2196 = vpop.f32.mrf.mxu0
    %2197 = vdwg.mxu0
    %2198 = vxpose.xlu0.b32.start [1/16] %v1953, 128
    %2199 = vxpose.xlu0.b32.cont [2/16] 0.0, 128
    %2200 = vxpose.xlu0.b32.cont [3/16] 0.0, 128
    %2201 = vxpose.xlu0.b32.cont [4/16] 0.0, 128
    %2202 = vxpose.xlu0.b32.cont [5/16] 0.0, 128
    %2203 = vxpose.xlu0.b32.cont [6/16] 0.0, 128
    %2204 = vxpose.xlu0.b32.cont [7/16] 0.0, 128
    %2205 = vxpose.xlu0.b32.cont [8/16] 0.0, 128
    %2206 = vxpose.xlu0.b32.cont [9/16] 0.0, 128
    %2207 = vxpose.xlu0.b32.cont [10/16] 0.0, 128
    %2208 = vxpose.xlu0.b32.cont [11/16] 0.0, 128
    %2209 = vxpose.xlu0.b32.cont [12/16] 0.0, 128
    %2210 = vxpose.xlu0.b32.cont [13/16] 0.0, 128
    %2211 = vxpose.xlu0.b32.cont [14/16] 0.0, 128
    %2212 = vxpose.xlu0.b32.cont [15/16] 0.0, 128
    %2213 = vxpose.xlu0.b32.end [16/16] 0.0, 128
    %v2214 = vpop.trf.xlu0
    %v2215 = vpop.trf.xlu0
    %v2216 = vpop.trf.xlu0
    %v2217 = vpop.trf.xlu0
    %v2218 = vpop.trf.xlu0
    %v2219 = vpop.trf.xlu0
    %v2220 = vpop.trf.xlu0
    %v2221 = vpop.trf.xlu0
    %v2222 = vpop.trf.xlu0
    %v2223 = vpop.trf.xlu0
    %v2224 = vpop.trf.xlu0
    %v2225 = vpop.trf.xlu0
    %v2226 = vpop.trf.xlu0
    %v2227 = vpop.trf.xlu0
    %v2228 = vpop.trf.xlu0
    %v2229 = vpop.trf.xlu0
    %v2231 = vsel %vm221, %v2214, 0
    %2233 = vmatprep.subr.mxu0 0.0
    %2234 = vmatpush1.msra.mxu0 0.0
    %2235 = vmatprep.subr.mxu0 0.0
    %2236 = vmatpush1.msra.mxu0 0.0
    %2237 = vmatprep.subr.mxu0 0.0
    %2238 = vmatpush1.msra.mxu0 0.0
    %2239 = vmatprep.subr.mxu0 0.0
    %2240 = vmatpush1.msra.mxu0 0.0
    %2241 = vmatprep.subr.mxu0 0.0
    %2242 = vmatpush1.msra.mxu0 0.0
    %2243 = vmatprep.subr.mxu0 0.0
    %2244 = vmatpush1.msra.mxu0 0.0
    %2245 = vmatprep.subr.mxu0 0.0
    %2246 = vmatpush1.msra.mxu0 0.0
    %2247 = vmatprep.subr.mxu0 0.0
    %2248 = vmatpush1.msra.mxu0 0.0
    %2249 = vmatprep.subr.mxu0 0.0
    %2250 = vmatpush1.msra.mxu0 0.0
    %2251 = vmatprep.subr.mxu0 0.0
    %2252 = vmatpush1.msra.mxu0 0.0
    %2253 = vmatprep.subr.mxu0 0.0
    %2254 = vmatpush1.msra.mxu0 0.0
    %2255 = vmatprep.subr.mxu0 0.0
    %2256 = vmatpush1.msra.mxu0 0.0
    %2257 = vmatprep.subr.mxu0 0.0
    %2258 = vmatpush1.msra.mxu0 0.0
    %2259 = vmatprep.subr.mxu0 0.0
    %2260 = vmatpush1.msra.mxu0 0.0
    %2261 = vmatprep.subr.mxu0 0.0
    %2262 = vmatpush1.msra.mxu0 0.0
    %2263 = vmatprep.subr.mxu0 0.0
    %2264 = vmatpush1.msra.mxu0 %v1973
    %2265 = vmatprep.subr.mxu0 0.0
    %2266 = vmatpush2.msra.mxu0 0.0
    %2267 = vmatprep.subr.mxu0 0.0
    %2268 = vmatpush2.msra.mxu0 0.0
    %2269 = vmatprep.subr.mxu0 0.0
    %2270 = vmatpush2.msra.mxu0 0.0
    %2271 = vmatprep.subr.mxu0 0.0
    %2272 = vmatpush2.msra.mxu0 0.0
    %2273 = vmatprep.subr.mxu0 0.0
    %2274 = vmatpush2.msra.mxu0 0.0
    %2275 = vmatprep.subr.mxu0 0.0
    %2276 = vmatpush2.msra.mxu0 0.0
    %2277 = vmatprep.subr.mxu0 0.0
    %2278 = vmatpush2.msra.mxu0 0.0
    %2279 = vmatprep.subr.mxu0 0.0
    %2280 = vmatpush2.msra.mxu0 0.0
    %2281 = vmatprep.subr.mxu0 0.0
    %2282 = vmatpush2.msra.mxu0 0.0
    %2283 = vmatprep.subr.mxu0 0.0
    %2284 = vmatpush2.msra.mxu0 0.0
    %2285 = vmatprep.subr.mxu0 0.0
    %2286 = vmatpush2.msra.mxu0 0.0
    %2287 = vmatprep.subr.mxu0 0.0
    %2288 = vmatpush2.msra.mxu0 0.0
    %2289 = vmatprep.subr.mxu0 0.0
    %2290 = vmatpush2.msra.mxu0 0.0
    %2291 = vmatprep.subr.mxu0 0.0
    %2292 = vmatpush2.msra.mxu0 0.0
    %2293 = vmatprep.subr.mxu0 0.0
    %2294 = vmatpush2.msra.mxu0 0.0
    %2295 = vmatprep.subr.mxu0 0.0
    %2296 = vmatpush2.msra.mxu0 0.0
    %2297 = vmatprep.mubr.f32.mxu0 0.0
    %2298 = vmatmul.mubr.f32.gmra.mxu0 %v2231
    %v2299 = vpop.f32.mrf.mxu0
    %v2300 = vadd.f32 %v84, %v2299
    %v2301 = vpop.f32.mrf.mxu0
    %2302 = vdwg.mxu0
    %v2303 = vsel %vm221, %v2300, -inf
    %2304 = vmax.xlane.f32.xlu0 %v2303
    %v2305 = vpop.xlane.xlu0 %2304
    %v2306 = vsub.f32 %v2300, %v2305
    %v2307 = vmul.f32 %v2306, 1.442695
    %v2308 = vpow.pop %v2307
    %v2309 = vsel %vm221, %v2308, 0.0
    %2310 = vadd.xlane.f32.xlu0 %v2309
    %v2311 = vpop.xlane.xlu0 %2310
    %v2312 = vrcp.pop %v2311
    %v2313 = vmul.f32 %v2308, %v2312
    %v2315 = vsel %vm221, %v1993, 0
    %v2318 = vsel %vm221, %v2313, 0
    %2320 = vmatprep.subr.mxu0 0.0
    %2321 = vmatpush1.xpose.msra.mxu0 0.0
    %2322 = vmatprep.subr.mxu0 0.0
    %2323 = vmatpush1.xpose.msra.mxu0 0.0
    %2324 = vmatprep.subr.mxu0 0.0
    %2325 = vmatpush1.xpose.msra.mxu0 0.0
    %2326 = vmatprep.subr.mxu0 0.0
    %2327 = vmatpush1.xpose.msra.mxu0 0.0
    %2328 = vmatprep.subr.mxu0 0.0
    %2329 = vmatpush1.xpose.msra.mxu0 0.0
    %2330 = vmatprep.subr.mxu0 0.0
    %2331 = vmatpush1.xpose.msra.mxu0 0.0
    %2332 = vmatprep.subr.mxu0 0.0
    %2333 = vmatpush1.xpose.msra.mxu0 0.0
    %2334 = vmatprep.subr.mxu0 0.0
    %2335 = vmatpush1.xpose.msra.mxu0 0.0
    %2336 = vmatprep.subr.mxu0 0.0
    %2337 = vmatpush1.xpose.msra.mxu0 0.0
    %2338 = vmatprep.subr.mxu0 0.0
    %2339 = vmatpush1.xpose.msra.mxu0 0.0
    %2340 = vmatprep.subr.mxu0 0.0
    %2341 = vmatpush1.xpose.msra.mxu0 0.0
    %2342 = vmatprep.subr.mxu0 0.0
    %2343 = vmatpush1.xpose.msra.mxu0 0.0
    %2344 = vmatprep.subr.mxu0 0.0
    %2345 = vmatpush1.xpose.msra.mxu0 0.0
    %2346 = vmatprep.subr.mxu0 0.0
    %2347 = vmatpush1.xpose.msra.mxu0 0.0
    %2348 = vmatprep.subr.mxu0 0.0
    %2349 = vmatpush1.xpose.msra.mxu0 0.0
    %2350 = vmatprep.subr.mxu0 0.0
    %2351 = vmatpush1.xpose.msra.mxu0 %v2318
    %2352 = vmatprep.subr.mxu0 0.0
    %2353 = vmatpush2.xpose.msra.mxu0 0.0
    %2354 = vmatprep.subr.mxu0 0.0
    %2355 = vmatpush2.xpose.msra.mxu0 0.0
    %2356 = vmatprep.subr.mxu0 0.0
    %2357 = vmatpush2.xpose.msra.mxu0 0.0
    %2358 = vmatprep.subr.mxu0 0.0
    %2359 = vmatpush2.xpose.msra.mxu0 0.0
    %2360 = vmatprep.subr.mxu0 0.0
    %2361 = vmatpush2.xpose.msra.mxu0 0.0
    %2362 = vmatprep.subr.mxu0 0.0
    %2363 = vmatpush2.xpose.msra.mxu0 0.0
    %2364 = vmatprep.subr.mxu0 0.0
    %2365 = vmatpush2.xpose.msra.mxu0 0.0
    %2366 = vmatprep.subr.mxu0 0.0
    %2367 = vmatpush2.xpose.msra.mxu0 0.0
    %2368 = vmatprep.subr.mxu0 0.0
    %2369 = vmatpush2.xpose.msra.mxu0 0.0
    %2370 = vmatprep.subr.mxu0 0.0
    %2371 = vmatpush2.xpose.msra.mxu0 0.0
    %2372 = vmatprep.subr.mxu0 0.0
    %2373 = vmatpush2.xpose.msra.mxu0 0.0
    %2374 = vmatprep.subr.mxu0 0.0
    %2375 = vmatpush2.xpose.msra.mxu0 0.0
    %2376 = vmatprep.subr.mxu0 0.0
    %2377 = vmatpush2.xpose.msra.mxu0 0.0
    %2378 = vmatprep.subr.mxu0 0.0
    %2379 = vmatpush2.xpose.msra.mxu0 0.0
    %2380 = vmatprep.subr.mxu0 0.0
    %2381 = vmatpush2.xpose.msra.mxu0 0.0
    %2382 = vmatprep.subr.mxu0 0.0
    %2383 = vmatpush2.xpose.msra.mxu0 0.0
    %2384 = vmatprep.mubr.f32.mxu0 0.0
    %2385 = vmatmul.mubr.f32.gmra.mxu0 %v2315
    %v2386 = vpop.f32.mrf.mxu0
    %v2387 = vadd.f32 0.0, %v2386
    %v2388 = vpop.f32.mrf.mxu0
    %2389 = vdwg.mxu0
    %2390 = vxpose.xlu0.b32.start [1/16] %v1958, 128
    %2391 = vxpose.xlu0.b32.cont [2/16] 0.0, 128
    %2392 = vxpose.xlu0.b32.cont [3/16] 0.0, 128
    %2393 = vxpose.xlu0.b32.cont [4/16] 0.0, 128
    %2394 = vxpose.xlu0.b32.cont [5/16] 0.0, 128
    %2395 = vxpose.xlu0.b32.cont [6/16] 0.0, 128
    %2396 = vxpose.xlu0.b32.cont [7/16] 0.0, 128
    %2397 = vxpose.xlu0.b32.cont [8/16] 0.0, 128
    %2398 = vxpose.xlu0.b32.cont [9/16] 0.0, 128
    %2399 = vxpose.xlu0.b32.cont [10/16] 0.0, 128
    %2400 = vxpose.xlu0.b32.cont [11/16] 0.0, 128
    %2401 = vxpose.xlu0.b32.cont [12/16] 0.0, 128
    %2402 = vxpose.xlu0.b32.cont [13/16] 0.0, 128
    %2403 = vxpose.xlu0.b32.cont [14/16] 0.0, 128
    %2404 = vxpose.xlu0.b32.cont [15/16] 0.0, 128
    %2405 = vxpose.xlu0.b32.end [16/16] 0.0, 128
    %v2406 = vpop.trf.xlu0
    %v2407 = vpop.trf.xlu0
    %v2408 = vpop.trf.xlu0
    %v2409 = vpop.trf.xlu0
    %v2410 = vpop.trf.xlu0
    %v2411 = vpop.trf.xlu0
    %v2412 = vpop.trf.xlu0
    %v2413 = vpop.trf.xlu0
    %v2414 = vpop.trf.xlu0
    %v2415 = vpop.trf.xlu0
    %v2416 = vpop.trf.xlu0
    %v2417 = vpop.trf.xlu0
    %v2418 = vpop.trf.xlu0
    %v2419 = vpop.trf.xlu0
    %v2420 = vpop.trf.xlu0
    %v2421 = vpop.trf.xlu0
    %v2423 = vsel %vm221, %v2406, 0
    %2425 = vmatprep.subr.mxu0 0.0
    %2426 = vmatpush1.msra.mxu0 0.0
    %2427 = vmatprep.subr.mxu0 0.0
    %2428 = vmatpush1.msra.mxu0 0.0
    %2429 = vmatprep.subr.mxu0 0.0
    %2430 = vmatpush1.msra.mxu0 0.0
    %2431 = vmatprep.subr.mxu0 0.0
    %2432 = vmatpush1.msra.mxu0 0.0
    %2433 = vmatprep.subr.mxu0 0.0
    %2434 = vmatpush1.msra.mxu0 0.0
    %2435 = vmatprep.subr.mxu0 0.0
    %2436 = vmatpush1.msra.mxu0 0.0
    %2437 = vmatprep.subr.mxu0 0.0
    %2438 = vmatpush1.msra.mxu0 0.0
    %2439 = vmatprep.subr.mxu0 0.0
    %2440 = vmatpush1.msra.mxu0 0.0
    %2441 = vmatprep.subr.mxu0 0.0
    %2442 = vmatpush1.msra.mxu0 0.0
    %2443 = vmatprep.subr.mxu0 0.0
    %2444 = vmatpush1.msra.mxu0 0.0
    %2445 = vmatprep.subr.mxu0 0.0
    %2446 = vmatpush1.msra.mxu0 0.0
    %2447 = vmatprep.subr.mxu0 0.0
    %2448 = vmatpush1.msra.mxu0 0.0
    %2449 = vmatprep.subr.mxu0 0.0
    %2450 = vmatpush1.msra.mxu0 0.0
    %2451 = vmatprep.subr.mxu0 0.0
    %2452 = vmatpush1.msra.mxu0 0.0
    %2453 = vmatprep.subr.mxu0 0.0
    %2454 = vmatpush1.msra.mxu0 0.0
    %2455 = vmatprep.subr.mxu0 0.0
    %2456 = vmatpush1.msra.mxu0 %v1978
    %2457 = vmatprep.subr.mxu0 0.0
    %2458 = vmatpush2.msra.mxu0 0.0
    %2459 = vmatprep.subr.mxu0 0.0
    %2460 = vmatpush2.msra.mxu0 0.0
    %2461 = vmatprep.subr.mxu0 0.0
    %2462 = vmatpush2.msra.mxu0 0.0
    %2463 = vmatprep.subr.mxu0 0.0
    %2464 = vmatpush2.msra.mxu0 0.0
    %2465 = vmatprep.subr.mxu0 0.0
    %2466 = vmatpush2.msra.mxu0 0.0
    %2467 = vmatprep.subr.mxu0 0.0
    %2468 = vmatpush2.msra.mxu0 0.0
    %2469 = vmatprep.subr.mxu0 0.0
    %2470 = vmatpush2.msra.mxu0 0.0
    %2471 = vmatprep.subr.mxu0 0.0
    %2472 = vmatpush2.msra.mxu0 0.0
    %2473 = vmatprep.subr.mxu0 0.0
    %2474 = vmatpush2.msra.mxu0 0.0
    %2475 = vmatprep.subr.mxu0 0.0
    %2476 = vmatpush2.msra.mxu0 0.0
    %2477 = vmatprep.subr.mxu0 0.0
    %2478 = vmatpush2.msra.mxu0 0.0
    %2479 = vmatprep.subr.mxu0 0.0
    %2480 = vmatpush2.msra.mxu0 0.0
    %2481 = vmatprep.subr.mxu0 0.0
    %2482 = vmatpush2.msra.mxu0 0.0
    %2483 = vmatprep.subr.mxu0 0.0
    %2484 = vmatpush2.msra.mxu0 0.0
    %2485 = vmatprep.subr.mxu0 0.0
    %2486 = vmatpush2.msra.mxu0 0.0
    %2487 = vmatprep.subr.mxu0 0.0
    %2488 = vmatpush2.msra.mxu0 0.0
    %2489 = vmatprep.mubr.f32.mxu0 0.0
    %2490 = vmatmul.mubr.f32.gmra.mxu0 %v2423
    %v2491 = vpop.f32.mrf.mxu0
    %v2492 = vadd.f32 %v84, %v2491
    %v2493 = vpop.f32.mrf.mxu0
    %2494 = vdwg.mxu0
    %v2495 = vsel %vm221, %v2492, -inf
    %2496 = vmax.xlane.f32.xlu0 %v2495
    %v2497 = vpop.xlane.xlu0 %2496
    %v2498 = vsub.f32 %v2492, %v2497
    %v2499 = vmul.f32 %v2498, 1.442695
    %v2500 = vpow.pop %v2499
    %v2501 = vsel %vm221, %v2500, 0.0
    %2502 = vadd.xlane.f32.xlu0 %v2501
    %v2503 = vpop.xlane.xlu0 %2502
    %v2504 = vrcp.pop %v2503
    %v2505 = vmul.f32 %v2500, %v2504
    %v2507 = vsel %vm221, %v1998, 0
    %v2510 = vsel %vm221, %v2505, 0
    %2512 = vmatprep.subr.mxu0 0.0
    %2513 = vmatpush1.xpose.msra.mxu0 0.0
    %2514 = vmatprep.subr.mxu0 0.0
    %2515 = vmatpush1.xpose.msra.mxu0 0.0
    %2516 = vmatprep.subr.mxu0 0.0
    %2517 = vmatpush1.xpose.msra.mxu0 0.0
    %2518 = vmatprep.subr.mxu0 0.0
    %2519 = vmatpush1.xpose.msra.mxu0 0.0
    %2520 = vmatprep.subr.mxu0 0.0
    %2521 = vmatpush1.xpose.msra.mxu0 0.0
    %2522 = vmatprep.subr.mxu0 0.0
    %2523 = vmatpush1.xpose.msra.mxu0 0.0
    %2524 = vmatprep.subr.mxu0 0.0
    %2525 = vmatpush1.xpose.msra.mxu0 0.0
    %2526 = vmatprep.subr.mxu0 0.0
    %2527 = vmatpush1.xpose.msra.mxu0 0.0
    %2528 = vmatprep.subr.mxu0 0.0
    %2529 = vmatpush1.xpose.msra.mxu0 0.0
    %2530 = vmatprep.subr.mxu0 0.0
    %2531 = vmatpush1.xpose.msra.mxu0 0.0
    %2532 = vmatprep.subr.mxu0 0.0
    %2533 = vmatpush1.xpose.msra.mxu0 0.0
    %2534 = vmatprep.subr.mxu0 0.0
    %2535 = vmatpush1.xpose.msra.mxu0 0.0
    %2536 = vmatprep.subr.mxu0 0.0
    %2537 = vmatpush1.xpose.msra.mxu0 0.0
    %2538 = vmatprep.subr.mxu0 0.0
    %2539 = vmatpush1.xpose.msra.mxu0 0.0
    %2540 = vmatprep.subr.mxu0 0.0
    %2541 = vmatpush1.xpose.msra.mxu0 0.0
    %2542 = vmatprep.subr.mxu0 0.0
    %2543 = vmatpush1.xpose.msra.mxu0 %v2510
    %2544 = vmatprep.subr.mxu0 0.0
    %2545 = vmatpush2.xpose.msra.mxu0 0.0
    %2546 = vmatprep.subr.mxu0 0.0
    %2547 = vmatpush2.xpose.msra.mxu0 0.0
    %2548 = vmatprep.subr.mxu0 0.0
    %2549 = vmatpush2.xpose.msra.mxu0 0.0
    %2550 = vmatprep.subr.mxu0 0.0
    %2551 = vmatpush2.xpose.msra.mxu0 0.0
    %2552 = vmatprep.subr.mxu0 0.0
    %2553 = vmatpush2.xpose.msra.mxu0 0.0
    %2554 = vmatprep.subr.mxu0 0.0
    %2555 = vmatpush2.xpose.msra.mxu0 0.0
    %2556 = vmatprep.subr.mxu0 0.0
    %2557 = vmatpush2.xpose.msra.mxu0 0.0
    %2558 = vmatprep.subr.mxu0 0.0
    %2559 = vmatpush2.xpose.msra.mxu0 0.0
    %2560 = vmatprep.subr.mxu0 0.0
    %2561 = vmatpush2.xpose.msra.mxu0 0.0
    %2562 = vmatprep.subr.mxu0 0.0
    %2563 = vmatpush2.xpose.msra.mxu0 0.0
    %2564 = vmatprep.subr.mxu0 0.0
    %2565 = vmatpush2.xpose.msra.mxu0 0.0
    %2566 = vmatprep.subr.mxu0 0.0
    %2567 = vmatpush2.xpose.msra.mxu0 0.0
    %2568 = vmatprep.subr.mxu0 0.0
    %2569 = vmatpush2.xpose.msra.mxu0 0.0
    %2570 = vmatprep.subr.mxu0 0.0
    %2571 = vmatpush2.xpose.msra.mxu0 0.0
    %2572 = vmatprep.subr.mxu0 0.0
    %2573 = vmatpush2.xpose.msra.mxu0 0.0
    %2574 = vmatprep.subr.mxu0 0.0
    %2575 = vmatpush2.xpose.msra.mxu0 0.0
    %2576 = vmatprep.mubr.f32.mxu0 0.0
    %2577 = vmatmul.mubr.f32.gmra.mxu0 %v2507
    %v2578 = vpop.f32.mrf.mxu0
    %v2579 = vadd.f32 0.0, %v2578
    %v2580 = vpop.f32.mrf.mxu0
    %2581 = vdwg.mxu0
    %2582 = vxpose.xlu0.b32.start [1/16] %v1963, 128
    %2583 = vxpose.xlu0.b32.cont [2/16] 0.0, 128
    %2584 = vxpose.xlu0.b32.cont [3/16] 0.0, 128
    %2585 = vxpose.xlu0.b32.cont [4/16] 0.0, 128
    %2586 = vxpose.xlu0.b32.cont [5/16] 0.0, 128
    %2587 = vxpose.xlu0.b32.cont [6/16] 0.0, 128
    %2588 = vxpose.xlu0.b32.cont [7/16] 0.0, 128
    %2589 = vxpose.xlu0.b32.cont [8/16] 0.0, 128
    %2590 = vxpose.xlu0.b32.cont [9/16] 0.0, 128
    %2591 = vxpose.xlu0.b32.cont [10/16] 0.0, 128
    %2592 = vxpose.xlu0.b32.cont [11/16] 0.0, 128
    %2593 = vxpose.xlu0.b32.cont [12/16] 0.0, 128
    %2594 = vxpose.xlu0.b32.cont [13/16] 0.0, 128
    %2595 = vxpose.xlu0.b32.cont [14/16] 0.0, 128
    %2596 = vxpose.xlu0.b32.cont [15/16] 0.0, 128
    %2597 = vxpose.xlu0.b32.end [16/16] 0.0, 128
    %v2598 = vpop.trf.xlu0
    %v2599 = vpop.trf.xlu0
    %v2600 = vpop.trf.xlu0
    %v2601 = vpop.trf.xlu0
    %v2602 = vpop.trf.xlu0
    %v2603 = vpop.trf.xlu0
    %v2604 = vpop.trf.xlu0
    %v2605 = vpop.trf.xlu0
    %v2606 = vpop.trf.xlu0
    %v2607 = vpop.trf.xlu0
    %v2608 = vpop.trf.xlu0
    %v2609 = vpop.trf.xlu0
    %v2610 = vpop.trf.xlu0
    %v2611 = vpop.trf.xlu0
    %v2612 = vpop.trf.xlu0
    %v2613 = vpop.trf.xlu0
    %v2615 = vsel %vm221, %v2598, 0
    %2617 = vmatprep.subr.mxu0 0.0
    %2618 = vmatpush1.msra.mxu0 0.0
    %2619 = vmatprep.subr.mxu0 0.0
    %2620 = vmatpush1.msra.mxu0 0.0
    %2621 = vmatprep.subr.mxu0 0.0
    %2622 = vmatpush1.msra.mxu0 0.0
    %2623 = vmatprep.subr.mxu0 0.0
    %2624 = vmatpush1.msra.mxu0 0.0
    %2625 = vmatprep.subr.mxu0 0.0
    %2626 = vmatpush1.msra.mxu0 0.0
    %2627 = vmatprep.subr.mxu0 0.0
    %2628 = vmatpush1.msra.mxu0 0.0
    %2629 = vmatprep.subr.mxu0 0.0
    %2630 = vmatpush1.msra.mxu0 0.0
    %2631 = vmatprep.subr.mxu0 0.0
    %2632 = vmatpush1.msra.mxu0 0.0
    %2633 = vmatprep.subr.mxu0 0.0
    %2634 = vmatpush1.msra.mxu0 0.0
    %2635 = vmatprep.subr.mxu0 0.0
    %2636 = vmatpush1.msra.mxu0 0.0
    %2637 = vmatprep.subr.mxu0 0.0
    %2638 = vmatpush1.msra.mxu0 0.0
    %2639 = vmatprep.subr.mxu0 0.0
    %2640 = vmatpush1.msra.mxu0 0.0
    %2641 = vmatprep.subr.mxu0 0.0
    %2642 = vmatpush1.msra.mxu0 0.0
    %2643 = vmatprep.subr.mxu0 0.0
    %2644 = vmatpush1.msra.mxu0 0.0
    %2645 = vmatprep.subr.mxu0 0.0
    %2646 = vmatpush1.msra.mxu0 0.0
    %2647 = vmatprep.subr.mxu0 0.0
    %2648 = vmatpush1.msra.mxu0 %v1983
    %2649 = vmatprep.subr.mxu0 0.0
    %2650 = vmatpush2.msra.mxu0 0.0
    %2651 = vmatprep.subr.mxu0 0.0
    %2652 = vmatpush2.msra.mxu0 0.0
    %2653 = vmatprep.subr.mxu0 0.0
    %2654 = vmatpush2.msra.mxu0 0.0
    %2655 = vmatprep.subr.mxu0 0.0
    %2656 = vmatpush2.msra.mxu0 0.0
    %2657 = vmatprep.subr.mxu0 0.0
    %2658 = vmatpush2.msra.mxu0 0.0
    %2659 = vmatprep.subr.mxu0 0.0
    %2660 = vmatpush2.msra.mxu0 0.0
    %2661 = vmatprep.subr.mxu0 0.0
    %2662 = vmatpush2.msra.mxu0 0.0
    %2663 = vmatprep.subr.mxu0 0.0
    %2664 = vmatpush2.msra.mxu0 0.0
    %2665 = vmatprep.subr.mxu0 0.0
    %2666 = vmatpush2.msra.mxu0 0.0
    %2667 = vmatprep.subr.mxu0 0.0
    %2668 = vmatpush2.msra.mxu0 0.0
    %2669 = vmatprep.subr.mxu0 0.0
    %2670 = vmatpush2.msra.mxu0 0.0
    %2671 = vmatprep.subr.mxu0 0.0
    %2672 = vmatpush2.msra.mxu0 0.0
    %2673 = vmatprep.subr.mxu0 0.0
    %2674 = vmatpush2.msra.mxu0 0.0
    %2675 = vmatprep.subr.mxu0 0.0
    %2676 = vmatpush2.msra.mxu0 0.0
    %2677 = vmatprep.subr.mxu0 0.0
    %2678 = vmatpush2.msra.mxu0 0.0
    %2679 = vmatprep.subr.mxu0 0.0
    %2680 = vmatpush2.msra.mxu0 0.0
    %2681 = vmatprep.mubr.f32.mxu0 0.0
    %2682 = vmatmul.mubr.f32.gmra.mxu0 %v2615
    %v2683 = vpop.f32.mrf.mxu0
    %v2684 = vadd.f32 %v84, %v2683
    %v2685 = vpop.f32.mrf.mxu0
    %2686 = vdwg.mxu0
    %v2687 = vsel %vm221, %v2684, -inf
    %2688 = vmax.xlane.f32.xlu0 %v2687
    %v2689 = vpop.xlane.xlu0 %2688
    %v2690 = vsub.f32 %v2684, %v2689
    %v2691 = vmul.f32 %v2690, 1.442695
    %v2692 = vpow.pop %v2691
    %v2693 = vsel %vm221, %v2692, 0.0
    %2694 = vadd.xlane.f32.xlu0 %v2693
    %v2695 = vpop.xlane.xlu0 %2694
    %v2696 = vrcp.pop %v2695
    %v2697 = vmul.f32 %v2692, %v2696
    %v2699 = vsel %vm221, %v2003, 0
    %v2702 = vsel %vm221, %v2697, 0
    %2704 = vmatprep.subr.mxu0 0.0
    %2705 = vmatpush1.xpose.msra.mxu0 0.0
    %2706 = vmatprep.subr.mxu0 0.0
    %2707 = vmatpush1.xpose.msra.mxu0 0.0
    %2708 = vmatprep.subr.mxu0 0.0
    %2709 = vmatpush1.xpose.msra.mxu0 0.0
    %2710 = vmatprep.subr.mxu0 0.0
    %2711 = vmatpush1.xpose.msra.mxu0 0.0
    %2712 = vmatprep.subr.mxu0 0.0
    %2713 = vmatpush1.xpose.msra.mxu0 0.0
    %2714 = vmatprep.subr.mxu0 0.0
    %2715 = vmatpush1.xpose.msra.mxu0 0.0
    %2716 = vmatprep.subr.mxu0 0.0
    %2717 = vmatpush1.xpose.msra.mxu0 0.0
    %2718 = vmatprep.subr.mxu0 0.0
    %2719 = vmatpush1.xpose.msra.mxu0 0.0
    %2720 = vmatprep.subr.mxu0 0.0
    %2721 = vmatpush1.xpose.msra.mxu0 0.0
    %2722 = vmatprep.subr.mxu0 0.0
    %2723 = vmatpush1.xpose.msra.mxu0 0.0
    %2724 = vmatprep.subr.mxu0 0.0
    %2725 = vmatpush1.xpose.msra.mxu0 0.0
    %2726 = vmatprep.subr.mxu0 0.0
    %2727 = vmatpush1.xpose.msra.mxu0 0.0
    %2728 = vmatprep.subr.mxu0 0.0
    %2729 = vmatpush1.xpose.msra.mxu0 0.0
    %2730 = vmatprep.subr.mxu0 0.0
    %2731 = vmatpush1.xpose.msra.mxu0 0.0
    %2732 = vmatprep.subr.mxu0 0.0
    %2733 = vmatpush1.xpose.msra.mxu0 0.0
    %2734 = vmatprep.subr.mxu0 0.0
    %2735 = vmatpush1.xpose.msra.mxu0 %v2702
    %2736 = vmatprep.subr.mxu0 0.0
    %2737 = vmatpush2.xpose.msra.mxu0 0.0
    %2738 = vmatprep.subr.mxu0 0.0
    %2739 = vmatpush2.xpose.msra.mxu0 0.0
    %2740 = vmatprep.subr.mxu0 0.0
    %2741 = vmatpush2.xpose.msra.mxu0 0.0
    %2742 = vmatprep.subr.mxu0 0.0
    %2743 = vmatpush2.xpose.msra.mxu0 0.0
    %2744 = vmatprep.subr.mxu0 0.0
    %2745 = vmatpush2.xpose.msra.mxu0 0.0
    %2746 = vmatprep.subr.mxu0 0.0
    %2747 = vmatpush2.xpose.msra.mxu0 0.0
    %2748 = vmatprep.subr.mxu0 0.0
    %2749 = vmatpush2.xpose.msra.mxu0 0.0
    %2750 = vmatprep.subr.mxu0 0.0
    %2751 = vmatpush2.xpose.msra.mxu0 0.0
    %2752 = vmatprep.subr.mxu0 0.0
    %2753 = vmatpush2.xpose.msra.mxu0 0.0
    %2754 = vmatprep.subr.mxu0 0.0
    %2755 = vmatpush2.xpose.msra.mxu0 0.0
    %2756 = vmatprep.subr.mxu0 0.0
    %2757 = vmatpush2.xpose.msra.mxu0 0.0
    %2758 = vmatprep.subr.mxu0 0.0
    %2759 = vmatpush2.xpose.msra.mxu0 0.0
    %2760 = vmatprep.subr.mxu0 0.0
    %2761 = vmatpush2.xpose.msra.mxu0 0.0
    %2762 = vmatprep.subr.mxu0 0.0
    %2763 = vmatpush2.xpose.msra.mxu0 0.0
    %2764 = vmatprep.subr.mxu0 0.0
    %2765 = vmatpush2.xpose.msra.mxu0 0.0
    %2766 = vmatprep.subr.mxu0 0.0
    %2767 = vmatpush2.xpose.msra.mxu0 0.0
    %2768 = vmatprep.mubr.f32.mxu0 0.0
    %2769 = vmatmul.mubr.f32.gmra.mxu0 %v2699
    %v2770 = vpop.f32.mrf.mxu0
    %v2771 = vadd.f32 0.0, %v2770
    %v2772 = vpop.f32.mrf.mxu0
    %2773 = vdwg.mxu0
    %v2774 = vld [vmem:[%s17] sm:$0xff]
    %v2775 = vld [vmem:[%s17 + $0x8] sm:$0xff]
    %v2776 = vld [vmem:[%s17 + $0x10] sm:$0xff]
    %v2777 = vld [vmem:[%s17 + $0x18] sm:$0xff]
    %v2778 = vld [vmem:[%s18] sm:$0xff]
    %v2779 = vld [vmem:[%s18 + $0x8] sm:$0xff]
    %v2780 = vld [vmem:[%s18 + $0x10] sm:$0xff]
    %v2781 = vld [vmem:[%s18 + $0x18] sm:$0xff]
    %v2783 = vsel %vm397, %v2778, 0
    %v2786 = vsel %vm397, %v2779, 0
    %v2789 = vsel %vm397, %v2780, 0
    %v2792 = vsel %vm397, %v2781, 0
    %2794 = vmatprep.subr.mxu0 0.0
    %2795 = vmatpush1.msra.mxu0 0.0
    %2796 = vmatprep.subr.mxu0 0.0
    %2797 = vmatpush1.msra.mxu0 0.0
    %2798 = vmatprep.subr.mxu0 0.0
    %2799 = vmatpush1.msra.mxu0 0.0
    %2800 = vmatprep.subr.mxu0 0.0
    %2801 = vmatpush1.msra.mxu0 0.0
    %2802 = vmatprep.subr.mxu0 0.0
    %2803 = vmatpush1.msra.mxu0 0.0
    %2804 = vmatprep.subr.mxu0 0.0
    %2805 = vmatpush1.msra.mxu0 0.0
    %2806 = vmatprep.subr.mxu0 0.0
    %2807 = vmatpush1.msra.mxu0 0.0
    %2808 = vmatprep.subr.mxu0 0.0
    %2809 = vmatpush1.msra.mxu0 0.0
    %2810 = vmatprep.subr.mxu0 0.0
    %2811 = vmatpush1.msra.mxu0 0.0
    %2812 = vmatprep.subr.mxu0 0.0
    %2813 = vmatpush1.msra.mxu0 0.0
    %2814 = vmatprep.subr.mxu0 0.0
    %2815 = vmatpush1.msra.mxu0 0.0
    %2816 = vmatprep.subr.mxu0 0.0
    %2817 = vmatpush1.msra.mxu0 0.0
    %2818 = vmatprep.subr.mxu0 0.0
    %2819 = vmatpush1.msra.mxu0 %v2771
    %2820 = vmatprep.subr.mxu0 0.0
    %2821 = vmatpush1.msra.mxu0 %v2579
    %2822 = vmatprep.subr.mxu0 0.0
    %2823 = vmatpush1.msra.mxu0 %v2387
    %2824 = vmatprep.subr.mxu0 0.0
    %2825 = vmatpush1.msra.mxu0 %v2195
    %2826 = vmatprep.subr.mxu0 0.0
    %2827 = vmatpush2.msra.mxu0 0.0
    %2828 = vmatprep.subr.mxu0 0.0
    %2829 = vmatpush2.msra.mxu0 0.0
    %2830 = vmatprep.subr.mxu0 0.0
    %2831 = vmatpush2.msra.mxu0 0.0
    %2832 = vmatprep.subr.mxu0 0.0
    %2833 = vmatpush2.msra.mxu0 0.0
    %2834 = vmatprep.subr.mxu0 0.0
    %2835 = vmatpush2.msra.mxu0 0.0
    %2836 = vmatprep.subr.mxu0 0.0
    %2837 = vmatpush2.msra.mxu0 0.0
    %2838 = vmatprep.subr.mxu0 0.0
    %2839 = vmatpush2.msra.mxu0 0.0
    %2840 = vmatprep.subr.mxu0 0.0
    %2841 = vmatpush2.msra.mxu0 0.0
    %2842 = vmatprep.subr.mxu0 0.0
    %2843 = vmatpush2.msra.mxu0 0.0
    %2844 = vmatprep.subr.mxu0 0.0
    %2845 = vmatpush2.msra.mxu0 0.0
    %2846 = vmatprep.subr.mxu0 0.0
    %2847 = vmatpush2.msra.mxu0 0.0
    %2848 = vmatprep.subr.mxu0 0.0
    %2849 = vmatpush2.msra.mxu0 0.0
    %2850 = vmatprep.subr.mxu0 0.0
    %2851 = vmatpush2.msra.mxu0 0.0
    %2852 = vmatprep.subr.mxu0 0.0
    %2853 = vmatpush2.msra.mxu0 0.0
    %2854 = vmatprep.subr.mxu0 0.0
    %2855 = vmatpush2.msra.mxu0 0.0
    %2856 = vmatprep.subr.mxu0 0.0
    %2857 = vmatpush2.msra.mxu0 0.0
    %2858 = vmatprep.mubr.f32.mxu0 0.0
    %2859 = vmatmul.mubr.f32.gmra.mxu0 %v2783
    %v2860 = vpop.f32.mrf.mxu0
    %v2861 = vadd.f32 0.0, %v2860
    %v2862 = vpop.f32.mrf.mxu0
    %2863 = vmatprep.mubr.f32.mxu0 0.0
    %2864 = vmatmul.mubr.f32.gmra.mxu0 %v2786
    %v2865 = vpop.f32.mrf.mxu0
    %v2866 = vadd.f32 0.0, %v2865
    %v2867 = vpop.f32.mrf.mxu0
    %2868 = vmatprep.mubr.f32.mxu0 0.0
    %2869 = vmatmul.mubr.f32.gmra.mxu0 %v2789
    %v2870 = vpop.f32.mrf.mxu0
    %v2871 = vadd.f32 0.0, %v2870
    %v2872 = vpop.f32.mrf.mxu0
    %2873 = vmatprep.mubr.f32.mxu0 0.0
    %2874 = vmatmul.mubr.f32.gmra.mxu0 %v2792
    %v2875 = vpop.f32.mrf.mxu0
    %v2876 = vadd.f32 0.0, %v2875
    %v2877 = vpop.f32.mrf.mxu0
    %2878 = vdwg.mxu0
    %v2880 = vsel %vm397, %v2774, 0
    %v2883 = vsel %vm397, %v2775, 0
    %v2886 = vsel %vm397, %v2776, 0
    %v2889 = vsel %vm397, %v2777, 0
    %2891 = vmatprep.subr.mxu0 0.0
    %2892 = vmatpush1.msra.mxu0 0.0
    %2893 = vmatprep.subr.mxu0 0.0
    %2894 = vmatpush1.msra.mxu0 0.0
    %2895 = vmatprep.subr.mxu0 0.0
    %2896 = vmatpush1.msra.mxu0 0.0
    %2897 = vmatprep.subr.mxu0 0.0
    %2898 = vmatpush1.msra.mxu0 0.0
    %2899 = vmatprep.subr.mxu0 0.0
    %2900 = vmatpush1.msra.mxu0 0.0
    %2901 = vmatprep.subr.mxu0 0.0
    %2902 = vmatpush1.msra.mxu0 0.0
    %2903 = vmatprep.subr.mxu0 0.0
    %2904 = vmatpush1.msra.mxu0 0.0
    %2905 = vmatprep.subr.mxu0 0.0
    %2906 = vmatpush1.msra.mxu0 0.0
    %2907 = vmatprep.subr.mxu0 0.0
    %2908 = vmatpush1.msra.mxu0 0.0
    %2909 = vmatprep.subr.mxu0 0.0
    %2910 = vmatpush1.msra.mxu0 0.0
    %2911 = vmatprep.subr.mxu0 0.0
    %2912 = vmatpush1.msra.mxu0 0.0
    %2913 = vmatprep.subr.mxu0 0.0
    %2914 = vmatpush1.msra.mxu0 0.0
    %2915 = vmatprep.subr.mxu0 0.0
    %2916 = vmatpush1.msra.mxu0 %v1760
    %2917 = vmatprep.subr.mxu0 0.0
    %2918 = vmatpush1.msra.mxu0 %v1759
    %2919 = vmatprep.subr.mxu0 0.0
    %2920 = vmatpush1.msra.mxu0 %v1758
    %2921 = vmatprep.subr.mxu0 0.0
    %2922 = vmatpush1.msra.mxu0 %v1757
    %2923 = vmatprep.subr.mxu0 0.0
    %2924 = vmatpush2.msra.mxu0 0.0
    %2925 = vmatprep.subr.mxu0 0.0
    %2926 = vmatpush2.msra.mxu0 0.0
    %2927 = vmatprep.subr.mxu0 0.0
    %2928 = vmatpush2.msra.mxu0 0.0
    %2929 = vmatprep.subr.mxu0 0.0
    %2930 = vmatpush2.msra.mxu0 0.0
    %2931 = vmatprep.subr.mxu0 0.0
    %2932 = vmatpush2.msra.mxu0 0.0
    %2933 = vmatprep.subr.mxu0 0.0
    %2934 = vmatpush2.msra.mxu0 0.0
    %2935 = vmatprep.subr.mxu0 0.0
    %2936 = vmatpush2.msra.mxu0 0.0
    %2937 = vmatprep.subr.mxu0 0.0
    %2938 = vmatpush2.msra.mxu0 0.0
    %2939 = vmatprep.subr.mxu0 0.0
    %2940 = vmatpush2.msra.mxu0 0.0
    %2941 = vmatprep.subr.mxu0 0.0
    %2942 = vmatpush2.msra.mxu0 0.0
    %2943 = vmatprep.subr.mxu0 0.0
    %2944 = vmatpush2.msra.mxu0 0.0
    %2945 = vmatprep.subr.mxu0 0.0
    %2946 = vmatpush2.msra.mxu0 0.0
    %2947 = vmatprep.subr.mxu0 0.0
    %2948 = vmatpush2.msra.mxu0 0.0
    %2949 = vmatprep.subr.mxu0 0.0
    %2950 = vmatpush2.msra.mxu0 0.0
    %2951 = vmatprep.subr.mxu0 0.0
    %2952 = vmatpush2.msra.mxu0 0.0
    %2953 = vmatprep.subr.mxu0 0.0
    %2954 = vmatpush2.msra.mxu0 0.0
    %2955 = vmatprep.mubr.f32.mxu0 0.0
    %2956 = vmatmul.mubr.f32.gmra.mxu0 %v2880
    %v2957 = vpop.f32.mrf.mxu0
    %v2958 = vadd.f32 %v2861, %v2957
    %v2959 = vpop.f32.mrf.mxu0
    %2960 = vmatprep.mubr.f32.mxu0 0.0
    %2961 = vmatmul.mubr.f32.gmra.mxu0 %v2883
    %v2962 = vpop.f32.mrf.mxu0
    %v2963 = vadd.f32 %v2866, %v2962
    %v2964 = vpop.f32.mrf.mxu0
    %2965 = vmatprep.mubr.f32.mxu0 0.0
    %2966 = vmatmul.mubr.f32.gmra.mxu0 %v2886
    %v2967 = vpop.f32.mrf.mxu0
    %v2968 = vadd.f32 %v2871, %v2967
    %v2969 = vpop.f32.mrf.mxu0
    %2970 = vmatprep.mubr.f32.mxu0 0.0
    %2971 = vmatmul.mubr.f32.gmra.mxu0 %v2889
    %v2972 = vpop.f32.mrf.mxu0
    %v2973 = vadd.f32 %v2876, %v2972
    %v2974 = vpop.f32.mrf.mxu0
    %2975 = vdwg.mxu0
    %v2976 = vld [vmem:[%s19] sm:$0xff]
    %v2977 = vld [vmem:[%s19 + $0x8] sm:$0xff]
    %v2978 = vld [vmem:[%s19 + $0x10] sm:$0xff]
    %v2979 = vld [vmem:[%s19 + $0x18] sm:$0xff]
    %2981 = vset.pattern.permute.xlu0 0
    %2982 = vperm.xlu0 %2981, %v2976
    %v2983 = vpop.permute.xlu0 %2982
    %2986 = vset.pattern.permute.xlu0 0
    %2987 = vperm.xlu0 %2986, %v2977
    %v2988 = vpop.permute.xlu0 %2987
    %2991 = vset.pattern.permute.xlu0 0
    %2992 = vperm.xlu0 %2991, %v2978
    %v2993 = vpop.permute.xlu0 %2992
    %2996 = vset.pattern.permute.xlu0 0
    %2997 = vperm.xlu0 %2996, %v2979
    %v2998 = vpop.permute.xlu0 %2997
    %v3000 = vadd.f32 %v2958, %v2983
    %v3001 = vadd.f32 %v2963, %v2988
    %v3002 = vadd.f32 %v2968, %v2993
    %v3003 = vadd.f32 %v2973, %v2998
    %v3004 = vld [vmem:[%s20] sm:$0xff]
    %v3005 = vld [vmem:[%s20 + $0x8] sm:$0xff]
    %v3006 = vld [vmem:[%s20 + $0x10] sm:$0xff]
    %v3007 = vld [vmem:[%s20 + $0x18] sm:$0xff]
    %v3008 = vld [vmem:[%s21] sm:$0xff]
    %v3009 = vld [vmem:[%s21 + $0x8] sm:$0xff]
    %v3010 = vld [vmem:[%s21 + $0x10] sm:$0xff]
    %v3011 = vld [vmem:[%s21 + $0x18] sm:$0xff]
    %v3012 = vsel %vm221, %v3000, 0.0
    %v3013 = vsel %vm221, %v3001, 0.0
    %v3014 = vadd.f32 %v3012, %v3013
    %v3015 = vsel %vm221, %v3002, 0.0
    %v3016 = vadd.f32 %v3014, %v3015
    %v3017 = vsel %vm221, %v3003, 0.0
    %v3018 = vadd.f32 %v3016, %v3017
    %v3019 = vrot.slane %v3018, 4
    %v3020 = vadd.f32 %v3018, %v3019
    %v3021 = vrot.slane %v3020, 2
    %v3022 = vadd.f32 %v3020, %v3021
    %v3023 = vrot.slane %v3022, 1
    %v3024 = vadd.f32 %v3022, %v3023
    %v3025 = vmul.f32 %v3024, %v235
    %v3026 = vsub.f32 %v3000, %v3025
    %v3027 = vsub.f32 %v3001, %v3025
    %v3028 = vsub.f32 %v3002, %v3025
    %v3029 = vsub.f32 %v3003, %v3025
    %v3030 = vmul.f32 %v3026, %v3026
    %v3031 = vmul.f32 %v3027, %v3027
    %v3032 = vmul.f32 %v3028, %v3028
    %v3033 = vmul.f32 %v3029, %v3029
    %v3034 = vsel %vm221, %v3030, 0.0
    %v3035 = vsel %vm221, %v3031, 0.0
    %v3036 = vadd.f32 %v3034, %v3035
    %v3037 = vsel %vm221, %v3032, 0.0
    %v3038 = vadd.f32 %v3036, %v3037
    %v3039 = vsel %vm221, %v3033, 0.0
    %v3040 = vadd.f32 %v3038, %v3039
    %v3041 = vrot.slane %v3040, 4
    %v3042 = vadd.f32 %v3040, %v3041
    %v3043 = vrot.slane %v3042, 2
    %v3044 = vadd.f32 %v3042, %v3043
    %v3045 = vrot.slane %v3044, 1
    %v3046 = vadd.f32 %v3044, %v3045
    %v3047 = vmul.f32 %v3046, %v235
    %v3048 = vadd.f32 %v3047, 1e-05
    %v3049 = vrsqrt.pop %v3048
    %v3050 = vmul.f32 %v3026, %v3049
    %v3051 = vmul.f32 %v3027, %v3049
    %v3052 = vmul.f32 %v3028, %v3049
    %v3053 = vmul.f32 %v3029, %v3049
    %3055 = vset.pattern.permute.xlu0 0
    %3056 = vperm.xlu0 %3055, %v3004
    %v3057 = vpop.permute.xlu0 %3056
    %3060 = vset.pattern.permute.xlu0 0
    %3061 = vperm.xlu0 %3060, %v3005
    %v3062 = vpop.permute.xlu0 %3061
    %3065 = vset.pattern.permute.xlu0 0
    %3066 = vperm.xlu0 %3065, %v3006
    %v3067 = vpop.permute.xlu0 %3066
    %3070 = vset.pattern.permute.xlu0 0
    %3071 = vperm.xlu0 %3070, %v3007
    %v3072 = vpop.permute.xlu0 %3071
    %v3074 = vmul.f32 %v3050, %v3057
    %v3075 = vmul.f32 %v3051, %v3062
    %v3076 = vmul.f32 %v3052, %v3067
    %v3077 = vmul.f32 %v3053, %v3072
    %3079 = vset.pattern.permute.xlu0 0
    %3080 = vperm.xlu0 %3079, %v3008
    %v3081 = vpop.permute.xlu0 %3080
    %3084 = vset.pattern.permute.xlu0 0
    %3085 = vperm.xlu0 %3084, %v3009
    %v3086 = vpop.permute.xlu0 %3085
    %3089 = vset.pattern.permute.xlu0 0
    %3090 = vperm.xlu0 %3089, %v3010
    %v3091 = vpop.permute.xlu0 %3090
    %3094 = vset.pattern.permute.xlu0 0
    %3095 = vperm.xlu0 %3094, %v3011
    %v3096 = vpop.permute.xlu0 %3095
    %v3098 = vadd.f32 %v3074, %v3081
    %v3099 = vadd.f32 %v3075, %v3086
    %v3100 = vadd.f32 %v3076, %v3091
    %v3101 = vadd.f32 %v3077, %v3096
    %v3102 = vmax.f32 %v3098, 0.0
    %v3103 = vmax.f32 %v3099, 0.0
    %v3104 = vmax.f32 %v3100, 0.0
    %v3105 = vmax.f32 %v3101, 0.0
    %v3106 = vadd.f32 %v1659, %v3102
    %v3107 = vadd.f32 %v1660, %v3103
    %v3108 = vadd.f32 %v1661, %v3104
    %v3109 = vadd.f32 %v1662, %v3105
    %v3110 = vld [vmem:[%s22] sm:$0xff]
    %v3111 = vld [vmem:[%s22 + $0x8] sm:$0xff]
    %v3112 = vld [vmem:[%s22 + $0x10] sm:$0xff]
    %v3113 = vld [vmem:[%s22 + $0x18] sm:$0xff]
    %v3114 = vld [vmem:[%s22 + $0x20] sm:$0xff]
    %v3115 = vld [vmem:[%s22 + $0x28] sm:$0xff]
    %v3116 = vld [vmem:[%s22 + $0x30] sm:$0xff]
    %v3117 = vld [vmem:[%s22 + $0x38] sm:$0xff]
    %v3118 = vld [vmem:[%s23] sm:$0xff]
    %v3119 = vld [vmem:[%s23 + $0x8] sm:$0xff]
    %v3120 = vld [vmem:[%s23 + $0x10] sm:$0xff]
    %v3121 = vld [vmem:[%s23 + $0x18] sm:$0xff]
    %v3122 = vld [vmem:[%s23 + $0x20] sm:$0xff]
    %v3123 = vld [vmem:[%s23 + $0x28] sm:$0xff]
    %v3124 = vld [vmem:[%s23 + $0x30] sm:$0xff]
    %v3125 = vld [vmem:[%s23 + $0x38] sm:$0xff]
    %3127 = vset.pattern.permute.xlu0 0
    %3128 = vperm.xlu0 %3127, %v3118
    %v3129 = vpop.permute.xlu0 %3128
    %3132 = vset.pattern.permute.xlu0 0
    %3133 = vperm.xlu0 %3132, %v3119
    %v3134 = vpop.permute.xlu0 %3133
    %3137 = vset.pattern.permute.xlu0 0
    %3138 = vperm.xlu0 %3137, %v3120
    %v3139 = vpop.permute.xlu0 %3138
    %3142 = vset.pattern.permute.xlu0 0
    %3143 = vperm.xlu0 %3142, %v3121
    %v3144 = vpop.permute.xlu0 %3143
    %3147 = vset.pattern.permute.xlu0 0
    %3148 = vperm.xlu0 %3147, %v3122
    %v3149 = vpop.permute.xlu0 %3148
    %3152 = vset.pattern.permute.xlu0 0
    %3153 = vperm.xlu0 %3152, %v3123
    %v3154 = vpop.permute.xlu0 %3153
    %3157 = vset.pattern.permute.xlu0 0
    %3158 = vperm.xlu0 %3157, %v3124
    %v3159 = vpop.permute.xlu0 %3158
    %3162 = vset.pattern.permute.xlu0 0
    %3163 = vperm.xlu0 %3162, %v3125
    %v3164 = vpop.permute.xlu0 %3163
    %v3167 = vsel %vm397, %v3110, 0
    %v3170 = vsel %vm397, %v3111, 0
    %v3173 = vsel %vm397, %v3112, 0
    %v3176 = vsel %vm397, %v3113, 0
    %v3179 = vsel %vm397, %v3114, 0
    %v3182 = vsel %vm397, %v3115, 0
    %v3185 = vsel %vm397, %v3116, 0
    %v3188 = vsel %vm397, %v3117, 0
    %3190 = vmatprep.subr.mxu0 0.0
    %3191 = vmatpush1.msra.mxu0 0.0
    %3192 = vmatprep.subr.mxu0 0.0
    %3193 = vmatpush1.msra.mxu0 0.0
    %3194 = vmatprep.subr.mxu0 0.0
    %3195 = vmatpush1.msra.mxu0 0.0
    %3196 = vmatprep.subr.mxu0 0.0
    %3197 = vmatpush1.msra.mxu0 0.0
    %3198 = vmatprep.subr.mxu0 0.0
    %3199 = vmatpush1.msra.mxu0 0.0
    %3200 = vmatprep.subr.mxu0 0.0
    %3201 = vmatpush1.msra.mxu0 0.0
    %3202 = vmatprep.subr.mxu0 0.0
    %3203 = vmatpush1.msra.mxu0 0.0
    %3204 = vmatprep.subr.mxu0 0.0
    %3205 = vmatpush1.msra.mxu0 0.0
    %3206 = vmatprep.subr.mxu0 0.0
    %3207 = vmatpush1.msra.mxu0 0.0
    %3208 = vmatprep.subr.mxu0 0.0
    %3209 = vmatpush1.msra.mxu0 0.0
    %3210 = vmatprep.subr.mxu0 0.0
    %3211 = vmatpush1.msra.mxu0 0.0
    %3212 = vmatprep.subr.mxu0 0.0
    %3213 = vmatpush1.msra.mxu0 0.0
    %3214 = vmatprep.subr.mxu0 0.0
    %3215 = vmatpush1.msra.mxu0 %v3109
    %3216 = vmatprep.subr.mxu0 0.0
    %3217 = vmatpush1.msra.mxu0 %v3108
    %3218 = vmatprep.subr.mxu0 0.0
    %3219 = vmatpush1.msra.mxu0 %v3107
    %3220 = vmatprep.subr.mxu0 0.0
    %3221 = vmatpush1.msra.mxu0 %v3106
    %3222 = vmatprep.subr.mxu0 0.0
    %3223 = vmatpush2.msra.mxu0 0.0
    %3224 = vmatprep.subr.mxu0 0.0
    %3225 = vmatpush2.msra.mxu0 0.0
    %3226 = vmatprep.subr.mxu0 0.0
    %3227 = vmatpush2.msra.mxu0 0.0
    %3228 = vmatprep.subr.mxu0 0.0
    %3229 = vmatpush2.msra.mxu0 0.0
    %3230 = vmatprep.subr.mxu0 0.0
    %3231 = vmatpush2.msra.mxu0 0.0
    %3232 = vmatprep.subr.mxu0 0.0
    %3233 = vmatpush2.msra.mxu0 0.0
    %3234 = vmatprep.subr.mxu0 0.0
    %3235 = vmatpush2.msra.mxu0 0.0
    %3236 = vmatprep.subr.mxu0 0.0
    %3237 = vmatpush2.msra.mxu0 0.0
    %3238 = vmatprep.subr.mxu0 0.0
    %3239 = vmatpush2.msra.mxu0 0.0
    %3240 = vmatprep.subr.mxu0 0.0
    %3241 = vmatpush2.msra.mxu0 0.0
    %3242 = vmatprep.subr.mxu0 0.0
    %3243 = vmatpush2.msra.mxu0 0.0
    %3244 = vmatprep.subr.mxu0 0.0
    %3245 = vmatpush2.msra.mxu0 0.0
    %3246 = vmatprep.subr.mxu0 0.0
    %3247 = vmatpush2.msra.mxu0 0.0
    %3248 = vmatprep.subr.mxu0 0.0
    %3249 = vmatpush2.msra.mxu0 0.0
    %3250 = vmatprep.subr.mxu0 0.0
    %3251 = vmatpush2.msra.mxu0 0.0
    %3252 = vmatprep.subr.mxu0 0.0
    %3253 = vmatpush2.msra.mxu0 0.0
    %3254 = vmatprep.mubr.f32.mxu0 0.0
    %3255 = vmatmul.mubr.f32.gmra.mxu0 %v3167
    %v3256 = vpop.f32.mrf.mxu0
    %v3257 = vadd.f32 %v3129, %v3256
    %v3258 = vpop.f32.mrf.mxu0
    %3259 = vmatprep.mubr.f32.mxu0 0.0
    %3260 = vmatmul.mubr.f32.gmra.mxu0 %v3170
    %v3261 = vpop.f32.mrf.mxu0
    %v3262 = vadd.f32 %v3134, %v3261
    %v3263 = vpop.f32.mrf.mxu0
    %3264 = vmatprep.mubr.f32.mxu0 0.0
    %3265 = vmatmul.mubr.f32.gmra.mxu0 %v3173
    %v3266 = vpop.f32.mrf.mxu0
    %v3267 = vadd.f32 %v3139, %v3266
    %v3268 = vpop.f32.mrf.mxu0
    %3269 = vmatprep.mubr.f32.mxu0 0.0
    %3270 = vmatmul.mubr.f32.gmra.mxu0 %v3176
    %v3271 = vpop.f32.mrf.mxu0
    %v3272 = vadd.f32 %v3144, %v3271
    %v3273 = vpop.f32.mrf.mxu0
    %3274 = vmatprep.mubr.f32.mxu0 0.0
    %3275 = vmatmul.mubr.f32.gmra.mxu0 %v3179
    %v3276 = vpop.f32.mrf.mxu0
    %v3277 = vadd.f32 %v3149, %v3276
    %v3278 = vpop.f32.mrf.mxu0
    %3279 = vmatprep.mubr.f32.mxu0 0.0
    %3280 = vmatmul.mubr.f32.gmra.mxu0 %v3182
    %v3281 = vpop.f32.mrf.mxu0
    %v3282 = vadd.f32 %v3154, %v3281
    %v3283 = vpop.f32.mrf.mxu0
    %3284 = vmatprep.mubr.f32.mxu0 0.0
    %3285 = vmatmul.mubr.f32.gmra.mxu0 %v3185
    %v3286 = vpop.f32.mrf.mxu0
    %v3287 = vadd.f32 %v3159, %v3286
    %v3288 = vpop.f32.mrf.mxu0
    %3289 = vmatprep.mubr.f32.mxu0 0.0
    %3290 = vmatmul.mubr.f32.gmra.mxu0 %v3188
    %v3291 = vpop.f32.mrf.mxu0
    %v3292 = vadd.f32 %v3164, %v3291
    %v3293 = vpop.f32.mrf.mxu0
    %3294 = vdwg.mxu0
    %v3295 = vmax.f32 %v3257, 0.0
    %v3296 = vmax.f32 %v3262, 0.0
    %v3297 = vmax.f32 %v3267, 0.0
    %v3298 = vmax.f32 %v3272, 0.0
    %v3299 = vmax.f32 %v3277, 0.0
    %v3300 = vmax.f32 %v3282, 0.0
    %v3301 = vmax.f32 %v3287, 0.0
    %v3302 = vmax.f32 %v3292, 0.0
    %v3303 = vld [vmem:[%s24] sm:$0xff]
    %v3304 = vld [vmem:[%s24 + $0x8] sm:$0xff]
    %v3305 = vld [vmem:[%s24 + $0x10] sm:$0xff]
    %v3306 = vld [vmem:[%s24 + $0x18] sm:$0xff]
    %v3307 = vld [vmem:[%s24 + $0x20] sm:$0xff]
    %v3308 = vld [vmem:[%s24 + $0x28] sm:$0xff]
    %v3309 = vld [vmem:[%s24 + $0x30] sm:$0xff]
    %v3310 = vld [vmem:[%s24 + $0x38] sm:$0xff]
    %v3311 = vld [vmem:[%s24 + $0x40] sm:$0xff]
    %v3312 = vld [vmem:[%s24 + $0x48] sm:$0xff]
    %v3313 = vld [vmem:[%s24 + $0x50] sm:$0xff]
    %v3314 = vld [vmem:[%s24 + $0x58] sm:$0xff]
    %v3315 = vld [vmem:[%s24 + $0x60] sm:$0xff]
    %v3316 = vld [vmem:[%s24 + $0x68] sm:$0xff]
    %v3317 = vld [vmem:[%s24 + $0x70] sm:$0xff]
    %v3318 = vld [vmem:[%s24 + $0x78] sm:$0xff]
    %v3319 = vld [vmem:[%s25] sm:$0xff]
    %v3320 = vld [vmem:[%s25 + $0x8] sm:$0xff]
    %v3321 = vld [vmem:[%s25 + $0x10] sm:$0xff]
    %v3322 = vld [vmem:[%s25 + $0x18] sm:$0xff]
    %v3323 = vld [vmem:[%s25 + $0x20] sm:$0xff]
    %v3324 = vld [vmem:[%s25 + $0x28] sm:$0xff]
    %v3325 = vld [vmem:[%s25 + $0x30] sm:$0xff]
    %v3326 = vld [vmem:[%s25 + $0x38] sm:$0xff]
    %v3327 = vld [vmem:[%s25 + $0x40] sm:$0xff]
    %v3328 = vld [vmem:[%s25 + $0x48] sm:$0xff]
    %v3329 = vld [vmem:[%s25 + $0x50] sm:$0xff]
    %v3330 = vld [vmem:[%s25 + $0x58] sm:$0xff]
    %v3331 = vld [vmem:[%s25 + $0x60] sm:$0xff]
    %v3332 = vld [vmem:[%s25 + $0x68] sm:$0xff]
    %v3333 = vld [vmem:[%s25 + $0x70] sm:$0xff]
    %v3334 = vld [vmem:[%s25 + $0x78] sm:$0xff]
    %3336 = vset.pattern.permute.xlu0 0
    %3337 = vperm.xlu0 %3336, %v3319
    %v3338 = vpop.permute.xlu0 %3337
    %3341 = vset.pattern.permute.xlu0 0
    %3342 = vperm.xlu0 %3341, %v3320
    %v3343 = vpop.permute.xlu0 %3342
    %3346 = vset.pattern.permute.xlu0 0
    %3347 = vperm.xlu0 %3346, %v3321
    %v3348 = vpop.permute.xlu0 %3347
    %3351 = vset.pattern.permute.xlu0 0
    %3352 = vperm.xlu0 %3351, %v3322
    %v3353 = vpop.permute.xlu0 %3352
    %3356 = vset.pattern.permute.xlu0 0
    %3357 = vperm.xlu0 %3356, %v3323
    %v3358 = vpop.permute.xlu0 %3357
    %3361 = vset.pattern.permute.xlu0 0
    %3362 = vperm.xlu0 %3361, %v3324
    %v3363 = vpop.permute.xlu0 %3362
    %3366 = vset.pattern.permute.xlu0 0
    %3367 = vperm.xlu0 %3366, %v3325
    %v3368 = vpop.permute.xlu0 %3367
    %3371 = vset.pattern.permute.xlu0 0
    %3372 = vperm.xlu0 %3371, %v3326
    %v3373 = vpop.permute.xlu0 %3372
    %3376 = vset.pattern.permute.xlu0 0
    %3377 = vperm.xlu0 %3376, %v3327
    %v3378 = vpop.permute.xlu0 %3377
    %3381 = vset.pattern.permute.xlu0 0
    %3382 = vperm.xlu0 %3381, %v3328
    %v3383 = vpop.permute.xlu0 %3382
    %3386 = vset.pattern.permute.xlu0 0
    %3387 = vperm.xlu0 %3386, %v3329
    %v3388 = vpop.permute.xlu0 %3387
    %3391 = vset.pattern.permute.xlu0 0
    %3392 = vperm.xlu0 %3391, %v3330
    %v3393 = vpop.permute.xlu0 %3392
    %3396 = vset.pattern.permute.xlu0 0
    %3397 = vperm.xlu0 %3396, %v3331
    %v3398 = vpop.permute.xlu0 %3397
    %3401 = vset.pattern.permute.xlu0 0
    %3402 = vperm.xlu0 %3401, %v3332
    %v3403 = vpop.permute.xlu0 %3402
    %3406 = vset.pattern.permute.xlu0 0
    %3407 = vperm.xlu0 %3406, %v3333
    %v3408 = vpop.permute.xlu0 %3407
    %3411 = vset.pattern.permute.xlu0 0
    %3412 = vperm.xlu0 %3411, %v3334
    %v3413 = vpop.permute.xlu0 %3412
    %vm3415 = vcmask 523264
    %v3417 = vsel %vm3415, %v3303, 0
    %v3420 = vsel %vm3415, %v3304, 0
    %v3423 = vsel %vm3415, %v3305, 0
    %v3426 = vsel %vm3415, %v3306, 0
    %v3429 = vsel %vm3415, %v3307, 0
    %v3432 = vsel %vm3415, %v3308, 0
    %v3435 = vsel %vm3415, %v3309, 0
    %v3438 = vsel %vm3415, %v3310, 0
    %v3441 = vsel %vm3415, %v3311, 0
    %v3444 = vsel %vm3415, %v3312, 0
    %v3447 = vsel %vm3415, %v3313, 0
    %v3450 = vsel %vm3415, %v3314, 0
    %v3453 = vsel %vm3415, %v3315, 0
    %v3456 = vsel %vm3415, %v3316, 0
    %v3459 = vsel %vm3415, %v3317, 0
    %v3462 = vsel %vm3415, %v3318, 0
    %3464 = vmatprep.subr.mxu0 0.0
    %3465 = vmatpush1.msra.mxu0 0.0
    %3466 = vmatprep.subr.mxu0 0.0
    %3467 = vmatpush1.msra.mxu0 0.0
    %3468 = vmatprep.subr.mxu0 0.0
    %3469 = vmatpush1.msra.mxu0 0.0
    %3470 = vmatprep.subr.mxu0 0.0
    %3471 = vmatpush1.msra.mxu0 0.0
    %3472 = vmatprep.subr.mxu0 0.0
    %3473 = vmatpush1.msra.mxu0 0.0
    %3474 = vmatprep.subr.mxu0 0.0
    %3475 = vmatpush1.msra.mxu0 0.0
    %3476 = vmatprep.subr.mxu0 0.0
    %3477 = vmatpush1.msra.mxu0 0.0
    %3478 = vmatprep.subr.mxu0 0.0
    %3479 = vmatpush1.msra.mxu0 0.0
    %3480 = vmatprep.subr.mxu0 0.0
    %3481 = vmatpush1.msra.mxu0 %v3302
    %3482 = vmatprep.subr.mxu0 0.0
    %3483 = vmatpush1.msra.mxu0 %v3301
    %3484 = vmatprep.subr.mxu0 0.0
    %3485 = vmatpush1.msra.mxu0 %v3300
    %3486 = vmatprep.subr.mxu0 0.0
    %3487 = vmatpush1.msra.mxu0 %v3299
    %3488 = vmatprep.subr.mxu0 0.0
    %3489 = vmatpush1.msra.mxu0 %v3298
    %3490 = vmatprep.subr.mxu0 0.0
    %3491 = vmatpush1.msra.mxu0 %v3297
    %3492 = vmatprep.subr.mxu0 0.0
    %3493 = vmatpush1.msra.mxu0 %v3296
    %3494 = vmatprep.subr.mxu0 0.0
    %3495 = vmatpush1.msra.mxu0 %v3295
    %3496 = vmatprep.subr.mxu0 0.0
    %3497 = vmatpush2.msra.mxu0 0.0
    %3498 = vmatprep.subr.mxu0 0.0
    %3499 = vmatpush2.msra.mxu0 0.0
    %3500 = vmatprep.subr.mxu0 0.0
    %3501 = vmatpush2.msra.mxu0 0.0
    %3502 = vmatprep.subr.mxu0 0.0
    %3503 = vmatpush2.msra.mxu0 0.0
    %3504 = vmatprep.subr.mxu0 0.0
    %3505 = vmatpush2.msra.mxu0 0.0
    %3506 = vmatprep.subr.mxu0 0.0
    %3507 = vmatpush2.msra.mxu0 0.0
    %3508 = vmatprep.subr.mxu0 0.0
    %3509 = vmatpush2.msra.mxu0 0.0
    %3510 = vmatprep.subr.mxu0 0.0
    %3511 = vmatpush2.msra.mxu0 0.0
    %3512 = vmatprep.subr.mxu0 0.0
    %3513 = vmatpush2.msra.mxu0 0.0
    %3514 = vmatprep.subr.mxu0 0.0
    %3515 = vmatpush2.msra.mxu0 0.0
    %3516 = vmatprep.subr.mxu0 0.0
    %3517 = vmatpush2.msra.mxu0 0.0
    %3518 = vmatprep.subr.mxu0 0.0
    %3519 = vmatpush2.msra.mxu0 0.0
    %3520 = vmatprep.subr.mxu0 0.0
    %3521 = vmatpush2.msra.mxu0 0.0
    %3522 = vmatprep.subr.mxu0 0.0
    %3523 = vmatpush2.msra.mxu0 0.0
    %3524 = vmatprep.subr.mxu0 0.0
    %3525 = vmatpush2.msra.mxu0 0.0
    %3526 = vmatprep.subr.mxu0 0.0
    %3527 = vmatpush2.msra.mxu0 0.0
    %3528 = vmatprep.mubr.f32.mxu0 0.0
    %3529 = vmatmul.mubr.f32.gmra.mxu0 %v3417
    %v3530 = vpop.f32.mrf.mxu0
    %v3531 = vadd.f32 %v3338, %v3530
    %v3532 = vpop.f32.mrf.mxu0
    %3533 = vmatprep.mubr.f32.mxu0 0.0
    %3534 = vmatmul.mubr.f32.gmra.mxu0 %v3420
    %v3535 = vpop.f32.mrf.mxu0
    %v3536 = vadd.f32 %v3343, %v3535
    %v3537 = vpop.f32.mrf.mxu0
    %3538 = vmatprep.mubr.f32.mxu0 0.0
    %3539 = vmatmul.mubr.f32.gmra.mxu0 %v3423
    %v3540 = vpop.f32.mrf.mxu0
    %v3541 = vadd.f32 %v3348, %v3540
    %v3542 = vpop.f32.mrf.mxu0
    %3543 = vmatprep.mubr.f32.mxu0 0.0
    %3544 = vmatmul.mubr.f32.gmra.mxu0 %v3426
    %v3545 = vpop.f32.mrf.mxu0
    %v3546 = vadd.f32 %v3353, %v3545
    %v3547 = vpop.f32.mrf.mxu0
    %3548 = vmatprep.mubr.f32.mxu0 0.0
    %3549 = vmatmul.mubr.f32.gmra.mxu0 %v3429
    %v3550 = vpop.f32.mrf.mxu0
    %v3551 = vadd.f32 %v3358, %v3550
    %v3552 = vpop.f32.mrf.mxu0
    %3553 = vmatprep.mubr.f32.mxu0 0.0
    %3554 = vmatmul.mubr.f32.gmra.mxu0 %v3432
    %v3555 = vpop.f32.mrf.mxu0
    %v3556 = vadd.f32 %v3363, %v3555
    %v3557 = vpop.f32.mrf.mxu0
    %3558 = vmatprep.mubr.f32.mxu0 0.0
    %3559 = vmatmul.mubr.f32.gmra.mxu0 %v3435
    %v3560 = vpop.f32.mrf.mxu0
    %v3561 = vadd.f32 %v3368, %v3560
    %v3562 = vpop.f32.mrf.mxu0
    %3563 = vmatprep.mubr.f32.mxu0 0.0
    %3564 = vmatmul.mubr.f32.gmra.mxu0 %v3438
    %v3565 = vpop.f32.mrf.mxu0
    %v3566 = vadd.f32 %v3373, %v3565
    %v3567 = vpop.f32.mrf.mxu0
    %3568 = vmatprep.mubr.f32.mxu0 0.0
    %3569 = vmatmul.mubr.f32.gmra.mxu0 %v3441
    %v3570 = vpop.f32.mrf.mxu0
    %v3571 = vadd.f32 %v3378, %v3570
    %v3572 = vpop.f32.mrf.mxu0
    %3573 = vmatprep.mubr.f32.mxu0 0.0
    %3574 = vmatmul.mubr.f32.gmra.mxu0 %v3444
    %v3575 = vpop.f32.mrf.mxu0
    %v3576 = vadd.f32 %v3383, %v3575
    %v3577 = vpop.f32.mrf.mxu0
    %3578 = vmatprep.mubr.f32.mxu0 0.0
    %3579 = vmatmul.mubr.f32.gmra.mxu0 %v3447
    %v3580 = vpop.f32.mrf.mxu0
    %v3581 = vadd.f32 %v3388, %v3580
    %v3582 = vpop.f32.mrf.mxu0
    %3583 = vmatprep.mubr.f32.mxu0 0.0
    %3584 = vmatmul.mubr.f32.gmra.mxu0 %v3450
    %v3585 = vpop.f32.mrf.mxu0
    %v3586 = vadd.f32 %v3393, %v3585
    %v3587 = vpop.f32.mrf.mxu0
    %3588 = vmatprep.mubr.f32.mxu0 0.0
    %3589 = vmatmul.mubr.f32.gmra.mxu0 %v3453
    %v3590 = vpop.f32.mrf.mxu0
    %v3591 = vadd.f32 %v3398, %v3590
    %v3592 = vpop.f32.mrf.mxu0
    %3593 = vmatprep.mubr.f32.mxu0 0.0
    %3594 = vmatmul.mubr.f32.gmra.mxu0 %v3456
    %v3595 = vpop.f32.mrf.mxu0
    %v3596 = vadd.f32 %v3403, %v3595
    %v3597 = vpop.f32.mrf.mxu0
    %3598 = vmatprep.mubr.f32.mxu0 0.0
    %3599 = vmatmul.mubr.f32.gmra.mxu0 %v3459
    %v3600 = vpop.f32.mrf.mxu0
    %v3601 = vadd.f32 %v3408, %v3600
    %v3602 = vpop.f32.mrf.mxu0
    %3603 = vmatprep.mubr.f32.mxu0 0.0
    %3604 = vmatmul.mubr.f32.gmra.mxu0 %v3462
    %v3605 = vpop.f32.mrf.mxu0
    %v3606 = vadd.f32 %v3413, %v3605
    %v3607 = vpop.f32.mrf.mxu0
    %3608 = vdwg.mxu0
    %3609 = vxpose.xlu0.b32.start [1/16] %v3531, 128
    %3610 = vxpose.xlu0.b32.cont [2/16] %v3536, 128
    %3611 = vxpose.xlu0.b32.cont [3/16] %v3541, 128
    %3612 = vxpose.xlu0.b32.cont [4/16] %v3546, 128
    %3613 = vxpose.xlu0.b32.cont [5/16] %v3551, 128
    %3614 = vxpose.xlu0.b32.cont [6/16] %v3556, 128
    %3615 = vxpose.xlu0.b32.cont [7/16] %v3561, 128
    %3616 = vxpose.xlu0.b32.cont [8/16] %v3566, 128
    %3617 = vxpose.xlu0.b32.cont [9/16] %v3571, 128
    %3618 = vxpose.xlu0.b32.cont [10/16] %v3576, 128
    %3619 = vxpose.xlu0.b32.cont [11/16] %v3581, 128
    %3620 = vxpose.xlu0.b32.cont [12/16] %v3586, 128
    %3621 = vxpose.xlu0.b32.cont [13/16] %v3591, 128
    %3622 = vxpose.xlu0.b32.cont [14/16] %v3596, 128
    %3623 = vxpose.xlu0.b32.cont [15/16] %v3601, 128
    %3624 = vxpose.xlu0.b32.end [16/16] %v3606, 128
    %v3625 = vpop.trf.xlu0
    %v3626 = vpop.trf.xlu0
    %v3627 = vpop.trf.xlu0
    %v3628 = vpop.trf.xlu0
    %v3629 = vpop.trf.xlu0
    %v3630 = vpop.trf.xlu0
    %v3631 = vpop.trf.xlu0
    %v3632 = vpop.trf.xlu0
    %v3633 = vpop.trf.xlu0
    %v3634 = vpop.trf.xlu0
    %v3635 = vpop.trf.xlu0
    %v3636 = vpop.trf.xlu0
    %v3637 = vpop.trf.xlu0
    %v3638 = vpop.trf.xlu0
    %v3639 = vpop.trf.xlu0
    %v3640 = vpop.trf.xlu0
    %3641 = vst [vmem:[#allocation2] sm:$0xff] %v3625
    // Predicated region
    $region106: #{tpu_custom_call.1} parent=1 // pred_check
      _
    $region107: #{tpu_custom_call.1} parent=1 // pred_check_branch
      %3643 = sbr.rel (0) target = $region109
    $region108: #{tpu_custom_call.1} parent=1 // pred_region
      %s3645 = ssub.s32 128, 128
      %3646 = vsyncadd [#allocation3], %s3645
      %s3648 = sshll.u32 [#allocation2], 4
      %s3649 = int_to_ptr.vmem [resolvable:$true] %s3648
      %3651 = dma.vmem_to_hbm [thread:$0]  %s3649, 128, %s26, [#allocation3]
    $region109: #{tpu_custom_call.1} parent=1 // pred_fallthru
      _
    // Predicated region
    $region110: #{tpu_custom_call.1} parent=1 // pred_check
      _
    $region111: #{tpu_custom_call.1} parent=1 // pred_check_branch
      %3653 = sbr.rel (0) target = $region113
    $region112: #{tpu_custom_call.1} parent=1 // pred_region
      %3654 = dma.done [#allocation3], 128
    $region113: #{tpu_custom_call.1} parent=1 // pred_fallthru
      _
    %3655 = vsyncpa [#allocation3], 1

</llo_original>
